<compile_context>
chip_gen: v7x
topology: tpu7x:2x2x1
jax: 0.10.0
libtpu: 0.0.40
codegen_flags: <defaults>
</compile_context>

<pallas_src>
import functools

import numpy as np
import jax
import jax.numpy as jnp
from jax.experimental import pallas as pl
from jax.experimental.pallas import tpu as pltpu

_SLAB_W = 16   # kernel-1 output lanes: [xt(D) | du/dxt(D) | u | pad] -> 16


def _round_up(x, m):
    return (x + m - 1) // m * m


def _vmem():
    return pl.BlockSpec(memory_space=pltpu.MemorySpace.VMEM)


def _nbytes(a):
    return int(np.prod(a.shape)) * a.dtype.itemsize


# ----------------------------------------------------------------------------
# Kernel 1: Solution_u forward + analytic d(sum u)/d(xt), emitted directly as
# the CNN input slab [xt | u_t | u_x | u | pad] (single lane-dense store).
# ----------------------------------------------------------------------------
def solution_u_kernel(xt_ref, xemb, w1, b1, w2, b2, w3, b3, w4, b4, w5, b5,
                      w1t, w2t, w3t, w4t, w5r, o_ref, *, d_in):
    xt = xt_ref[...]                                             # (tm, D)
    # W1 is row-permuted at param-build time so xt @ w1 == cat([x, t]) @ W1.
    pre1 = jnp.dot(xt, w1[...], preferred_element_type=jnp.float32) + b1[...]
    h1 = jnp.sin(pre1)
    pre2 = jnp.dot(h1, w2[...], preferred_element_type=jnp.float32) + b2[...]
    h2 = jnp.sin(pre2)
    e = jnp.dot(h2, w3[...], preferred_element_type=jnp.float32) + b3[...]
    pre4 = jnp.dot(e, w4[...], preferred_element_type=jnp.float32) + b4[...]
    p1 = jnp.sin(pre4)
    u = jnp.dot(p1, w5[...], preferred_element_type=jnp.float32) + b5[...]  # (tm,1)

    # Hand-rolled reverse mode for d(sum u)/d(xt) (Dropout = identity in eval).
    # Backward weights arrive pre-transposed; w1t is zero-embedded so the
    # gradient lands directly in lanes [d_in, 2*d_in) of the packed output.
    g_pre4 = w5r[...] * jnp.cos(pre4)                            # (tm, 32)
    g_e = jnp.dot(g_pre4, w4t[...], preferred_element_type=jnp.float32)
    g_h2 = jnp.dot(g_e, w3t[...], preferred_element_type=jnp.float32)
    g_pre2 = g_h2 * jnp.cos(pre2)
    g_h1 = jnp.dot(g_pre2, w2t[...], preferred_element_type=jnp.float32)
    g_pre1 = g_h1 * jnp.cos(pre1)
    g_xt = jnp.dot(g_pre1, w1t[...], preferred_element_type=jnp.float32)

    # Pack u into lane 2*d_in; xt passthrough lands in lanes [0, d_in) via a
    # tiny embed matmul.  One wide (tm, 16) store, no masked narrow stores.
    u_slot = (jax.lax.broadcasted_iota(jnp.int32, (1, o_ref.shape[1]), 1)
              == 2 * d_in).astype(jnp.float32)
    o_ref[...] = (jnp.dot(xt, xemb[...], preferred_element_type=jnp.float32)
                  + g_xt + u * u_slot).astype(o_ref.dtype)


def solution_u_call(xt_rows, p, tm_max=1024):
    n, d = xt_rows.shape
    out_w = p["w1t"].shape[1]
    n_pad = _round_up(n, 8)
    tm = min(tm_max, n_pad)
    # v7x megacore: keep >=2 grid steps when there is enough work so the
    # 'parallel' axis can be sharded across both TensorCores.
    if n_pad >= 16 and n_pad // tm < 2:
        tm = _round_up((n_pad + 1) // 2, 8)
    n_pad = _round_up(n_pad, tm)
    if n_pad != n:
        xt_rows = jnp.pad(xt_rows, ((0, n_pad - n), (0, 0)))

    order = ("xemb", "w1", "b1", "w2", "b2", "w3", "b3", "w4", "b4",
             "w5", "b5", "w1t", "w2t", "w3t", "w4t", "w5r")
    weights = [p[k] for k in order]

    def _full(a):
        nd = a.ndim
        return pl.BlockSpec(a.shape, lambda i, nd=nd: (0,) * nd)

    hp = p["w2"].shape[0]
    flops = 4 * n_pad * (d * hp + hp * hp + hp * 32 + 32 * 32 + 32 + d * out_w)
    trans = 2 * n_pad * (hp + hp + 32)
    bytes_acc = 4 * n_pad * (d + out_w) + sum(_nbytes(a) for a in weights)

    out = pl.pallas_call(
        functools.partial(solution_u_kernel, d_in=d),
        out_shape=jax.ShapeDtypeStruct((n_pad, out_w), jnp.float32),
        grid=(n_pad // tm,),
        in_specs=[pl.BlockSpec((tm, d), lambda i: (i, 0))]
                 + [_full(a) for a in weights],
        out_specs=pl.BlockSpec((tm, out_w), lambda i: (i, 0)),
        compiler_params=pltpu.CompilerParams(
            dimension_semantics=("parallel",),
            vmem_limit_bytes=32 * 1024 * 1024),
        cost_estimate=pl.CostEstimate(flops=int(flops),
                                      transcendentals=int(trans),
                                      bytes_accessed=int(bytes_acc)),
    )(xt_rows, *weights)
    return out[:n]


# ----------------------------------------------------------------------------
# Kernel 2: CNN + feature_extractor + dynamical_F + PDE residual, fully fused
# (the (B, 32) feature vector never leaves VMEM).
# ----------------------------------------------------------------------------
def cnn_f_kernel(slab_ref, sums_ref,
                 s1_ref, sc1_ref, sb1_ref, sc2_ref, sb2_ref, pool_ref,
                 wc1_ref, bc1_ref,
                 l1a_w, l1a_b, l1s_w, l1s_b, l1b_w, l1b_b,
                 l2a_w, l2a_b, l2s_w, l2s_b, l2b_w, l2b_b,
                 fe1_w, fe1_b, fe2_w, fe2_b,
                 fw1u, fw1f, fb1, fw2, fb2, fw3, fb3,
                 u_ref, f_ref, *, d_in):
    slab = slab_ref[...]                                         # (B*S, 16) f32
    # Per-batch sums over S: lane 0 = t -> charge_time, lane 2*d_in = u_row.
    sums = jnp.dot(sums_ref[...], slab, preferred_element_type=jnp.float32)
    charge_time = sums[:, 0:1]                                   # (B, 1)
    u = sums[:, 2 * d_in:2 * d_in + 1]                           # (B, 1)

    def dotf(a, b):
        return jnp.dot(a, b, preferred_element_type=jnp.float32)

    def conv3_s1(x_bf, sel_ref, w_ref, b_ref):
        # Stride-1 k=3 pad=1 conv: center tap is the IDENTITY (no selection
        # matmul); the +-1 taps use 0/1 selection matmuls that also encode
        # zero padding and batch boundaries.
        out = dotf(x_bf, w_ref[1])
        for wj, sj in ((0, 0), (2, 1)):
            g = dotf(sel_ref[sj], x_bf).astype(jnp.bfloat16)
            out = out + dotf(g, w_ref[wj])
        return out + b_ref[...]

    def res_block(h_bf, sel_ref, wa_ref, ba_ref, ws_ref, bs_ref,
                  selb_ref, wb_ref, bb_ref):
        # Stride-2 main conv and stride-2 1x1 skip conv share ONE tap-gather
        # pass: the skip conv reads exactly the center tap (j == 1).
        main = None
        skip = None
        for j in range(3):
            g = dotf(sel_ref[j], h_bf).astype(jnp.bfloat16)
            t = dotf(g, wa_ref[j])
            main = t if main is None else main + t
            if j == 1:
                skip = dotf(g, ws_ref[...]) + bs_ref[...]
        main = jnp.maximum(main + ba_ref[...], 0.0).astype(jnp.bfloat16)
        out = conv3_s1(main, selb_ref, wb_ref, bb_ref) + skip
        return jnp.maximum(out, 0.0).astype(jnp.bfloat16)

    # CNN in bf16 (f32 accumulation).  conv1 consumes the full 16-lane slab;
    # its weight rows >= 2*d_in are zero so the packed u / pad lanes are inert.
    xb = slab.astype(jnp.bfloat16)
    h = jnp.maximum(conv3_s1(xb, s1_ref, wc1_ref, bc1_ref),
                    0.0).astype(jnp.bfloat16)                    # (B*L, 24)
    h = res_block(h, sc1_ref, l1a_w, l1a_b, l1s_w, l1s_b,
                  sb1_ref, l1b_w, l1b_b)                         # (B*L1, 32)
    h = res_block(h, sc2_ref, l2a_w, l2a_b, l2s_w, l2s_b,
                  sb2_ref, l2b_w, l2b_b)                         # (B*L2, 48)
    pooled = dotf(pool_ref[...], h)                              # (B, 48) f32
    feat = jnp.maximum(dotf(pooled.astype(jnp.bfloat16), fe1_w[...])
                       + fe1_b[...], 0.0)
    feat = dotf(feat.astype(jnp.bfloat16), fe2_w[...]) + fe2_b[...]  # (B,32) f32

    # dynamical_F MLP (f32) fused with the PDE residual.  The K=1 contraction
    # u @ W1[:1] is a VPU broadcast multiply, not an MXU dot.
    pre1 = u * fw1u[...] + dotf(feat, fw1f[...]) + fb1[...]
    hF = jnp.sin(pre1)
    hF = jnp.sin(dotf(hF, fw2[...]) + fb2[...])
    # Dropout -> identity (eval mode).
    Fv = dotf(hF, fw3[...]) + fb3[...]

    u_ref[...] = u.astype(u_ref.dtype)
    f_ref[...] = (u / charge_time - Fv).astype(f_ref.dtype)


def _tap_select_stride2(B, L):
    """3-tap selection matrices for a k=3, pad=1, stride=2 conv."""
    L_out = (L - 1) // 2 + 1
    S = np.zeros((3, B * L_out, B * L), np.float32)
    for j in range(3):
        for b in range(B):
            for p in range(L_out):
                ip = 2 * p + j - 1
                if 0 <= ip < L:
                    S[j, b * L_out + p, b * L + ip] = 1.0
    return S, L_out


def _tap_select_edges(B, L):
    """+-1 tap selection for a stride-1 conv (center tap is the identity)."""
    S = np.zeros((2, B * L, B * L), np.float32)
    for idx, dj in enumerate((-1, 1)):
        for b in range(B):
            for p in range(L):
                ip = p + dj
                if 0 <= ip < L:
                    S[idx, b * L + p, b * L + ip] = 1.0
    return S


def cnn_f_call(slab, pC, pF, B, S, D):
    # TODO(synk): for large B*L replace these O((B*L)^2) 0/1 tap-selection
    # matmuls with pltpu.roll / strided-slice taps + boundary masks and give
    # this kernel a per-batch 'parallel' grid (v7x dual-TC, VMEM scalability).
    BL = B * S
    s1 = _tap_select_edges(B, S)
    sc1, L1 = _tap_select_stride2(B, S)
    sb1 = _tap_select_edges(B, L1)
    sc2, L2 = _tap_select_stride2(B, L1)
    sb2 = _tap_select_edges(B, L2)
    pool = np.zeros((B, B * L2), np.float32)
    sums = np.zeros((B, BL), np.float32)
    for b in range(B):
        pool[b, b * L2:(b + 1) * L2] = 1.0 / L2
        sums[b, b * S:(b + 1) * S] = 1.0

    sels = [jnp.asarray(a, jnp.bfloat16) for a in (s1, sc1, sb1, sc2, sb2, pool)]
    sums = jnp.asarray(sums, jnp.float32)   # exact f32 sums for u / charge_time

    cw_order = ("conv1_w", "conv1_b", "l1a_w", "l1a_b", "l1s_w", "l1s_b",
                "l1b_w", "l1b_b", "l2a_w", "l2a_b", "l2s_w", "l2s_b",
                "l2b_w", "l2b_b", "fe1_w", "fe1_b", "fe2_w", "fe2_b")
    cw = [pC[k] for k in cw_order]
    fw_order = ("w1u", "w1f", "b1", "w2", "b2", "w3", "b3")
    fw = [pF[k] for k in fw_order]

    BL1, BL2 = B * L1, B * L2
    FH = pF["w2"].shape[0]

    def mm(m, k, n):
        return 2 * m * k * n

    flops = (2 * mm(BL, BL, _SLAB_W) + 3 * mm(BL, _SLAB_W, 24)
             + 3 * mm(BL1, BL, 24) + 4 * mm(BL1, 24, 32)
             + 2 * mm(BL1, BL1, 32) + 3 * mm(BL1, 32, 32)
             + 3 * mm(BL2, BL1, 32) + 4 * mm(BL2, 32, 48)
             + 2 * mm(BL2, BL2, 48) + 3 * mm(BL2, 48, 48)
             + mm(B, BL2, 48) + mm(B, 48, 64) + mm(B, 64, 32)
             + mm(B, BL, _SLAB_W) + mm(B, 32, FH) + mm(B, FH, FH) + mm(B, FH, 1))
    trans = 2 * B * FH
    bytes_acc = (_nbytes(slab) + 2 * B * 4 + _nbytes(sums)
                 + sum(_nbytes(a) for a in sels)
                 + sum(_nbytes(a) for a in cw + fw))

    u, f = pl.pallas_call(
        functools.partial(cnn_f_kernel, d_in=D),
        out_shape=(jax.ShapeDtypeStruct((B, 1), jnp.float32),
                   jax.ShapeDtypeStruct((B, 1), jnp.float32)),
        in_specs=[_vmem()] * (2 + len(sels) + len(cw) + len(fw)),
        out_specs=(_vmem(), _vmem()),
        cost_estimate=pl.CostEstimate(flops=int(flops), transcendentals=int(trans),
                                      bytes_accessed=int(bytes_acc)),
    )(slab, sums, *sels, *cw, *fw)
    return u, f


# ----------------------------------------------------------------------------
# PINN forward: 2 pallas_calls, no JAX glue between them.
# ----------------------------------------------------------------------------
def pinn_forward(params, xt):
    B, S, D = xt.shape
    # NOTE: kernel 2 divides by charge_time = sum_S t; t ~ U(0.1, 1) keeps it
    # nonzero here (the original module has no epsilon guard either).
    slab = solution_u_call(xt.reshape(B * S, D), params["solution_u"])
    u, f = cnn_f_call(slab, params["cnn"], params["F"], B=B, S=S, D=D)
    return u, f


# ----------------------------------------------------------------------------
# Deterministic synthetic parameters (shapes follow the module __init__).
# ----------------------------------------------------------------------------
def make_params(key, D=6, F_hidden=60, enc_hidden=60):
    keys = iter(jax.random.split(key, 64))
    bn = 1.0 / np.sqrt(1.0 + 1e-5)    # eval BatchNorm fold (default init/stats)

    def xavier(shape, fan_in, fan_out):
        std = (2.0 / (fan_in + fan_out)) ** 0.5
        return std * jax.random.normal(next(keys), shape, jnp.float32)

    def lin(din, dout, pad_in=0, pad_out=0):
        w = jnp.pad(xavier((din, dout), din, dout), ((0, pad_in), (0, pad_out)))
        b = jnp.zeros((1, dout + pad_out), jnp.float32)
        return w, b

    # Solution_u: MLP(6->60->60->32, Sin) + Predictor(32->32->1, Sin);
    # hidden 60 zero-padded to 64 (exact maths).  W1 is built in z = [x, t]
    # order then row-permuted so the kernel consumes xt = [t, x] directly.
    HP = _round_up(enc_hidden, 64)
    w1, b1 = lin(D, enc_hidden, 0, HP - enc_hidden)
    w2, b2 = lin(enc_hidden, enc_hidden, HP - enc_hidden, HP - enc_hidden)
    w3, b3 = lin(enc_hidden, 32, HP - enc_hidden, 0)
    w4, b4 = lin(32, 32)
    w5, b5 = lin(32, 1)
    perm = jnp.array([D - 1] + list(range(D - 1)), jnp.int32)
    w1p = w1[perm, :]                                   # xt-ordered rows
    solution_u = dict(
        w1=w1p, b1=b1, w2=w2, b2=b2, w3=w3, b3=b3, w4=w4, b4=b4, w5=w5, b5=b5,
        # Backward weights pre-transposed; W1^T is embedded into output lanes
        # [D, 2D) so d(sum u)/d(xt) lands right next to xt in the slab.
        w1t=jnp.pad(w1p.T, ((0, 0), (D, _SLAB_W - 2 * D))),
        w2t=w2.T, w3t=w3.T, w4t=w4.T, w5r=w5.T,
        xemb=jnp.eye(D, _SLAB_W, dtype=jnp.float32))    # xt passthrough lanes

    # dynamical_F: MLP(33 -> F_hidden -> F_hidden -> 1, Sin); hidden padded.
    FH = _round_up(F_hidden, 64)
    wf1, bf1 = lin(1 + 32, F_hidden, 0, FH - F_hidden)
    wf2, bf2 = lin(F_hidden, F_hidden, FH - F_hidden, FH - F_hidden)
    wf3, bf3 = lin(F_hidden, 1, FH - F_hidden, 0)
    F = dict(w1u=wf1[:1, :], w1f=wf1[1:, :], b1=bf1,    # split input [u | feat]
             w2=wf2, b2=bf2, w3=wf3, b3=bf3)

    # CNN feature extractor (tap-major conv weights (3, cin, cout), bf16 MXU
    # operands, f32 biases).  conv1 in-channels padded to the 16-lane slab.
    # TODO(synk): the source CNN hardcodes Conv1d(40, 24, ...) but the PINN
    # feeds cat([xt, u_t, u_x]) which has 2*D channels; we parameterize the
    # first conv with in_channels = 2*D (= 12 here).
    cin = 2 * D

    def conv3_w(ci, co, pad_ci=0):
        w = xavier((3, ci, co), 3 * ci, 3 * co) * bn
        if pad_ci:
            w = jnp.pad(w, ((0, 0), (0, pad_ci), (0, 0)))
        return w.astype(jnp.bfloat16), jnp.zeros((1, co), jnp.float32)

    def skip_w(ci, co):
        return (xavier((ci, co), ci, co) * bn).astype(jnp.bfloat16), \
               jnp.zeros((1, co), jnp.float32)

    c1w, c1b = conv3_w(cin, 24, pad_ci=_SLAB_W - cin)
    l1a_w, l1a_b = conv3_w(24, 32)
    l1s_w, l1s_b = skip_w(24, 32)
    l1b_w, l1b_b = conv3_w(32, 32)
    l2a_w, l2a_b = conv3_w(32, 48)
    l2s_w, l2s_b = skip_w(32, 48)
    l2b_w, l2b_b = conv3_w(48, 48)
    fe1_w, fe1_b = lin(48, 64)
    fe2_w, fe2_b = lin(64, 32)
    cnn = dict(conv1_w=c1w, conv1_b=c1b,
               l1a_w=l1a_w, l1a_b=l1a_b, l1s_w=l1s_w, l1s_b=l1s_b,
               l1b_w=l1b_w, l1b_b=l1b_b,
               l2a_w=l2a_w, l2a_b=l2a_b, l2s_w=l2s_w, l2s_b=l2s_b,
               l2b_w=l2b_w, l2b_b=l2b_b,
               fe1_w=fe1_w.astype(jnp.bfloat16), fe1_b=fe1_b,
               fe2_w=fe2_w.astype(jnp.bfloat16), fe2_b=fe2_b)

    return dict(solution_u=solution_u, cnn=cnn, F=F)


# ----------------------------------------------------------------------------
if __name__ == "__main__":
    key = jax.random.PRNGKey(0)
    kx, kp = jax.random.split(key)

    B, S, D = 2, 8, 6   # batch, small_batch (sequence), feature dim (t + 5 x)
    xt = jax.random.uniform(kx, (B, S, D), jnp.float32, minval=0.1, maxval=1.0)
    params = make_params(kp, D=D)

    fwd = jax.jit(pinn_forward)
    u, f = fwd(params, xt)
    jax.block_until_ready((u, f))

    assert u.shape == (B, 1) and f.shape == (B, 1)
    assert bool(jnp.all(jnp.isfinite(u))) and bool(jnp.all(jnp.isfinite(f)))
    print("KERNEL_OK")
</pallas_src>

<mosaic_0001>
module attributes {stable_mosaic.version = 11 : i64} {
  func.func @cnn_f_kernel(%arg0: memref<16x16xf32, #tpu.memory_space<vmem>>, %arg1: memref<2x16xf32, #tpu.memory_space<vmem>>, %arg2: memref<2x16x16xbf16, #tpu.memory_space<vmem>>, %arg3: memref<3x8x16xbf16, #tpu.memory_space<vmem>>, %arg4: memref<2x8x8xbf16, #tpu.memory_space<vmem>>, %arg5: memref<3x4x8xbf16, #tpu.memory_space<vmem>>, %arg6: memref<2x4x4xbf16, #tpu.memory_space<vmem>>, %arg7: memref<2x4xbf16, #tpu.memory_space<vmem>>, %arg8: memref<3x16x24xbf16, #tpu.memory_space<vmem>>, %arg9: memref<1x24xf32, #tpu.memory_space<vmem>>, %arg10: memref<3x24x32xbf16, #tpu.memory_space<vmem>>, %arg11: memref<1x32xf32, #tpu.memory_space<vmem>>, %arg12: memref<24x32xbf16, #tpu.memory_space<vmem>>, %arg13: memref<1x32xf32, #tpu.memory_space<vmem>>, %arg14: memref<3x32x32xbf16, #tpu.memory_space<vmem>>, %arg15: memref<1x32xf32, #tpu.memory_space<vmem>>, %arg16: memref<3x32x48xbf16, #tpu.memory_space<vmem>>, %arg17: memref<1x48xf32, #tpu.memory_space<vmem>>, %arg18: memref<32x48xbf16, #tpu.memory_space<vmem>>, %arg19: memref<1x48xf32, #tpu.memory_space<vmem>>, %arg20: memref<3x48x48xbf16, #tpu.memory_space<vmem>>, %arg21: memref<1x48xf32, #tpu.memory_space<vmem>>, %arg22: memref<48x64xbf16, #tpu.memory_space<vmem>>, %arg23: memref<1x64xf32, #tpu.memory_space<vmem>>, %arg24: memref<64x32xbf16, #tpu.memory_space<vmem>>, %arg25: memref<1x32xf32, #tpu.memory_space<vmem>>, %arg26: memref<1x64xf32, #tpu.memory_space<vmem>>, %arg27: memref<32x64xf32, #tpu.memory_space<vmem>>, %arg28: memref<1x64xf32, #tpu.memory_space<vmem>>, %arg29: memref<64x64xf32, #tpu.memory_space<vmem>>, %arg30: memref<1x64xf32, #tpu.memory_space<vmem>>, %arg31: memref<64x1xf32, #tpu.memory_space<vmem>>, %arg32: memref<1x1xf32, #tpu.memory_space<vmem>>, %arg33: memref<2x1xf32, #tpu.memory_space<vmem>>, %arg34: memref<2x1xf32, #tpu.memory_space<vmem>>) attributes {dimension_semantics = [], scalar_prefetch = 0 : i64, scratch_operands = 0 : i64, tpu.core_type = #tpu.core_type<tc>} {
    %c0 = arith.constant 0 : index
    %c0_0 = arith.constant 0 : index
    %0 = vector.load %arg0[%c0, %c0_0] : memref<16x16xf32, #tpu.memory_space<vmem>>, vector<16x16xf32>
    %c0_1 = arith.constant 0 : index
    %c0_2 = arith.constant 0 : index
    %1 = vector.load %arg1[%c0_1, %c0_2] : memref<2x16xf32, #tpu.memory_space<vmem>>, vector<2x16xf32>
    %cst = arith.constant dense<0.000000e+00> : vector<2x16xf32>
    %2 = tpu.matmul %1, %0, %cst {dimension_numbers = #tpu.dot_dimension_numbers<[1], [0], [0], [1], [0, 0, 1, 1], [], []>} : vector<2x16xf32>, vector<16x16xf32>, vector<2x16xf32> -> vector<2x16xf32>
    %3 = vector.extract_strided_slice %2 {offsets = [0, 0], sizes = [2, 1], strides = [1, 1]} : vector<2x16xf32> to vector<2x1xf32>
    %4 = vector.extract_strided_slice %2 {offsets = [0, 12], sizes = [2, 1], strides = [1, 1]} : vector<2x16xf32> to vector<2x1xf32>
    %5 = arith.truncf %0 : vector<16x16xf32> to vector<16x16xbf16>
    %c1 = arith.constant 1 : index
    %c0_3 = arith.constant 0 : index
    %c0_4 = arith.constant 0 : index
    %6 = vector.load %arg8[%c1, %c0_3, %c0_4] : memref<3x16x24xbf16, #tpu.memory_space<vmem>>, vector<1x16x24xbf16>
    %7 = vector.shape_cast %6 : vector<1x16x24xbf16> to vector<16x24xbf16>
    %cst_5 = arith.constant dense<0.000000e+00> : vector<16x24xf32>
    %8 = tpu.matmul %5, %7, %cst_5 {dimension_numbers = #tpu.dot_dimension_numbers<[1], [0], [0], [1], [0, 0, 1, 1], [], []>} : vector<16x16xbf16>, vector<16x24xbf16>, vector<16x24xf32> -> vector<16x24xf32>
    %c0_6 = arith.constant 0 : index
    %c0_7 = arith.constant 0 : index
    %c0_8 = arith.constant 0 : index
    %9 = vector.load %arg2[%c0_6, %c0_7, %c0_8] : memref<2x16x16xbf16, #tpu.memory_space<vmem>>, vector<1x16x16xbf16>
    %10 = vector.shape_cast %9 : vector<1x16x16xbf16> to vector<16x16xbf16>
    %cst_9 = arith.constant dense<0.000000e+00> : vector<16x16xf32>
    %11 = tpu.matmul %10, %5, %cst_9 {dimension_numbers = #tpu.dot_dimension_numbers<[1], [0], [0], [1], [0, 0, 1, 1], [], []>} : vector<16x16xbf16>, vector<16x16xbf16>, vector<16x16xf32> -> vector<16x16xf32>
    %12 = arith.truncf %11 : vector<16x16xf32> to vector<16x16xbf16>
    %c0_10 = arith.constant 0 : index
    %c0_11 = arith.constant 0 : index
    %c0_12 = arith.constant 0 : index
    %13 = vector.load %arg8[%c0_10, %c0_11, %c0_12] : memref<3x16x24xbf16, #tpu.memory_space<vmem>>, vector<1x16x24xbf16>
    %14 = vector.shape_cast %13 : vector<1x16x24xbf16> to vector<16x24xbf16>
    %cst_13 = arith.constant dense<0.000000e+00> : vector<16x24xf32>
    %15 = tpu.matmul %12, %14, %cst_13 {dimension_numbers = #tpu.dot_dimension_numbers<[1], [0], [0], [1], [0, 0, 1, 1], [], []>} : vector<16x16xbf16>, vector<16x24xbf16>, vector<16x24xf32> -> vector<16x24xf32>
    %16 = arith.addf %8, %15 : vector<16x24xf32>
    %c1_14 = arith.constant 1 : index
    %c0_15 = arith.constant 0 : index
    %c0_16 = arith.constant 0 : index
    %17 = vector.load %arg2[%c1_14, %c0_15, %c0_16] : memref<2x16x16xbf16, #tpu.memory_space<vmem>>, vector<1x16x16xbf16>
    %18 = vector.shape_cast %17 : vector<1x16x16xbf16> to vector<16x16xbf16>
    %cst_17 = arith.constant dense<0.000000e+00> : vector<16x16xf32>
    %19 = tpu.matmul %18, %5, %cst_17 {dimension_numbers = #tpu.dot_dimension_numbers<[1], [0], [0], [1], [0, 0, 1, 1], [], []>} : vector<16x16xbf16>, vector<16x16xbf16>, vector<16x16xf32> -> vector<16x16xf32>
    %20 = arith.truncf %19 : vector<16x16xf32> to vector<16x16xbf16>
    %c2 = arith.constant 2 : index
    %c0_18 = arith.constant 0 : index
    %c0_19 = arith.constant 0 : index
    %21 = vector.load %arg8[%c2, %c0_18, %c0_19] : memref<3x16x24xbf16, #tpu.memory_space<vmem>>, vector<1x16x24xbf16>
    %22 = vector.shape_cast %21 : vector<1x16x24xbf16> to vector<16x24xbf16>
    %cst_20 = arith.constant dense<0.000000e+00> : vector<16x24xf32>
    %23 = tpu.matmul %20, %22, %cst_20 {dimension_numbers = #tpu.dot_dimension_numbers<[1], [0], [0], [1], [0, 0, 1, 1], [], []>} : vector<16x16xbf16>, vector<16x24xbf16>, vector<16x24xf32> -> vector<16x24xf32>
    %24 = arith.addf %16, %23 : vector<16x24xf32>
    %c0_21 = arith.constant 0 : index
    %c0_22 = arith.constant 0 : index
    %25 = vector.load %arg9[%c0_21, %c0_22] : memref<1x24xf32, #tpu.memory_space<vmem>>, vector<1x24xf32>
    %26 = vector.broadcast %25 : vector<1x24xf32> to vector<16x24xf32>
    %27 = arith.addf %24, %26 : vector<16x24xf32>
    %cst_23 = arith.constant 0.000000e+00 : f32
    %28 = vector.broadcast %cst_23 : f32 to vector<16x24xf32>
    %29 = arith.maximumf %27, %28 : vector<16x24xf32>
    %30 = arith.truncf %29 : vector<16x24xf32> to vector<16x24xbf16>
    %c0_24 = arith.constant 0 : index
    %c0_25 = arith.constant 0 : index
    %c0_26 = arith.constant 0 : index
    %31 = vector.load %arg3[%c0_24, %c0_25, %c0_26] : memref<3x8x16xbf16, #tpu.memory_space<vmem>>, vector<1x8x16xbf16>
    %32 = vector.shape_cast %31 : vector<1x8x16xbf16> to vector<8x16xbf16>
    %cst_27 = arith.constant dense<0.000000e+00> : vector<8x24xf32>
    %33 = tpu.matmul %32, %30, %cst_27 {dimension_numbers = #tpu.dot_dimension_numbers<[1], [0], [0], [1], [0, 0, 1, 1], [], []>} : vector<8x16xbf16>, vector<16x24xbf16>, vector<8x24xf32> -> vector<8x24xf32>
    %34 = arith.truncf %33 : vector<8x24xf32> to vector<8x24xbf16>
    %c0_28 = arith.constant 0 : index
    %c0_29 = arith.constant 0 : index
    %c0_30 = arith.constant 0 : index
    %35 = vector.load %arg10[%c0_28, %c0_29, %c0_30] : memref<3x24x32xbf16, #tpu.memory_space<vmem>>, vector<1x24x32xbf16>
    %36 = vector.shape_cast %35 : vector<1x24x32xbf16> to vector<24x32xbf16>
    %cst_31 = arith.constant dense<0.000000e+00> : vector<8x32xf32>
    %37 = tpu.matmul %34, %36, %cst_31 {dimension_numbers = #tpu.dot_dimension_numbers<[1], [0], [0], [1], [0, 0, 1, 1], [], []>} : vector<8x24xbf16>, vector<24x32xbf16>, vector<8x32xf32> -> vector<8x32xf32>
    %c1_32 = arith.constant 1 : index
    %c0_33 = arith.constant 0 : index
    %c0_34 = arith.constant 0 : index
    %38 = vector.load %arg3[%c1_32, %c0_33, %c0_34] : memref<3x8x16xbf16, #tpu.memory_space<vmem>>, vector<1x8x16xbf16>
    %39 = vector.shape_cast %38 : vector<1x8x16xbf16> to vector<8x16xbf16>
    %cst_35 = arith.constant dense<0.000000e+00> : vector<8x24xf32>
    %40 = tpu.matmul %39, %30, %cst_35 {dimension_numbers = #tpu.dot_dimension_numbers<[1], [0], [0], [1], [0, 0, 1, 1], [], []>} : vector<8x16xbf16>, vector<16x24xbf16>, vector<8x24xf32> -> vector<8x24xf32>
    %41 = arith.truncf %40 : vector<8x24xf32> to vector<8x24xbf16>
    %c1_36 = arith.constant 1 : index
    %c0_37 = arith.constant 0 : index
    %c0_38 = arith.constant 0 : index
    %42 = vector.load %arg10[%c1_36, %c0_37, %c0_38] : memref<3x24x32xbf16, #tpu.memory_space<vmem>>, vector<1x24x32xbf16>
    %43 = vector.shape_cast %42 : vector<1x24x32xbf16> to vector<24x32xbf16>
    %cst_39 = arith.constant dense<0.000000e+00> : vector<8x32xf32>
    %44 = tpu.matmul %41, %43, %cst_39 {dimension_numbers = #tpu.dot_dimension_numbers<[1], [0], [0], [1], [0, 0, 1, 1], [], []>} : vector<8x24xbf16>, vector<24x32xbf16>, vector<8x32xf32> -> vector<8x32xf32>
    %45 = arith.addf %37, %44 : vector<8x32xf32>
    %c0_40 = arith.constant 0 : index
    %c0_41 = arith.constant 0 : index
    %46 = vector.load %arg12[%c0_40, %c0_41] : memref<24x32xbf16, #tpu.memory_space<vmem>>, vector<24x32xbf16>
    %cst_42 = arith.constant dense<0.000000e+00> : vector<8x32xf32>
    %47 = tpu.matmul %41, %46, %cst_42 {dimension_numbers = #tpu.dot_dimension_numbers<[1], [0], [0], [1], [0, 0, 1, 1], [], []>} : vector<8x24xbf16>, vector<24x32xbf16>, vector<8x32xf32> -> vector<8x32xf32>
    %c0_43 = arith.constant 0 : index
    %c0_44 = arith.constant 0 : index
    %48 = vector.load %arg13[%c0_43, %c0_44] : memref<1x32xf32, #tpu.memory_space<vmem>>, vector<1x32xf32>
    %49 = vector.broadcast %48 : vector<1x32xf32> to vector<8x32xf32>
    %50 = arith.addf %47, %49 : vector<8x32xf32>
    %c2_45 = arith.constant 2 : index
    %c0_46 = arith.constant 0 : index
    %c0_47 = arith.constant 0 : index
    %51 = vector.load %arg3[%c2_45, %c0_46, %c0_47] : memref<3x8x16xbf16, #tpu.memory_space<vmem>>, vector<1x8x16xbf16>
    %52 = vector.shape_cast %51 : vector<1x8x16xbf16> to vector<8x16xbf16>
    %cst_48 = arith.constant dense<0.000000e+00> : vector<8x24xf32>
    %53 = tpu.matmul %52, %30, %cst_48 {dimension_numbers = #tpu.dot_dimension_numbers<[1], [0], [0], [1], [0, 0, 1, 1], [], []>} : vector<8x16xbf16>, vector<16x24xbf16>, vector<8x24xf32> -> vector<8x24xf32>
    %54 = arith.truncf %53 : vector<8x24xf32> to vector<8x24xbf16>
    %c2_49 = arith.constant 2 : index
    %c0_50 = arith.constant 0 : index
    %c0_51 = arith.constant 0 : index
    %55 = vector.load %arg10[%c2_49, %c0_50, %c0_51] : memref<3x24x32xbf16, #tpu.memory_space<vmem>>, vector<1x24x32xbf16>
    %56 = vector.shape_cast %55 : vector<1x24x32xbf16> to vector<24x32xbf16>
    %cst_52 = arith.constant dense<0.000000e+00> : vector<8x32xf32>
    %57 = tpu.matmul %54, %56, %cst_52 {dimension_numbers = #tpu.dot_dimension_numbers<[1], [0], [0], [1], [0, 0, 1, 1], [], []>} : vector<8x24xbf16>, vector<24x32xbf16>, vector<8x32xf32> -> vector<8x32xf32>
    %58 = arith.addf %45, %57 : vector<8x32xf32>
    %c0_53 = arith.constant 0 : index
    %c0_54 = arith.constant 0 : index
    %59 = vector.load %arg11[%c0_53, %c0_54] : memref<1x32xf32, #tpu.memory_space<vmem>>, vector<1x32xf32>
    %60 = vector.broadcast %59 : vector<1x32xf32> to vector<8x32xf32>
    %61 = arith.addf %58, %60 : vector<8x32xf32>
    %cst_55 = arith.constant 0.000000e+00 : f32
    %62 = vector.broadcast %cst_55 : f32 to vector<8x32xf32>
    %63 = arith.maximumf %61, %62 : vector<8x32xf32>
    %64 = arith.truncf %63 : vector<8x32xf32> to vector<8x32xbf16>
    %c1_56 = arith.constant 1 : index
    %c0_57 = arith.constant 0 : index
    %c0_58 = arith.constant 0 : index
    %65 = vector.load %arg14[%c1_56, %c0_57, %c0_58] : memref<3x32x32xbf16, #tpu.memory_space<vmem>>, vector<1x32x32xbf16>
    %66 = vector.shape_cast %65 : vector<1x32x32xbf16> to vector<32x32xbf16>
    %cst_59 = arith.constant dense<0.000000e+00> : vector<8x32xf32>
    %67 = tpu.matmul %64, %66, %cst_59 {dimension_numbers = #tpu.dot_dimension_numbers<[1], [0], [0], [1], [0, 0, 1, 1], [], []>} : vector<8x32xbf16>, vector<32x32xbf16>, vector<8x32xf32> -> vector<8x32xf32>
    %c0_60 = arith.constant 0 : index
    %c0_61 = arith.constant 0 : index
    %c0_62 = arith.constant 0 : index
    %68 = vector.load %arg4[%c0_60, %c0_61, %c0_62] : memref<2x8x8xbf16, #tpu.memory_space<vmem>>, vector<1x8x8xbf16>
    %69 = vector.shape_cast %68 : vector<1x8x8xbf16> to vector<8x8xbf16>
    %cst_63 = arith.constant dense<0.000000e+00> : vector<8x32xf32>
    %70 = tpu.matmul %69, %64, %cst_63 {dimension_numbers = #tpu.dot_dimension_numbers<[1], [0], [0], [1], [0, 0, 1, 1], [], []>} : vector<8x8xbf16>, vector<8x32xbf16>, vector<8x32xf32> -> vector<8x32xf32>
    %71 = arith.truncf %70 : vector<8x32xf32> to vector<8x32xbf16>
    %c0_64 = arith.constant 0 : index
    %c0_65 = arith.constant 0 : index
    %c0_66 = arith.constant 0 : index
    %72 = vector.load %arg14[%c0_64, %c0_65, %c0_66] : memref<3x32x32xbf16, #tpu.memory_space<vmem>>, vector<1x32x32xbf16>
    %73 = vector.shape_cast %72 : vector<1x32x32xbf16> to vector<32x32xbf16>
    %cst_67 = arith.constant dense<0.000000e+00> : vector<8x32xf32>
    %74 = tpu.matmul %71, %73, %cst_67 {dimension_numbers = #tpu.dot_dimension_numbers<[1], [0], [0], [1], [0, 0, 1, 1], [], []>} : vector<8x32xbf16>, vector<32x32xbf16>, vector<8x32xf32> -> vector<8x32xf32>
    %75 = arith.addf %67, %74 : vector<8x32xf32>
    %c1_68 = arith.constant 1 : index
    %c0_69 = arith.constant 0 : index
    %c0_70 = arith.constant 0 : index
    %76 = vector.load %arg4[%c1_68, %c0_69, %c0_70] : memref<2x8x8xbf16, #tpu.memory_space<vmem>>, vector<1x8x8xbf16>
    %77 = vector.shape_cast %76 : vector<1x8x8xbf16> to vector<8x8xbf16>
    %cst_71 = arith.constant dense<0.000000e+00> : vector<8x32xf32>
    %78 = tpu.matmul %77, %64, %cst_71 {dimension_numbers = #tpu.dot_dimension_numbers<[1], [0], [0], [1], [0, 0, 1, 1], [], []>} : vector<8x8xbf16>, vector<8x32xbf16>, vector<8x32xf32> -> vector<8x32xf32>
    %79 = arith.truncf %78 : vector<8x32xf32> to vector<8x32xbf16>
    %c2_72 = arith.constant 2 : index
    %c0_73 = arith.constant 0 : index
    %c0_74 = arith.constant 0 : index
    %80 = vector.load %arg14[%c2_72, %c0_73, %c0_74] : memref<3x32x32xbf16, #tpu.memory_space<vmem>>, vector<1x32x32xbf16>
    %81 = vector.shape_cast %80 : vector<1x32x32xbf16> to vector<32x32xbf16>
    %cst_75 = arith.constant dense<0.000000e+00> : vector<8x32xf32>
    %82 = tpu.matmul %79, %81, %cst_75 {dimension_numbers = #tpu.dot_dimension_numbers<[1], [0], [0], [1], [0, 0, 1, 1], [], []>} : vector<8x32xbf16>, vector<32x32xbf16>, vector<8x32xf32> -> vector<8x32xf32>
    %83 = arith.addf %75, %82 : vector<8x32xf32>
    %c0_76 = arith.constant 0 : index
    %c0_77 = arith.constant 0 : index
    %84 = vector.load %arg15[%c0_76, %c0_77] : memref<1x32xf32, #tpu.memory_space<vmem>>, vector<1x32xf32>
    %85 = vector.broadcast %84 : vector<1x32xf32> to vector<8x32xf32>
    %86 = arith.addf %83, %85 : vector<8x32xf32>
    %87 = arith.addf %86, %50 : vector<8x32xf32>
    %cst_78 = arith.constant 0.000000e+00 : f32
    %88 = vector.broadcast %cst_78 : f32 to vector<8x32xf32>
    %89 = arith.maximumf %87, %88 : vector<8x32xf32>
    %90 = arith.truncf %89 : vector<8x32xf32> to vector<8x32xbf16>
    %c0_79 = arith.constant 0 : index
    %c0_80 = arith.constant 0 : index
    %c0_81 = arith.constant 0 : index
    %91 = vector.load %arg5[%c0_79, %c0_80, %c0_81] : memref<3x4x8xbf16, #tpu.memory_space<vmem>>, vector<1x4x8xbf16>
    %92 = vector.shape_cast %91 : vector<1x4x8xbf16> to vector<4x8xbf16>
    %cst_82 = arith.constant dense<0.000000e+00> : vector<4x32xf32>
    %93 = tpu.matmul %92, %90, %cst_82 {dimension_numbers = #tpu.dot_dimension_numbers<[1], [0], [0], [1], [0, 0, 1, 1], [], []>} : vector<4x8xbf16>, vector<8x32xbf16>, vector<4x32xf32> -> vector<4x32xf32>
    %94 = arith.truncf %93 : vector<4x32xf32> to vector<4x32xbf16>
    %c0_83 = arith.constant 0 : index
    %c0_84 = arith.constant 0 : index
    %c0_85 = arith.constant 0 : index
    %95 = vector.load %arg16[%c0_83, %c0_84, %c0_85] : memref<3x32x48xbf16, #tpu.memory_space<vmem>>, vector<1x32x48xbf16>
    %96 = vector.shape_cast %95 : vector<1x32x48xbf16> to vector<32x48xbf16>
    %cst_86 = arith.constant dense<0.000000e+00> : vector<4x48xf32>
    %97 = tpu.matmul %94, %96, %cst_86 {dimension_numbers = #tpu.dot_dimension_numbers<[1], [0], [0], [1], [0, 0, 1, 1], [], []>} : vector<4x32xbf16>, vector<32x48xbf16>, vector<4x48xf32> -> vector<4x48xf32>
    %c1_87 = arith.constant 1 : index
    %c0_88 = arith.constant 0 : index
    %c0_89 = arith.constant 0 : index
    %98 = vector.load %arg5[%c1_87, %c0_88, %c0_89] : memref<3x4x8xbf16, #tpu.memory_space<vmem>>, vector<1x4x8xbf16>
    %99 = vector.shape_cast %98 : vector<1x4x8xbf16> to vector<4x8xbf16>
    %cst_90 = arith.constant dense<0.000000e+00> : vector<4x32xf32>
    %100 = tpu.matmul %99, %90, %cst_90 {dimension_numbers = #tpu.dot_dimension_numbers<[1], [0], [0], [1], [0, 0, 1, 1], [], []>} : vector<4x8xbf16>, vector<8x32xbf16>, vector<4x32xf32> -> vector<4x32xf32>
    %101 = arith.truncf %100 : vector<4x32xf32> to vector<4x32xbf16>
    %c1_91 = arith.constant 1 : index
    %c0_92 = arith.constant 0 : index
    %c0_93 = arith.constant 0 : index
    %102 = vector.load %arg16[%c1_91, %c0_92, %c0_93] : memref<3x32x48xbf16, #tpu.memory_space<vmem>>, vector<1x32x48xbf16>
    %103 = vector.shape_cast %102 : vector<1x32x48xbf16> to vector<32x48xbf16>
    %cst_94 = arith.constant dense<0.000000e+00> : vector<4x48xf32>
    %104 = tpu.matmul %101, %103, %cst_94 {dimension_numbers = #tpu.dot_dimension_numbers<[1], [0], [0], [1], [0, 0, 1, 1], [], []>} : vector<4x32xbf16>, vector<32x48xbf16>, vector<4x48xf32> -> vector<4x48xf32>
    %105 = arith.addf %97, %104 : vector<4x48xf32>
    %c0_95 = arith.constant 0 : index
    %c0_96 = arith.constant 0 : index
    %106 = vector.load %arg18[%c0_95, %c0_96] : memref<32x48xbf16, #tpu.memory_space<vmem>>, vector<32x48xbf16>
    %cst_97 = arith.constant dense<0.000000e+00> : vector<4x48xf32>
    %107 = tpu.matmul %101, %106, %cst_97 {dimension_numbers = #tpu.dot_dimension_numbers<[1], [0], [0], [1], [0, 0, 1, 1], [], []>} : vector<4x32xbf16>, vector<32x48xbf16>, vector<4x48xf32> -> vector<4x48xf32>
    %c0_98 = arith.constant 0 : index
    %c0_99 = arith.constant 0 : index
    %108 = vector.load %arg19[%c0_98, %c0_99] : memref<1x48xf32, #tpu.memory_space<vmem>>, vector<1x48xf32>
    %109 = vector.broadcast %108 : vector<1x48xf32> to vector<4x48xf32>
    %110 = arith.addf %107, %109 : vector<4x48xf32>
    %c2_100 = arith.constant 2 : index
    %c0_101 = arith.constant 0 : index
    %c0_102 = arith.constant 0 : index
    %111 = vector.load %arg5[%c2_100, %c0_101, %c0_102] : memref<3x4x8xbf16, #tpu.memory_space<vmem>>, vector<1x4x8xbf16>
    %112 = vector.shape_cast %111 : vector<1x4x8xbf16> to vector<4x8xbf16>
    %cst_103 = arith.constant dense<0.000000e+00> : vector<4x32xf32>
    %113 = tpu.matmul %112, %90, %cst_103 {dimension_numbers = #tpu.dot_dimension_numbers<[1], [0], [0], [1], [0, 0, 1, 1], [], []>} : vector<4x8xbf16>, vector<8x32xbf16>, vector<4x32xf32> -> vector<4x32xf32>
    %114 = arith.truncf %113 : vector<4x32xf32> to vector<4x32xbf16>
    %c2_104 = arith.constant 2 : index
    %c0_105 = arith.constant 0 : index
    %c0_106 = arith.constant 0 : index
    %115 = vector.load %arg16[%c2_104, %c0_105, %c0_106] : memref<3x32x48xbf16, #tpu.memory_space<vmem>>, vector<1x32x48xbf16>
    %116 = vector.shape_cast %115 : vector<1x32x48xbf16> to vector<32x48xbf16>
    %cst_107 = arith.constant dense<0.000000e+00> : vector<4x48xf32>
    %117 = tpu.matmul %114, %116, %cst_107 {dimension_numbers = #tpu.dot_dimension_numbers<[1], [0], [0], [1], [0, 0, 1, 1], [], []>} : vector<4x32xbf16>, vector<32x48xbf16>, vector<4x48xf32> -> vector<4x48xf32>
    %118 = arith.addf %105, %117 : vector<4x48xf32>
    %c0_108 = arith.constant 0 : index
    %c0_109 = arith.constant 0 : index
    %119 = vector.load %arg17[%c0_108, %c0_109] : memref<1x48xf32, #tpu.memory_space<vmem>>, vector<1x48xf32>
    %120 = vector.broadcast %119 : vector<1x48xf32> to vector<4x48xf32>
    %121 = arith.addf %118, %120 : vector<4x48xf32>
    %cst_110 = arith.constant 0.000000e+00 : f32
    %122 = vector.broadcast %cst_110 : f32 to vector<4x48xf32>
    %123 = arith.maximumf %121, %122 : vector<4x48xf32>
    %124 = arith.truncf %123 : vector<4x48xf32> to vector<4x48xbf16>
    %c1_111 = arith.constant 1 : index
    %c0_112 = arith.constant 0 : index
    %c0_113 = arith.constant 0 : index
    %125 = vector.load %arg20[%c1_111, %c0_112, %c0_113] : memref<3x48x48xbf16, #tpu.memory_space<vmem>>, vector<1x48x48xbf16>
    %126 = vector.shape_cast %125 : vector<1x48x48xbf16> to vector<48x48xbf16>
    %cst_114 = arith.constant dense<0.000000e+00> : vector<4x48xf32>
    %127 = tpu.matmul %124, %126, %cst_114 {dimension_numbers = #tpu.dot_dimension_numbers<[1], [0], [0], [1], [0, 0, 1, 1], [], []>} : vector<4x48xbf16>, vector<48x48xbf16>, vector<4x48xf32> -> vector<4x48xf32>
    %c0_115 = arith.constant 0 : index
    %c0_116 = arith.constant 0 : index
    %c0_117 = arith.constant 0 : index
    %128 = vector.load %arg6[%c0_115, %c0_116, %c0_117] : memref<2x4x4xbf16, #tpu.memory_space<vmem>>, vector<1x4x4xbf16>
    %129 = vector.shape_cast %128 : vector<1x4x4xbf16> to vector<4x4xbf16>
    %cst_118 = arith.constant dense<0.000000e+00> : vector<4x48xf32>
    %130 = tpu.matmul %129, %124, %cst_118 {dimension_numbers = #tpu.dot_dimension_numbers<[1], [0], [0], [1], [0, 0, 1, 1], [], []>} : vector<4x4xbf16>, vector<4x48xbf16>, vector<4x48xf32> -> vector<4x48xf32>
    %131 = arith.truncf %130 : vector<4x48xf32> to vector<4x48xbf16>
    %c0_119 = arith.constant 0 : index
    %c0_120 = arith.constant 0 : index
    %c0_121 = arith.constant 0 : index
    %132 = vector.load %arg20[%c0_119, %c0_120, %c0_121] : memref<3x48x48xbf16, #tpu.memory_space<vmem>>, vector<1x48x48xbf16>
    %133 = vector.shape_cast %132 : vector<1x48x48xbf16> to vector<48x48xbf16>
    %cst_122 = arith.constant dense<0.000000e+00> : vector<4x48xf32>
    %134 = tpu.matmul %131, %133, %cst_122 {dimension_numbers = #tpu.dot_dimension_numbers<[1], [0], [0], [1], [0, 0, 1, 1], [], []>} : vector<4x48xbf16>, vector<48x48xbf16>, vector<4x48xf32> -> vector<4x48xf32>
    %135 = arith.addf %127, %134 : vector<4x48xf32>
    %c1_123 = arith.constant 1 : index
    %c0_124 = arith.constant 0 : index
    %c0_125 = arith.constant 0 : index
    %136 = vector.load %arg6[%c1_123, %c0_124, %c0_125] : memref<2x4x4xbf16, #tpu.memory_space<vmem>>, vector<1x4x4xbf16>
    %137 = vector.shape_cast %136 : vector<1x4x4xbf16> to vector<4x4xbf16>
    %cst_126 = arith.constant dense<0.000000e+00> : vector<4x48xf32>
    %138 = tpu.matmul %137, %124, %cst_126 {dimension_numbers = #tpu.dot_dimension_numbers<[1], [0], [0], [1], [0, 0, 1, 1], [], []>} : vector<4x4xbf16>, vector<4x48xbf16>, vector<4x48xf32> -> vector<4x48xf32>
    %139 = arith.truncf %138 : vector<4x48xf32> to vector<4x48xbf16>
    %c2_127 = arith.constant 2 : index
    %c0_128 = arith.constant 0 : index
    %c0_129 = arith.constant 0 : index
    %140 = vector.load %arg20[%c2_127, %c0_128, %c0_129] : memref<3x48x48xbf16, #tpu.memory_space<vmem>>, vector<1x48x48xbf16>
    %141 = vector.shape_cast %140 : vector<1x48x48xbf16> to vector<48x48xbf16>
    %cst_130 = arith.constant dense<0.000000e+00> : vector<4x48xf32>
    %142 = tpu.matmul %139, %141, %cst_130 {dimension_numbers = #tpu.dot_dimension_numbers<[1], [0], [0], [1], [0, 0, 1, 1], [], []>} : vector<4x48xbf16>, vector<48x48xbf16>, vector<4x48xf32> -> vector<4x48xf32>
    %143 = arith.addf %135, %142 : vector<4x48xf32>
    %c0_131 = arith.constant 0 : index
    %c0_132 = arith.constant 0 : index
    %144 = vector.load %arg21[%c0_131, %c0_132] : memref<1x48xf32, #tpu.memory_space<vmem>>, vector<1x48xf32>
    %145 = vector.broadcast %144 : vector<1x48xf32> to vector<4x48xf32>
    %146 = arith.addf %143, %145 : vector<4x48xf32>
    %147 = arith.addf %146, %110 : vector<4x48xf32>
    %cst_133 = arith.constant 0.000000e+00 : f32
    %148 = vector.broadcast %cst_133 : f32 to vector<4x48xf32>
    %149 = arith.maximumf %147, %148 : vector<4x48xf32>
    %150 = arith.truncf %149 : vector<4x48xf32> to vector<4x48xbf16>
    %c0_134 = arith.constant 0 : index
    %c0_135 = arith.constant 0 : index
    %151 = vector.load %arg7[%c0_134, %c0_135] : memref<2x4xbf16, #tpu.memory_space<vmem>>, vector<2x4xbf16>
    %cst_136 = arith.constant dense<0.000000e+00> : vector<2x48xf32>
    %152 = tpu.matmul %151, %150, %cst_136 {dimension_numbers = #tpu.dot_dimension_numbers<[1], [0], [0], [1], [0, 0, 1, 1], [], []>} : vector<2x4xbf16>, vector<4x48xbf16>, vector<2x48xf32> -> vector<2x48xf32>
    %153 = arith.truncf %152 : vector<2x48xf32> to vector<2x48xbf16>
    %c0_137 = arith.constant 0 : index
    %c0_138 = arith.constant 0 : index
    %154 = vector.load %arg22[%c0_137, %c0_138] : memref<48x64xbf16, #tpu.memory_space<vmem>>, vector<48x64xbf16>
    %cst_139 = arith.constant dense<0.000000e+00> : vector<2x64xf32>
    %155 = tpu.matmul %153, %154, %cst_139 {dimension_numbers = #tpu.dot_dimension_numbers<[1], [0], [0], [1], [0, 0, 1, 1], [], []>} : vector<2x48xbf16>, vector<48x64xbf16>, vector<2x64xf32> -> vector<2x64xf32>
    %c0_140 = arith.constant 0 : index
    %c0_141 = arith.constant 0 : index
    %156 = vector.load %arg23[%c0_140, %c0_141] : memref<1x64xf32, #tpu.memory_space<vmem>>, vector<1x64xf32>
    %157 = vector.broadcast %156 : vector<1x64xf32> to vector<2x64xf32>
    %158 = arith.addf %155, %157 : vector<2x64xf32>
    %cst_142 = arith.constant 0.000000e+00 : f32
    %159 = vector.broadcast %cst_142 : f32 to vector<2x64xf32>
    %160 = arith.maximumf %158, %159 : vector<2x64xf32>
    %161 = arith.truncf %160 : vector<2x64xf32> to vector<2x64xbf16>
    %c0_143 = arith.constant 0 : index
    %c0_144 = arith.constant 0 : index
    %162 = vector.load %arg24[%c0_143, %c0_144] : memref<64x32xbf16, #tpu.memory_space<vmem>>, vector<64x32xbf16>
    %cst_145 = arith.constant dense<0.000000e+00> : vector<2x32xf32>
    %163 = tpu.matmul %161, %162, %cst_145 {dimension_numbers = #tpu.dot_dimension_numbers<[1], [0], [0], [1], [0, 0, 1, 1], [], []>} : vector<2x64xbf16>, vector<64x32xbf16>, vector<2x32xf32> -> vector<2x32xf32>
    %c0_146 = arith.constant 0 : index
    %c0_147 = arith.constant 0 : index
    %164 = vector.load %arg25[%c0_146, %c0_147] : memref<1x32xf32, #tpu.memory_space<vmem>>, vector<1x32xf32>
    %165 = vector.broadcast %164 : vector<1x32xf32> to vector<2x32xf32>
    %166 = arith.addf %163, %165 : vector<2x32xf32>
    %c0_148 = arith.constant 0 : index
    %c0_149 = arith.constant 0 : index
    %167 = vector.load %arg26[%c0_148, %c0_149] : memref<1x64xf32, #tpu.memory_space<vmem>>, vector<1x64xf32>
    %168 = vector.broadcast %4 : vector<2x1xf32> to vector<2x64xf32>
    %169 = vector.broadcast %167 : vector<1x64xf32> to vector<2x64xf32>
    %170 = arith.mulf %168, %169 : vector<2x64xf32>
    %c0_150 = arith.constant 0 : index
    %c0_151 = arith.constant 0 : index
    %171 = vector.load %arg27[%c0_150, %c0_151] : memref<32x64xf32, #tpu.memory_space<vmem>>, vector<32x64xf32>
    %cst_152 = arith.constant dense<0.000000e+00> : vector<2x64xf32>
    %172 = tpu.matmul %166, %171, %cst_152 {dimension_numbers = #tpu.dot_dimension_numbers<[1], [0], [0], [1], [0, 0, 1, 1], [], []>} : vector<2x32xf32>, vector<32x64xf32>, vector<2x64xf32> -> vector<2x64xf32>
    %173 = arith.addf %170, %172 : vector<2x64xf32>
    %c0_153 = arith.constant 0 : index
    %c0_154 = arith.constant 0 : index
    %174 = vector.load %arg28[%c0_153, %c0_154] : memref<1x64xf32, #tpu.memory_space<vmem>>, vector<1x64xf32>
    %175 = vector.broadcast %174 : vector<1x64xf32> to vector<2x64xf32>
    %176 = arith.addf %173, %175 : vector<2x64xf32>
    %177 = math.sin %176 : vector<2x64xf32>
    %c0_155 = arith.constant 0 : index
    %c0_156 = arith.constant 0 : index
    %178 = vector.load %arg29[%c0_155, %c0_156] : memref<64x64xf32, #tpu.memory_space<vmem>>, vector<64x64xf32>
    %cst_157 = arith.constant dense<0.000000e+00> : vector<2x64xf32>
    %179 = tpu.matmul %177, %178, %cst_157 {dimension_numbers = #tpu.dot_dimension_numbers<[1], [0], [0], [1], [0, 0, 1, 1], [], []>} : vector<2x64xf32>, vector<64x64xf32>, vector<2x64xf32> -> vector<2x64xf32>
    %c0_158 = arith.constant 0 : index
    %c0_159 = arith.constant 0 : index
    %180 = vector.load %arg30[%c0_158, %c0_159] : memref<1x64xf32, #tpu.memory_space<vmem>>, vector<1x64xf32>
    %181 = vector.broadcast %180 : vector<1x64xf32> to vector<2x64xf32>
    %182 = arith.addf %179, %181 : vector<2x64xf32>
    %183 = math.sin %182 : vector<2x64xf32>
    %c0_160 = arith.constant 0 : index
    %c0_161 = arith.constant 0 : index
    %184 = vector.load %arg31[%c0_160, %c0_161] : memref<64x1xf32, #tpu.memory_space<vmem>>, vector<64x1xf32>
    %cst_162 = arith.constant dense<0.000000e+00> : vector<2x1xf32>
    %185 = tpu.matmul %183, %184, %cst_162 {dimension_numbers = #tpu.dot_dimension_numbers<[1], [0], [0], [1], [0, 0, 1, 1], [], []>} : vector<2x64xf32>, vector<64x1xf32>, vector<2x1xf32> -> vector<2x1xf32>
    %c0_163 = arith.constant 0 : index
    %c0_164 = arith.constant 0 : index
    %186 = vector.load %arg32[%c0_163, %c0_164] : memref<1x1xf32, #tpu.memory_space<vmem>>, vector<1x1xf32>
    %187 = vector.broadcast %186 : vector<1x1xf32> to vector<2x1xf32>
    %188 = arith.addf %185, %187 : vector<2x1xf32>
    %c0_165 = arith.constant 0 : index
    %c0_166 = arith.constant 0 : index
    %189 = vector.load %arg33[%c0_165, %c0_166] : memref<2x1xf32, #tpu.memory_space<vmem>>, vector<2x1xf32>
    tpu.vector_store %arg33[%c0_165, %c0_166], %4 {strides = array<i32>} : memref<2x1xf32, #tpu.memory_space<vmem>>, vector<2x1xf32>,
    %190 = arith.divf %4, %3 : vector<2x1xf32>
    %191 = arith.subf %190, %188 : vector<2x1xf32>
    %c0_167 = arith.constant 0 : index
    %c0_168 = arith.constant 0 : index
    %192 = vector.load %arg34[%c0_167, %c0_168] : memref<2x1xf32, #tpu.memory_space<vmem>>, vector<2x1xf32>
    tpu.vector_store %arg34[%c0_167, %c0_168], %191 {strides = array<i32>} : memref<2x1xf32, #tpu.memory_space<vmem>>, vector<2x1xf32>,
    return
  }
}

module attributes {stable_mosaic.version = 11 : i64} {
  func.func @solution_u_kernel(%arg0: i32, %arg1: memref<8x6xf32, #tpu.memory_space<vmem>>, %arg2: memref<6x16xf32, #tpu.memory_space<vmem>>, %arg3: memref<6x64xf32, #tpu.memory_space<vmem>>, %arg4: memref<1x64xf32, #tpu.memory_space<vmem>>, %arg5: memref<64x64xf32, #tpu.memory_space<vmem>>, %arg6: memref<1x64xf32, #tpu.memory_space<vmem>>, %arg7: memref<64x32xf32, #tpu.memory_space<vmem>>, %arg8: memref<1x32xf32, #tpu.memory_space<vmem>>, %arg9: memref<32x32xf32, #tpu.memory_space<vmem>>, %arg10: memref<1x32xf32, #tpu.memory_space<vmem>>, %arg11: memref<32x1xf32, #tpu.memory_space<vmem>>, %arg12: memref<1x1xf32, #tpu.memory_space<vmem>>, %arg13: memref<64x16xf32, #tpu.memory_space<vmem>>, %arg14: memref<64x64xf32, #tpu.memory_space<vmem>>, %arg15: memref<32x64xf32, #tpu.memory_space<vmem>>, %arg16: memref<32x32xf32, #tpu.memory_space<vmem>>, %arg17: memref<1x32xf32, #tpu.memory_space<vmem>>, %arg18: memref<8x16xf32, #tpu.memory_space<vmem>>) attributes {dimension_semantics = [#tpu.dimension_semantics<parallel>], iteration_bounds = array<i64: 2>, scalar_prefetch = 0 : i64, scratch_operands = 0 : i64, tpu.core_type = #tpu.core_type<tc>, window_params = [{transform_indices = @transform_0, window_bounds = array<i64: 8, 6>}, {pipeline_mode = #tpu.pipeline_mode<synchronous>, transform_indices = @transform_1, window_bounds = array<i64: 6, 16>}, {pipeline_mode = #tpu.pipeline_mode<synchronous>, transform_indices = @transform_2, window_bounds = array<i64: 6, 64>}, {pipeline_mode = #tpu.pipeline_mode<synchronous>, transform_indices = @transform_3, window_bounds = array<i64: 1, 64>}, {pipeline_mode = #tpu.pipeline_mode<synchronous>, transform_indices = @transform_4, window_bounds = array<i64: 64, 64>}, {pipeline_mode = #tpu.pipeline_mode<synchronous>, transform_indices = @transform_5, window_bounds = array<i64: 1, 64>}, {pipeline_mode = #tpu.pipeline_mode<synchronous>, transform_indices = @transform_6, window_bounds = array<i64: 64, 32>}, {pipeline_mode = #tpu.pipeline_mode<synchronous>, transform_indices = @transform_7, window_bounds = array<i64: 1, 32>}, {pipeline_mode = #tpu.pipeline_mode<synchronous>, transform_indices = @transform_8, window_bounds = array<i64: 32, 32>}, {pipeline_mode = #tpu.pipeline_mode<synchronous>, transform_indices = @transform_9, window_bounds = array<i64: 1, 32>}, {pipeline_mode = #tpu.pipeline_mode<synchronous>, transform_indices = @transform_10, window_bounds = array<i64: 32, 1>}, {pipeline_mode = #tpu.pipeline_mode<synchronous>, transform_indices = @transform_11, window_bounds = array<i64: 1, 1>}, {pipeline_mode = #tpu.pipeline_mode<synchronous>, transform_indices = @transform_12, window_bounds = array<i64: 64, 16>}, {pipeline_mode = #tpu.pipeline_mode<synchronous>, transform_indices = @transform_13, window_bounds = array<i64: 64, 64>}, {pipeline_mode = #tpu.pipeline_mode<synchronous>, transform_indices = @transform_14, window_bounds = array<i64: 32, 64>}, {pipeline_mode = #tpu.pipeline_mode<synchronous>, transform_indices = @transform_15, window_bounds = array<i64: 32, 32>}, {pipeline_mode = #tpu.pipeline_mode<synchronous>, transform_indices = @transform_16, window_bounds = array<i64: 1, 32>}, {transform_indices = @transform_17, window_bounds = array<i64: 8, 16>}]} {
    %c0 = arith.constant 0 : index
    %c0_0 = arith.constant 0 : index
    %0 = vector.load %arg1[%c0, %c0_0] : memref<8x6xf32, #tpu.memory_space<vmem>>, vector<8x6xf32>
    %c0_1 = arith.constant 0 : index
    %c0_2 = arith.constant 0 : index
    %1 = vector.load %arg3[%c0_1, %c0_2] : memref<6x64xf32, #tpu.memory_space<vmem>>, vector<6x64xf32>
    %cst = arith.constant dense<0.000000e+00> : vector<8x64xf32>
    %2 = tpu.matmul %0, %1, %cst {dimension_numbers = #tpu.dot_dimension_numbers<[1], [0], [0], [1], [0, 0, 1, 1], [], []>} : vector<8x6xf32>, vector<6x64xf32>, vector<8x64xf32> -> vector<8x64xf32>
    %c0_3 = arith.constant 0 : index
    %c0_4 = arith.constant 0 : index
    %3 = vector.load %arg4[%c0_3, %c0_4] : memref<1x64xf32, #tpu.memory_space<vmem>>, vector<1x64xf32>
    %4 = vector.broadcast %3 : vector<1x64xf32> to vector<8x64xf32>
    %5 = arith.addf %2, %4 : vector<8x64xf32>
    %6 = math.sin %5 : vector<8x64xf32>
    %c0_5 = arith.constant 0 : index
    %c0_6 = arith.constant 0 : index
    %7 = vector.load %arg5[%c0_5, %c0_6] : memref<64x64xf32, #tpu.memory_space<vmem>>, vector<64x64xf32>
    %cst_7 = arith.constant dense<0.000000e+00> : vector<8x64xf32>
    %8 = tpu.matmul %6, %7, %cst_7 {dimension_numbers = #tpu.dot_dimension_numbers<[1], [0], [0], [1], [0, 0, 1, 1], [], []>} : vector<8x64xf32>, vector<64x64xf32>, vector<8x64xf32> -> vector<8x64xf32>
    %c0_8 = arith.constant 0 : index
    %c0_9 = arith.constant 0 : index
    %9 = vector.load %arg6[%c0_8, %c0_9] : memref<1x64xf32, #tpu.memory_space<vmem>>, vector<1x64xf32>
    %10 = vector.broadcast %9 : vector<1x64xf32> to vector<8x64xf32>
    %11 = arith.addf %8, %10 : vector<8x64xf32>
    %12 = math.sin %11 : vector<8x64xf32>
    %c0_10 = arith.constant 0 : index
    %c0_11 = arith.constant 0 : index
    %13 = vector.load %arg7[%c0_10, %c0_11] : memref<64x32xf32, #tpu.memory_space<vmem>>, vector<64x32xf32>
    %cst_12 = arith.constant dense<0.000000e+00> : vector<8x32xf32>
    %14 = tpu.matmul %12, %13, %cst_12 {dimension_numbers = #tpu.dot_dimension_numbers<[1], [0], [0], [1], [0, 0, 1, 1], [], []>} : vector<8x64xf32>, vector<64x32xf32>, vector<8x32xf32> -> vector<8x32xf32>
    %c0_13 = arith.constant 0 : index
    %c0_14 = arith.constant 0 : index
    %15 = vector.load %arg8[%c0_13, %c0_14] : memref<1x32xf32, #tpu.memory_space<vmem>>, vector<1x32xf32>
    %16 = vector.broadcast %15 : vector<1x32xf32> to vector<8x32xf32>
    %17 = arith.addf %14, %16 : vector<8x32xf32>
    %c0_15 = arith.constant 0 : index
    %c0_16 = arith.constant 0 : index
    %18 = vector.load %arg9[%c0_15, %c0_16] : memref<32x32xf32, #tpu.memory_space<vmem>>, vector<32x32xf32>
    %cst_17 = arith.constant dense<0.000000e+00> : vector<8x32xf32>
    %19 = tpu.matmul %17, %18, %cst_17 {dimension_numbers = #tpu.dot_dimension_numbers<[1], [0], [0], [1], [0, 0, 1, 1], [], []>} : vector<8x32xf32>, vector<32x32xf32>, vector<8x32xf32> -> vector<8x32xf32>
    %c0_18 = arith.constant 0 : index
    %c0_19 = arith.constant 0 : index
    %20 = vector.load %arg10[%c0_18, %c0_19] : memref<1x32xf32, #tpu.memory_space<vmem>>, vector<1x32xf32>
    %21 = vector.broadcast %20 : vector<1x32xf32> to vector<8x32xf32>
    %22 = arith.addf %19, %21 : vector<8x32xf32>
    %23 = math.sin %22 : vector<8x32xf32>
    %c0_20 = arith.constant 0 : index
    %c0_21 = arith.constant 0 : index
    %24 = vector.load %arg11[%c0_20, %c0_21] : memref<32x1xf32, #tpu.memory_space<vmem>>, vector<32x1xf32>
    %cst_22 = arith.constant dense<0.000000e+00> : vector<8x1xf32>
    %25 = tpu.matmul %23, %24, %cst_22 {dimension_numbers = #tpu.dot_dimension_numbers<[1], [0], [0], [1], [0, 0, 1, 1], [], []>} : vector<8x32xf32>, vector<32x1xf32>, vector<8x1xf32> -> vector<8x1xf32>
    %c0_23 = arith.constant 0 : index
    %c0_24 = arith.constant 0 : index
    %26 = vector.load %arg12[%c0_23, %c0_24] : memref<1x1xf32, #tpu.memory_space<vmem>>, vector<1x1xf32>
    %27 = vector.broadcast %26 : vector<1x1xf32> to vector<8x1xf32>
    %28 = arith.addf %25, %27 : vector<8x1xf32>
    %c0_25 = arith.constant 0 : index
    %c0_26 = arith.constant 0 : index
    %29 = vector.load %arg17[%c0_25, %c0_26] : memref<1x32xf32, #tpu.memory_space<vmem>>, vector<1x32xf32>
    %30 = math.cos %22 : vector<8x32xf32>
    %31 = vector.broadcast %29 : vector<1x32xf32> to vector<8x32xf32>
    %32 = arith.mulf %31, %30 : vector<8x32xf32>
    %c0_27 = arith.constant 0 : index
    %c0_28 = arith.constant 0 : index
    %33 = vector.load %arg16[%c0_27, %c0_28] : memref<32x32xf32, #tpu.memory_space<vmem>>, vector<32x32xf32>
    %cst_29 = arith.constant dense<0.000000e+00> : vector<8x32xf32>
    %34 = tpu.matmul %32, %33, %cst_29 {dimension_numbers = #tpu.dot_dimension_numbers<[1], [0], [0], [1], [0, 0, 1, 1], [], []>} : vector<8x32xf32>, vector<32x32xf32>, vector<8x32xf32> -> vector<8x32xf32>
    %c0_30 = arith.constant 0 : index
    %c0_31 = arith.constant 0 : index
    %35 = vector.load %arg15[%c0_30, %c0_31] : memref<32x64xf32, #tpu.memory_space<vmem>>, vector<32x64xf32>
    %cst_32 = arith.constant dense<0.000000e+00> : vector<8x64xf32>
    %36 = tpu.matmul %34, %35, %cst_32 {dimension_numbers = #tpu.dot_dimension_numbers<[1], [0], [0], [1], [0, 0, 1, 1], [], []>} : vector<8x32xf32>, vector<32x64xf32>, vector<8x64xf32> -> vector<8x64xf32>
    %37 = math.cos %11 : vector<8x64xf32>
    %38 = arith.mulf %36, %37 : vector<8x64xf32>
    %c0_33 = arith.constant 0 : index
    %c0_34 = arith.constant 0 : index
    %39 = vector.load %arg14[%c0_33, %c0_34] : memref<64x64xf32, #tpu.memory_space<vmem>>, vector<64x64xf32>
    %cst_35 = arith.constant dense<0.000000e+00> : vector<8x64xf32>
    %40 = tpu.matmul %38, %39, %cst_35 {dimension_numbers = #tpu.dot_dimension_numbers<[1], [0], [0], [1], [0, 0, 1, 1], [], []>} : vector<8x64xf32>, vector<64x64xf32>, vector<8x64xf32> -> vector<8x64xf32>
    %41 = math.cos %5 : vector<8x64xf32>
    %42 = arith.mulf %40, %41 : vector<8x64xf32>
    %c0_36 = arith.constant 0 : index
    %c0_37 = arith.constant 0 : index
    %43 = vector.load %arg13[%c0_36, %c0_37] : memref<64x16xf32, #tpu.memory_space<vmem>>, vector<64x16xf32>
    %cst_38 = arith.constant dense<0.000000e+00> : vector<8x16xf32>
    %44 = tpu.matmul %42, %43, %cst_38 {dimension_numbers = #tpu.dot_dimension_numbers<[1], [0], [0], [1], [0, 0, 1, 1], [], []>} : vector<8x64xf32>, vector<64x16xf32>, vector<8x16xf32> -> vector<8x16xf32>
    %45 = tpu.iota {dimensions = array<i32: 1>} : vector<1x16xi32>
    %c12_i32 = arith.constant 12 : i32
    %46 = vector.broadcast %c12_i32 : i32 to vector<1x16xi32>
    %47 = arith.cmpi eq, %45, %46 : vector<1x16xi32>
    %48 = arith.extui %47 : vector<1x16xi1> to vector<1x16xi32>
    %49 = arith.sitofp %48 : vector<1x16xi32> to vector<1x16xf32>
    %c0_39 = arith.constant 0 : index
    %c0_40 = arith.constant 0 : index
    %50 = vector.load %arg2[%c0_39, %c0_40] : memref<6x16xf32, #tpu.memory_space<vmem>>, vector<6x16xf32>
    %cst_41 = arith.constant dense<0.000000e+00> : vector<8x16xf32>
    %51 = tpu.matmul %0, %50, %cst_41 {dimension_numbers = #tpu.dot_dimension_numbers<[1], [0], [0], [1], [0, 0, 1, 1], [], []>} : vector<8x6xf32>, vector<6x16xf32>, vector<8x16xf32> -> vector<8x16xf32>
    %52 = arith.addf %51, %44 : vector<8x16xf32>
    %53 = vector.broadcast %28 : vector<8x1xf32> to vector<8x16xf32>
    %54 = vector.broadcast %49 : vector<1x16xf32> to vector<8x16xf32>
    %55 = arith.mulf %53, %54 : vector<8x16xf32>
    %56 = arith.addf %52, %55 : vector<8x16xf32>
    %c0_42 = arith.constant 0 : index
    %c0_43 = arith.constant 0 : index
    %57 = vector.load %arg18[%c0_42, %c0_43] : memref<8x16xf32, #tpu.memory_space<vmem>>, vector<8x16xf32>
    tpu.vector_store %arg18[%c0_42, %c0_43], %56 {strides = array<i32>} : memref<8x16xf32, #tpu.memory_space<vmem>>, vector<8x16xf32>,
    return
  }
  func.func @transform_0(%arg0: i32) -> (i32, i32) {
    %c0_i32 = arith.constant 0 : i32
    %c0_i32_0 = arith.constant 0 : i32
    return %arg0, %c0_i32 : i32, i32
  }
  func.func @transform_1(%arg0: i32) -> (i32, i32) {
    %c0_i32 = arith.constant 0 : i32
    %c0_i32_0 = arith.constant 0 : i32
    %c0_i32_1 = arith.constant 0 : i32
    return %c0_i32, %c0_i32_0 : i32, i32
  }
  func.func @transform_2(%arg0: i32) -> (i32, i32) {
    %c0_i32 = arith.constant 0 : i32
    %c0_i32_0 = arith.constant 0 : i32
    %c0_i32_1 = arith.constant 0 : i32
    return %c0_i32, %c0_i32_0 : i32, i32
  }
  func.func @transform_3(%arg0: i32) -> (i32, i32) {
    %c0_i32 = arith.constant 0 : i32
    %c0_i32_0 = arith.constant 0 : i32
    %c0_i32_1 = arith.constant 0 : i32
    return %c0_i32, %c0_i32_0 : i32, i32
  }
  func.func @transform_4(%arg0: i32) -> (i32, i32) {
    %c0_i32 = arith.constant 0 : i32
    %c0_i32_0 = arith.constant 0 : i32
    %c0_i32_1 = arith.constant 0 : i32
    return %c0_i32, %c0_i32_0 : i32, i32
  }
  func.func @transform_5(%arg0: i32) -> (i32, i32) {
    %c0_i32 = arith.constant 0 : i32
    %c0_i32_0 = arith.constant 0 : i32
    %c0_i32_1 = arith.constant 0 : i32
    return %c0_i32, %c0_i32_0 : i32, i32
  }
  func.func @transform_6(%arg0: i32) -> (i32, i32) {
    %c0_i32 = arith.constant 0 : i32
    %c0_i32_0 = arith.constant 0 : i32
    %c0_i32_1 = arith.constant 0 : i32
    return %c0_i32, %c0_i32_0 : i32, i32
  }
  func.func @transform_7(%arg0: i32) -> (i32, i32) {
    %c0_i32 = arith.constant 0 : i32
    %c0_i32_0 = arith.constant 0 : i32
    %c0_i32_1 = arith.constant 0 : i32
    return %c0_i32, %c0_i32_0 : i32, i32
  }
  func.func @transform_8(%arg0: i32) -> (i32, i32) {
    %c0_i32 = arith.constant 0 : i32
    %c0_i32_0 = arith.constant 0 : i32
    %c0_i32_1 = arith.constant 0 : i32
    return %c0_i32, %c0_i32_0 : i32, i32
  }
  func.func @transform_9(%arg0: i32) -> (i32, i32) {
    %c0_i32 = arith.constant 0 : i32
    %c0_i32_0 = arith.constant 0 : i32
    %c0_i32_1 = arith.constant 0 : i32
    return %c0_i32, %c0_i32_0 : i32, i32
  }
  func.func @transform_10(%arg0: i32) -> (i32, i32) {
    %c0_i32 = arith.constant 0 : i32
    %c0_i32_0 = arith.constant 0 : i32
    %c0_i32_1 = arith.constant 0 : i32
    return %c0_i32, %c0_i32_0 : i32, i32
  }
  func.func @transform_11(%arg0: i32) -> (i32, i32) {
    %c0_i32 = arith.constant 0 : i32
    %c0_i32_0 = arith.constant 0 : i32
    %c0_i32_1 = arith.constant 0 : i32
    return %c0_i32, %c0_i32_0 : i32, i32
  }
  func.func @transform_12(%arg0: i32) -> (i32, i32) {
    %c0_i32 = arith.constant 0 : i32
    %c0_i32_0 = arith.constant 0 : i32
    %c0_i32_1 = arith.constant 0 : i32
    return %c0_i32, %c0_i32_0 : i32, i32
  }
  func.func @transform_13(%arg0: i32) -> (i32, i32) {
    %c0_i32 = arith.constant 0 : i32
    %c0_i32_0 = arith.constant 0 : i32
    %c0_i32_1 = arith.constant 0 : i32
    return %c0_i32, %c0_i32_0 : i32, i32
  }
  func.func @transform_14(%arg0: i32) -> (i32, i32) {
    %c0_i32 = arith.constant 0 : i32
    %c0_i32_0 = arith.constant 0 : i32
    %c0_i32_1 = arith.constant 0 : i32
    return %c0_i32, %c0_i32_0 : i32, i32
  }
  func.func @transform_15(%arg0: i32) -> (i32, i32) {
    %c0_i32 = arith.constant 0 : i32
    %c0_i32_0 = arith.constant 0 : i32
    %c0_i32_1 = arith.constant 0 : i32
    return %c0_i32, %c0_i32_0 : i32, i32
  }
  func.func @transform_16(%arg0: i32) -> (i32, i32) {
    %c0_i32 = arith.constant 0 : i32
    %c0_i32_0 = arith.constant 0 : i32
    %c0_i32_1 = arith.constant 0 : i32
    return %c0_i32, %c0_i32_0 : i32, i32
  }
  func.func @transform_17(%arg0: i32) -> (i32, i32) {
    %c0_i32 = arith.constant 0 : i32
    %c0_i32_0 = arith.constant 0 : i32
    return %arg0, %c0_i32 : i32, i32
  }
}

</mosaic_0001>

<llo_original>
// kernel: pinn_forward.2
$region0: #{pinn_forward.2}
  #allocation0 [shape = 'u32[]', space=smem, size = 0x4, offset = 0x4, fixed_abs, tag = 'smem constant byte address 0x4 - core index']
  #allocation1 [shape = 'u32[144,128]{1,0:T(1,128)}', space=vmem, size = 0x12000, scoped, tag = 'internal scratch']
  #allocation2 [shape = 'f32[1,1]{1,0:T(1,128)S(1)}', space=vmem, size = 0x200, scoped, tag = 'scoped memory for pinn_forward.2']
  %s0 = inlined_call_operand.vmem [shape: f32[16,6], index: 0, kind: input, shape index: {}]
  %s1 = inlined_call_operand.vmem [shape: f32[6,16], index: 1, kind: input, shape index: {}]
  %s2 = inlined_call_operand.vmem [shape: f32[6,64], index: 2, kind: input, shape index: {}]
  %s3 = inlined_call_operand.vmem [shape: f32[1,64], index: 3, kind: input, shape index: {}]
  %s4 = inlined_call_operand.vmem [shape: f32[64,64], index: 4, kind: input, shape index: {}]
  %s5 = inlined_call_operand.vmem [shape: f32[1,64], index: 5, kind: input, shape index: {}]
  %s6 = inlined_call_operand.vmem [shape: f32[64,32], index: 6, kind: input, shape index: {}]
  %s7 = inlined_call_operand.vmem [shape: f32[1,32], index: 7, kind: input, shape index: {}]
  %s8 = inlined_call_operand.vmem [shape: f32[32,32], index: 8, kind: input, shape index: {}]
  %s9 = inlined_call_operand.vmem [shape: f32[1,32], index: 9, kind: input, shape index: {}]
  %s10 = inlined_call_operand.vmem [shape: f32[32,1], index: 10, kind: input, shape index: {}]
  %s11 = inlined_call_operand.<no memory space> [shape: f32[1,1], index: 11, kind: input, shape index: {}]
  %s12 = inlined_call_operand.vmem [shape: f32[64,16], index: 12, kind: input, shape index: {}]
  %s13 = inlined_call_operand.vmem [shape: f32[64,64], index: 13, kind: input, shape index: {}]
  %s14 = inlined_call_operand.vmem [shape: f32[32,64], index: 14, kind: input, shape index: {}]
  %s15 = inlined_call_operand.vmem [shape: f32[32,32], index: 15, kind: input, shape index: {}]
  %s16 = inlined_call_operand.vmem [shape: f32[1,32], index: 16, kind: input, shape index: {}]
  %s17 = inlined_call_operand.vmem [shape: f32[16,16], index: 17, kind: output, shape index: {}]
  %s18 = sld [smem:[#allocation0]]
  $region101: #{pinn_forward.2} parent=0
    _
  %s20 = ssub.s32 1, %s18
  %s21 = scalar_select 0, %s20, %s18
  %v22 = vstv %s11
  %23 = vst [vmem:[#allocation2] sm:$0x1] %v22
  loop: start=0, step=1, limit=4
  $region2: #{pinn_forward.2} parent=0 // loop_pre_header
    _
  $region3: #{pinn_forward.2} parent=0 // loop_header
    %s25 = sphi 0, %s29
    %p26 = scmp.ge.s32.totalorder %s25, 4
    %s35 = sphi 0, %s37
    %s38 = sphi 0, %s35
    %s39 = sphi 0, %s38
    %s55 = sphi 0, %s39
    %s59 = sphi 0, %s59
    %s61 = sphi 0, %s59
    %s62 = sphi 0, %s61
    %s76 = sphi 0, %s62
    %s80 = sphi 0, %s80
    %s82 = sphi 0, %s80
    %s83 = sphi 0, %s82
    %s97 = sphi 0, %s83
    %s101 = sphi 0, %s101
    %s103 = sphi 0, %s101
    %s104 = sphi 0, %s103
    %s118 = sphi 0, %s104
    %s122 = sphi 0, %s122
    %s124 = sphi 0, %s122
    %s125 = sphi 0, %s124
    %s139 = sphi 0, %s125
    %s143 = sphi 0, %s143
    %s145 = sphi 0, %s143
    %s146 = sphi 0, %s145
    %s160 = sphi 0, %s146
    %s164 = sphi 0, %s164
    %s166 = sphi 0, %s164
    %s167 = sphi 0, %s166
    %s181 = sphi 0, %s167
    %s185 = sphi 0, %s185
    %s187 = sphi 0, %s185
    %s188 = sphi 0, %s187
    %s202 = sphi 0, %s188
    %s206 = sphi 0, %s206
    %s208 = sphi 0, %s206
    %s209 = sphi 0, %s208
    %s223 = sphi 0, %s209
    %s227 = sphi 0, %s227
    %s229 = sphi 0, %s227
    %s230 = sphi 0, %s229
    %s244 = sphi 0, %s230
    %s248 = sphi 0, %s248
    %s250 = sphi 0, %s248
    %s251 = sphi 0, %s250
    %s265 = sphi 0, %s251
    %s269 = sphi 0, %s269
    %s271 = sphi 0, %s269
    %s272 = sphi 0, %s271
    %s286 = sphi 0, %s272
    %s290 = sphi 0, %s290
    %s292 = sphi 0, %s290
    %s293 = sphi 0, %s292
    %s307 = sphi 0, %s293
    %s311 = sphi 0, %s311
    %s313 = sphi 0, %s311
    %s314 = sphi 0, %s313
    %s328 = sphi 0, %s314
    %s332 = sphi 0, %s332
    %s334 = sphi 0, %s332
    %s335 = sphi 0, %s334
    %s349 = sphi 0, %s335
    %s353 = sphi 0, %s353
    %s355 = sphi 0, %s353
    %s356 = sphi 0, %s355
    %s370 = sphi 0, %s356
    %s374 = sphi 0, %s374
    %s376 = sphi 0, %s374
    %s377 = sphi 0, %s376
    %s391 = sphi 0, %s377
    %s397 = sphi 0, %s399
    %s400 = sphi 0, %s397
    %s401 = sphi 0, %s400
    %s417 = sphi 0, %s401
  $region4: #{pinn_forward.2} parent=0 // loop_header_branch
    %28 = sbr.rel (%p26) target = $region8
  $region5: #{pinn_forward.2} parent=0 // loop_body
    %s30 = ssub.s32 %s25, 1
    %s31 = ssub.s32 %s25, 2
    %s32 = sadd.s32 %s25, 1
    %s33 = ssub.s32 %s25, %s32
    %p34 = scmp.eq.s32.totalorder %s33, 0
    %s36 = sadd.s32 %s35, 1
    %s37 = scalar_select %p34, %s35, %s36
    %p40 = pneg %p34
    %p41 = scmp.eq.s32.totalorder %s25, 1
    %p42 = por %p40, %p41
    %p43 = scmp.ne.s32.totalorder %s35, %s38
    %p44 = scmp.eq.s32.totalorder %s25, 0
    %p45 = por %p43, %p44
    %p46 = scmp.ne.s32.totalorder %s35, %s38
    %p47 = scmp.eq.s32.totalorder %s30, 1
    %p48 = por %p46, %p47
    %p49 = scmp.ne.s32.totalorder %s38, %s39
    %p50 = scmp.eq.s32.totalorder %s30, 0
    %p51 = por %p49, %p50
    %p52 = scmp.ne.s32.totalorder %s38, %s39
    %p53 = scmp.eq.s32.totalorder %s31, 1
    %p54 = por %p52, %p53
    %p56 = scmp.ne.s32.totalorder %s39, %s55
    %p57 = scmp.eq.s32.totalorder %s31, 0
    %p58 = por %p56, %p57
    %s60 = sadd.s32 %s59, 1
    %p63 = scmp.eq.s32.totalorder %s25, 1
    %p64 = scmp.ne.s32.totalorder %s59, %s61
    %p65 = scmp.eq.s32.totalorder %s25, 0
    %p66 = por %p64, %p65
    %p67 = scmp.ne.s32.totalorder %s59, %s61
    %p68 = scmp.eq.s32.totalorder %s30, 1
    %p69 = por %p67, %p68
    %p70 = scmp.ne.s32.totalorder %s61, %s62
    %p71 = scmp.eq.s32.totalorder %s30, 0
    %p72 = por %p70, %p71
    %p73 = scmp.ne.s32.totalorder %s61, %s62
    %p74 = scmp.eq.s32.totalorder %s31, 1
    %p75 = por %p73, %p74
    %p77 = scmp.ne.s32.totalorder %s62, %s76
    %p78 = scmp.eq.s32.totalorder %s31, 0
    %p79 = por %p77, %p78
    %s81 = sadd.s32 %s80, 1
    %p84 = scmp.eq.s32.totalorder %s25, 1
    %p85 = scmp.ne.s32.totalorder %s80, %s82
    %p86 = scmp.eq.s32.totalorder %s25, 0
    %p87 = por %p85, %p86
    %p88 = scmp.ne.s32.totalorder %s80, %s82
    %p89 = scmp.eq.s32.totalorder %s30, 1
    %p90 = por %p88, %p89
    %p91 = scmp.ne.s32.totalorder %s82, %s83
    %p92 = scmp.eq.s32.totalorder %s30, 0
    %p93 = por %p91, %p92
    %p94 = scmp.ne.s32.totalorder %s82, %s83
    %p95 = scmp.eq.s32.totalorder %s31, 1
    %p96 = por %p94, %p95
    %p98 = scmp.ne.s32.totalorder %s83, %s97
    %p99 = scmp.eq.s32.totalorder %s31, 0
    %p100 = por %p98, %p99
    %s102 = sadd.s32 %s101, 1
    %p105 = scmp.eq.s32.totalorder %s25, 1
    %p106 = scmp.ne.s32.totalorder %s101, %s103
    %p107 = scmp.eq.s32.totalorder %s25, 0
    %p108 = por %p106, %p107
    %p109 = scmp.ne.s32.totalorder %s101, %s103
    %p110 = scmp.eq.s32.totalorder %s30, 1
    %p111 = por %p109, %p110
    %p112 = scmp.ne.s32.totalorder %s103, %s104
    %p113 = scmp.eq.s32.totalorder %s30, 0
    %p114 = por %p112, %p113
    %p115 = scmp.ne.s32.totalorder %s103, %s104
    %p116 = scmp.eq.s32.totalorder %s31, 1
    %p117 = por %p115, %p116
    %p119 = scmp.ne.s32.totalorder %s104, %s118
    %p120 = scmp.eq.s32.totalorder %s31, 0
    %p121 = por %p119, %p120
    %s123 = sadd.s32 %s122, 1
    %p126 = scmp.eq.s32.totalorder %s25, 1
    %p127 = scmp.ne.s32.totalorder %s122, %s124
    %p128 = scmp.eq.s32.totalorder %s25, 0
    %p129 = por %p127, %p128
    %p130 = scmp.ne.s32.totalorder %s122, %s124
    %p131 = scmp.eq.s32.totalorder %s30, 1
    %p132 = por %p130, %p131
    %p133 = scmp.ne.s32.totalorder %s124, %s125
    %p134 = scmp.eq.s32.totalorder %s30, 0
    %p135 = por %p133, %p134
    %p136 = scmp.ne.s32.totalorder %s124, %s125
    %p137 = scmp.eq.s32.totalorder %s31, 1
    %p138 = por %p136, %p137
    %p140 = scmp.ne.s32.totalorder %s125, %s139
    %p141 = scmp.eq.s32.totalorder %s31, 0
    %p142 = por %p140, %p141
    %s144 = sadd.s32 %s143, 1
    %p147 = scmp.eq.s32.totalorder %s25, 1
    %p148 = scmp.ne.s32.totalorder %s143, %s145
    %p149 = scmp.eq.s32.totalorder %s25, 0
    %p150 = por %p148, %p149
    %p151 = scmp.ne.s32.totalorder %s143, %s145
    %p152 = scmp.eq.s32.totalorder %s30, 1
    %p153 = por %p151, %p152
    %p154 = scmp.ne.s32.totalorder %s145, %s146
    %p155 = scmp.eq.s32.totalorder %s30, 0
    %p156 = por %p154, %p155
    %p157 = scmp.ne.s32.totalorder %s145, %s146
    %p158 = scmp.eq.s32.totalorder %s31, 1
    %p159 = por %p157, %p158
    %p161 = scmp.ne.s32.totalorder %s146, %s160
    %p162 = scmp.eq.s32.totalorder %s31, 0
    %p163 = por %p161, %p162
    %s165 = sadd.s32 %s164, 1
    %p168 = scmp.eq.s32.totalorder %s25, 1
    %p169 = scmp.ne.s32.totalorder %s164, %s166
    %p170 = scmp.eq.s32.totalorder %s25, 0
    %p171 = por %p169, %p170
    %p172 = scmp.ne.s32.totalorder %s164, %s166
    %p173 = scmp.eq.s32.totalorder %s30, 1
    %p174 = por %p172, %p173
    %p175 = scmp.ne.s32.totalorder %s166, %s167
    %p176 = scmp.eq.s32.totalorder %s30, 0
    %p177 = por %p175, %p176
    %p178 = scmp.ne.s32.totalorder %s166, %s167
    %p179 = scmp.eq.s32.totalorder %s31, 1
    %p180 = por %p178, %p179
    %p182 = scmp.ne.s32.totalorder %s167, %s181
    %p183 = scmp.eq.s32.totalorder %s31, 0
    %p184 = por %p182, %p183
    %s186 = sadd.s32 %s185, 1
    %p189 = scmp.eq.s32.totalorder %s25, 1
    %p190 = scmp.ne.s32.totalorder %s185, %s187
    %p191 = scmp.eq.s32.totalorder %s25, 0
    %p192 = por %p190, %p191
    %p193 = scmp.ne.s32.totalorder %s185, %s187
    %p194 = scmp.eq.s32.totalorder %s30, 1
    %p195 = por %p193, %p194
    %p196 = scmp.ne.s32.totalorder %s187, %s188
    %p197 = scmp.eq.s32.totalorder %s30, 0
    %p198 = por %p196, %p197
    %p199 = scmp.ne.s32.totalorder %s187, %s188
    %p200 = scmp.eq.s32.totalorder %s31, 1
    %p201 = por %p199, %p200
    %p203 = scmp.ne.s32.totalorder %s188, %s202
    %p204 = scmp.eq.s32.totalorder %s31, 0
    %p205 = por %p203, %p204
    %s207 = sadd.s32 %s206, 1
    %p210 = scmp.eq.s32.totalorder %s25, 1
    %p211 = scmp.ne.s32.totalorder %s206, %s208
    %p212 = scmp.eq.s32.totalorder %s25, 0
    %p213 = por %p211, %p212
    %p214 = scmp.ne.s32.totalorder %s206, %s208
    %p215 = scmp.eq.s32.totalorder %s30, 1
    %p216 = por %p214, %p215
    %p217 = scmp.ne.s32.totalorder %s208, %s209
    %p218 = scmp.eq.s32.totalorder %s30, 0
    %p219 = por %p217, %p218
    %p220 = scmp.ne.s32.totalorder %s208, %s209
    %p221 = scmp.eq.s32.totalorder %s31, 1
    %p222 = por %p220, %p221
    %p224 = scmp.ne.s32.totalorder %s209, %s223
    %p225 = scmp.eq.s32.totalorder %s31, 0
    %p226 = por %p224, %p225
    %s228 = sadd.s32 %s227, 1
    %p231 = scmp.eq.s32.totalorder %s25, 1
    %p232 = scmp.ne.s32.totalorder %s227, %s229
    %p233 = scmp.eq.s32.totalorder %s25, 0
    %p234 = por %p232, %p233
    %p235 = scmp.ne.s32.totalorder %s227, %s229
    %p236 = scmp.eq.s32.totalorder %s30, 1
    %p237 = por %p235, %p236
    %p238 = scmp.ne.s32.totalorder %s229, %s230
    %p239 = scmp.eq.s32.totalorder %s30, 0
    %p240 = por %p238, %p239
    %p241 = scmp.ne.s32.totalorder %s229, %s230
    %p242 = scmp.eq.s32.totalorder %s31, 1
    %p243 = por %p241, %p242
    %p245 = scmp.ne.s32.totalorder %s230, %s244
    %p246 = scmp.eq.s32.totalorder %s31, 0
    %p247 = por %p245, %p246
    %s249 = sadd.s32 %s248, 1
    %p252 = scmp.eq.s32.totalorder %s25, 1
    %p253 = scmp.ne.s32.totalorder %s248, %s250
    %p254 = scmp.eq.s32.totalorder %s25, 0
    %p255 = por %p253, %p254
    %p256 = scmp.ne.s32.totalorder %s248, %s250
    %p257 = scmp.eq.s32.totalorder %s30, 1
    %p258 = por %p256, %p257
    %p259 = scmp.ne.s32.totalorder %s250, %s251
    %p260 = scmp.eq.s32.totalorder %s30, 0
    %p261 = por %p259, %p260
    %p262 = scmp.ne.s32.totalorder %s250, %s251
    %p263 = scmp.eq.s32.totalorder %s31, 1
    %p264 = por %p262, %p263
    %p266 = scmp.ne.s32.totalorder %s251, %s265
    %p267 = scmp.eq.s32.totalorder %s31, 0
    %p268 = por %p266, %p267
    %s270 = sadd.s32 %s269, 1
    %p273 = scmp.eq.s32.totalorder %s25, 1
    %p274 = scmp.ne.s32.totalorder %s269, %s271
    %p275 = scmp.eq.s32.totalorder %s25, 0
    %p276 = por %p274, %p275
    %p277 = scmp.ne.s32.totalorder %s269, %s271
    %p278 = scmp.eq.s32.totalorder %s30, 1
    %p279 = por %p277, %p278
    %p280 = scmp.ne.s32.totalorder %s271, %s272
    %p281 = scmp.eq.s32.totalorder %s30, 0
    %p282 = por %p280, %p281
    %p283 = scmp.ne.s32.totalorder %s271, %s272
    %p284 = scmp.eq.s32.totalorder %s31, 1
    %p285 = por %p283, %p284
    %p287 = scmp.ne.s32.totalorder %s272, %s286
    %p288 = scmp.eq.s32.totalorder %s31, 0
    %p289 = por %p287, %p288
    %s291 = sadd.s32 %s290, 1
    %p294 = scmp.eq.s32.totalorder %s25, 1
    %p295 = scmp.ne.s32.totalorder %s290, %s292
    %p296 = scmp.eq.s32.totalorder %s25, 0
    %p297 = por %p295, %p296
    %p298 = scmp.ne.s32.totalorder %s290, %s292
    %p299 = scmp.eq.s32.totalorder %s30, 1
    %p300 = por %p298, %p299
    %p301 = scmp.ne.s32.totalorder %s292, %s293
    %p302 = scmp.eq.s32.totalorder %s30, 0
    %p303 = por %p301, %p302
    %p304 = scmp.ne.s32.totalorder %s292, %s293
    %p305 = scmp.eq.s32.totalorder %s31, 1
    %p306 = por %p304, %p305
    %p308 = scmp.ne.s32.totalorder %s293, %s307
    %p309 = scmp.eq.s32.totalorder %s31, 0
    %p310 = por %p308, %p309
    %s312 = sadd.s32 %s311, 1
    %p315 = scmp.eq.s32.totalorder %s25, 1
    %p316 = scmp.ne.s32.totalorder %s311, %s313
    %p317 = scmp.eq.s32.totalorder %s25, 0
    %p318 = por %p316, %p317
    %p319 = scmp.ne.s32.totalorder %s311, %s313
    %p320 = scmp.eq.s32.totalorder %s30, 1
    %p321 = por %p319, %p320
    %p322 = scmp.ne.s32.totalorder %s313, %s314
    %p323 = scmp.eq.s32.totalorder %s30, 0
    %p324 = por %p322, %p323
    %p325 = scmp.ne.s32.totalorder %s313, %s314
    %p326 = scmp.eq.s32.totalorder %s31, 1
    %p327 = por %p325, %p326
    %p329 = scmp.ne.s32.totalorder %s314, %s328
    %p330 = scmp.eq.s32.totalorder %s31, 0
    %p331 = por %p329, %p330
    %s333 = sadd.s32 %s332, 1
    %p336 = scmp.eq.s32.totalorder %s25, 1
    %p337 = scmp.ne.s32.totalorder %s332, %s334
    %p338 = scmp.eq.s32.totalorder %s25, 0
    %p339 = por %p337, %p338
    %p340 = scmp.ne.s32.totalorder %s332, %s334
    %p341 = scmp.eq.s32.totalorder %s30, 1
    %p342 = por %p340, %p341
    %p343 = scmp.ne.s32.totalorder %s334, %s335
    %p344 = scmp.eq.s32.totalorder %s30, 0
    %p345 = por %p343, %p344
    %p346 = scmp.ne.s32.totalorder %s334, %s335
    %p347 = scmp.eq.s32.totalorder %s31, 1
    %p348 = por %p346, %p347
    %p350 = scmp.ne.s32.totalorder %s335, %s349
    %p351 = scmp.eq.s32.totalorder %s31, 0
    %p352 = por %p350, %p351
    %s354 = sadd.s32 %s353, 1
    %p357 = scmp.eq.s32.totalorder %s25, 1
    %p358 = scmp.ne.s32.totalorder %s353, %s355
    %p359 = scmp.eq.s32.totalorder %s25, 0
    %p360 = por %p358, %p359
    %p361 = scmp.ne.s32.totalorder %s353, %s355
    %p362 = scmp.eq.s32.totalorder %s30, 1
    %p363 = por %p361, %p362
    %p364 = scmp.ne.s32.totalorder %s355, %s356
    %p365 = scmp.eq.s32.totalorder %s30, 0
    %p366 = por %p364, %p365
    %p367 = scmp.ne.s32.totalorder %s355, %s356
    %p368 = scmp.eq.s32.totalorder %s31, 1
    %p369 = por %p367, %p368
    %p371 = scmp.ne.s32.totalorder %s356, %s370
    %p372 = scmp.eq.s32.totalorder %s31, 0
    %p373 = por %p371, %p372
    %s375 = sadd.s32 %s374, 1
    %p378 = scmp.eq.s32.totalorder %s25, 1
    %p379 = scmp.ne.s32.totalorder %s374, %s376
    %p380 = scmp.eq.s32.totalorder %s25, 0
    %p381 = por %p379, %p380
    %p382 = scmp.ne.s32.totalorder %s374, %s376
    %p383 = scmp.eq.s32.totalorder %s30, 1
    %p384 = por %p382, %p383
    %p385 = scmp.ne.s32.totalorder %s376, %s377
    %p386 = scmp.eq.s32.totalorder %s30, 0
    %p387 = por %p385, %p386
    %p388 = scmp.ne.s32.totalorder %s376, %s377
    %p389 = scmp.eq.s32.totalorder %s31, 1
    %p390 = por %p388, %p389
    %p392 = scmp.ne.s32.totalorder %s377, %s391
    %p393 = scmp.eq.s32.totalorder %s31, 0
    %p394 = por %p392, %p393
    %s395 = ssub.s32 %s25, %s32
    %p396 = scmp.eq.s32.totalorder %s395, 0
    %s398 = sadd.s32 %s397, 1
    %s399 = scalar_select %p396, %s397, %s398
    %p402 = pneg %p396
    %p403 = scmp.eq.s32.totalorder %s25, 1
    %p404 = por %p402, %p403
    %p405 = scmp.ne.s32.totalorder %s397, %s400
    %p406 = scmp.eq.s32.totalorder %s25, 0
    %p407 = por %p405, %p406
    %p408 = scmp.ne.s32.totalorder %s397, %s400
    %p409 = scmp.eq.s32.totalorder %s30, 1
    %p410 = por %p408, %p409
    %p411 = scmp.ne.s32.totalorder %s400, %s401
    %p412 = scmp.eq.s32.totalorder %s30, 0
    %p413 = por %p411, %p412
    %p414 = scmp.ne.s32.totalorder %s400, %s401
    %p415 = scmp.eq.s32.totalorder %s31, 1
    %p416 = por %p414, %p415
    %p418 = scmp.ne.s32.totalorder %s401, %s417
    %p419 = scmp.eq.s32.totalorder %s31, 0
    %p420 = por %p418, %p419
    %p421 = scmp.le.s32.totalorder 1, %s25
    %p422 = scmp.lt.s32.totalorder %s25, 3
    %p423 = pnand %p421, %p422
    %p424 = pneg %p423
    // Predicated region
    $region9: #{pinn_forward.2} parent=5 // pred_check
      _
    $region10: #{pinn_forward.2} parent=5 // pred_check_branch
      %426 = sbr.rel (%p423) target = $region12
    $region11: #{pinn_forward.2} parent=5 // pred_region
      %s427 = ssub.s32 %s25, 1
      // Predicated region
      $region13: #{pinn_forward.2} parent=11 // pred_check
        %p428 = pneg %p72
      $region14: #{pinn_forward.2} parent=11 // pred_check_branch
        %430 = sbr.rel (%p428) target = $region16
      $region15: #{pinn_forward.2} parent=11 // pred_region
        _
      $region16: #{pinn_forward.2} parent=11 // pred_fallthru
        _
      // Predicated region
      $region17: #{pinn_forward.2} parent=11 // pred_check
        %p431 = pneg %p93
      $region18: #{pinn_forward.2} parent=11 // pred_check_branch
        %433 = sbr.rel (%p431) target = $region20
      $region19: #{pinn_forward.2} parent=11 // pred_region
        _
      $region20: #{pinn_forward.2} parent=11 // pred_fallthru
        _
      // Predicated region
      $region21: #{pinn_forward.2} parent=11 // pred_check
        %p434 = pneg %p114
      $region22: #{pinn_forward.2} parent=11 // pred_check_branch
        %436 = sbr.rel (%p434) target = $region24
      $region23: #{pinn_forward.2} parent=11 // pred_region
        _
      $region24: #{pinn_forward.2} parent=11 // pred_fallthru
        _
      // Predicated region
      $region25: #{pinn_forward.2} parent=11 // pred_check
        %p437 = pneg %p135
      $region26: #{pinn_forward.2} parent=11 // pred_check_branch
        %439 = sbr.rel (%p437) target = $region28
      $region27: #{pinn_forward.2} parent=11 // pred_region
        _
      $region28: #{pinn_forward.2} parent=11 // pred_fallthru
        _
      // Predicated region
      $region29: #{pinn_forward.2} parent=11 // pred_check
        %p440 = pneg %p156
      $region30: #{pinn_forward.2} parent=11 // pred_check_branch
        %442 = sbr.rel (%p440) target = $region32
      $region31: #{pinn_forward.2} parent=11 // pred_region
        _
      $region32: #{pinn_forward.2} parent=11 // pred_fallthru
        _
      // Predicated region
      $region33: #{pinn_forward.2} parent=11 // pred_check
        %p443 = pneg %p177
      $region34: #{pinn_forward.2} parent=11 // pred_check_branch
        %445 = sbr.rel (%p443) target = $region36
      $region35: #{pinn_forward.2} parent=11 // pred_region
        _
      $region36: #{pinn_forward.2} parent=11 // pred_fallthru
        _
      // Predicated region
      $region37: #{pinn_forward.2} parent=11 // pred_check
        %p446 = pneg %p198
      $region38: #{pinn_forward.2} parent=11 // pred_check_branch
        %448 = sbr.rel (%p446) target = $region40
      $region39: #{pinn_forward.2} parent=11 // pred_region
        _
      $region40: #{pinn_forward.2} parent=11 // pred_fallthru
        _
      // Predicated region
      $region41: #{pinn_forward.2} parent=11 // pred_check
        %p449 = pneg %p219
      $region42: #{pinn_forward.2} parent=11 // pred_check_branch
        %451 = sbr.rel (%p449) target = $region44
      $region43: #{pinn_forward.2} parent=11 // pred_region
        _
      $region44: #{pinn_forward.2} parent=11 // pred_fallthru
        _
      // Predicated region
      $region45: #{pinn_forward.2} parent=11 // pred_check
        %p452 = pneg %p240
      $region46: #{pinn_forward.2} parent=11 // pred_check_branch
        %454 = sbr.rel (%p452) target = $region48
      $region47: #{pinn_forward.2} parent=11 // pred_region
        _
      $region48: #{pinn_forward.2} parent=11 // pred_fallthru
        _
      // Predicated region
      $region49: #{pinn_forward.2} parent=11 // pred_check
        %p455 = pneg %p261
      $region50: #{pinn_forward.2} parent=11 // pred_check_branch
        %457 = sbr.rel (%p455) target = $region52
      $region51: #{pinn_forward.2} parent=11 // pred_region
        _
      $region52: #{pinn_forward.2} parent=11 // pred_fallthru
        _
      // Predicated region
      $region53: #{pinn_forward.2} parent=11 // pred_check
        %p458 = pneg %p282
      $region54: #{pinn_forward.2} parent=11 // pred_check_branch
        %460 = sbr.rel (%p458) target = $region56
      $region55: #{pinn_forward.2} parent=11 // pred_region
        _
      $region56: #{pinn_forward.2} parent=11 // pred_fallthru
        _
      // Predicated region
      $region57: #{pinn_forward.2} parent=11 // pred_check
        %p461 = pneg %p303
      $region58: #{pinn_forward.2} parent=11 // pred_check_branch
        %463 = sbr.rel (%p461) target = $region60
      $region59: #{pinn_forward.2} parent=11 // pred_region
        _
      $region60: #{pinn_forward.2} parent=11 // pred_fallthru
        _
      // Predicated region
      $region61: #{pinn_forward.2} parent=11 // pred_check
        %p464 = pneg %p324
      $region62: #{pinn_forward.2} parent=11 // pred_check_branch
        %466 = sbr.rel (%p464) target = $region64
      $region63: #{pinn_forward.2} parent=11 // pred_region
        _
      $region64: #{pinn_forward.2} parent=11 // pred_fallthru
        _
      // Predicated region
      $region65: #{pinn_forward.2} parent=11 // pred_check
        %p467 = pneg %p345
      $region66: #{pinn_forward.2} parent=11 // pred_check_branch
        %469 = sbr.rel (%p467) target = $region68
      $region67: #{pinn_forward.2} parent=11 // pred_region
        _
      $region68: #{pinn_forward.2} parent=11 // pred_fallthru
        _
      // Predicated region
      $region69: #{pinn_forward.2} parent=11 // pred_check
        %p470 = pneg %p366
      $region70: #{pinn_forward.2} parent=11 // pred_check_branch
        %472 = sbr.rel (%p470) target = $region72
      $region71: #{pinn_forward.2} parent=11 // pred_region
        _
      $region72: #{pinn_forward.2} parent=11 // pred_fallthru
        _
      // Predicated region
      $region73: #{pinn_forward.2} parent=11 // pred_check
        %p473 = pneg %p387
      $region74: #{pinn_forward.2} parent=11 // pred_check_branch
        %475 = sbr.rel (%p473) target = $region76
      $region75: #{pinn_forward.2} parent=11 // pred_region
        _
      $region76: #{pinn_forward.2} parent=11 // pred_fallthru
        _
    $region12: #{pinn_forward.2} parent=5 // pred_fallthru
      _
    %p476 = scmp.lt.s32.totalorder %s25, 2
    // Predicated region
    $region77: #{pinn_forward.2} parent=5 // pred_check
      %p477 = pneg %p476
    $region78: #{pinn_forward.2} parent=5 // pred_check_branch
      %479 = sbr.rel (%p477) target = $region80
    $region79: #{pinn_forward.2} parent=5 // pred_region
      // Predicated region
      $region81: #{pinn_forward.2} parent=79 // pred_check
        %p480 = pneg %p45
      $region82: #{pinn_forward.2} parent=79 // pred_check_branch
        %482 = sbr.rel (%p480) target = $region84
      $region83: #{pinn_forward.2} parent=79 // pred_region
        %p483 = scmp.lt.s32.totalorder %s25, 1
        %s484 = scalar_select %p483, %s25, 1
        %s485 = smul.addr %s484, 8
        %s486 = scalar_lea.vmem %s0, %s485
      $region84: #{pinn_forward.2} parent=79 // pred_fallthru
        _
    $region80: #{pinn_forward.2} parent=5 // pred_fallthru
      _
    %p487 = scmp.le.s32.totalorder 1, %s25
    %p488 = scmp.lt.s32.totalorder %s25, 3
    %p489 = pnand %p487, %p488
    %p490 = pneg %p489
    // Predicated region
    $region85: #{pinn_forward.2} parent=5 // pred_check
      _
    $region86: #{pinn_forward.2} parent=5 // pred_check_branch
      %492 = sbr.rel (%p489) target = $region88
    $region87: #{pinn_forward.2} parent=5 // pred_region
      %s493 = ssub.s32 %s25, 1
      %p494 = scmp.lt.s32.totalorder %s30, 1
      %s495 = scalar_select %p494, %s30, 1
      %s496 = smul.addr %s495, 8
      %s497 = scalar_lea.vmem %s0, %s496
      %p498 = pneg %p51
      %p499 = pneg %p48
      %p500 = pneg %p72
      %p501 = pneg %p69
      %p502 = pneg %p93
      %p503 = pneg %p90
      %p504 = pneg %p114
      %p505 = pneg %p111
      %p506 = pneg %p135
      %p507 = pneg %p132
      %p508 = pneg %p156
      %p509 = pneg %p153
      %p510 = pneg %p177
      %p511 = pneg %p174
      %p512 = pneg %p198
      %p513 = pneg %p195
      %p514 = pneg %p219
      %p515 = pneg %p216
      %p516 = pneg %p240
      %p517 = pneg %p237
      %p518 = pneg %p261
      %p519 = pneg %p258
      %p520 = pneg %p282
      %p521 = pneg %p279
      %p522 = pneg %p303
      %p523 = pneg %p300
      %p524 = pneg %p324
      %p525 = pneg %p321
      %p526 = pneg %p345
      %p527 = pneg %p342
      %p528 = pneg %p366
      %p529 = pneg %p363
      %p530 = pneg %p387
      %p531 = pneg %p384
      %p532 = pneg %p413
      %p533 = pneg %p410
      %p534 = scmp.lt.s32.totalorder %s30, 1
      %s535 = scalar_select %p534, %s30, 1
      %s536 = smul.addr %s535, 8
      %s537 = scalar_lea.vmem %s17, %s536
      %p538 = scmp.lt.s32.totalorder %s30, 1
      %s539 = scalar_select %p538, %s30, 1
      %s540 = smul.addr %s539, 8
      %s541 = scalar_lea.vmem %s0, %s540
      %p542 = scmp.lt.s32.totalorder %s30, 1
      %s543 = scalar_select %p542, %s30, 1
      %s544 = smul.addr %s543, 8
      %s545 = scalar_lea.vmem %s17, %s544
      %v546 = vld [vmem:[%s541] sm:$0xff]
      %v547 = vld [vmem:[%s2] sm:$0x3f]
      %v548 = vld [vmem:[%s3] sm:$0x1]
      %v550 = vlaneseq
      %v551 = vshrl.u32 %v550, 7
      %v552 = vsub.s32 0, %v551
      %v553 = vrot.slane %v548, %v552
      %vm555 = vcmask 48128
      %v557 = vsel %vm555, %v546, 0
      %vm559 = vcmask 1045504
      %v561 = vsel %vm559, %v547, 0
      %563 = vmatprep.subr.mxu0 0.0
      %564 = vmatpush1.msra.mxu0 %v561
      %565 = vmatprep.subr.mxu0 0.0
      %566 = vmatpush1.msra.mxu0 0.0
      %567 = vmatprep.subr.mxu0 0.0
      %568 = vmatpush1.msra.mxu0 0.0
      %569 = vmatprep.subr.mxu0 0.0
      %570 = vmatpush1.msra.mxu0 0.0
      %571 = vmatprep.subr.mxu0 0.0
      %572 = vmatpush1.msra.mxu0 0.0
      %573 = vmatprep.subr.mxu0 0.0
      %574 = vmatpush1.msra.mxu0 0.0
      %575 = vmatprep.subr.mxu0 0.0
      %576 = vmatpush1.msra.mxu0 0.0
      %577 = vmatprep.subr.mxu0 0.0
      %578 = vmatpush1.msra.mxu0 0.0
      %579 = vmatprep.subr.mxu0 0.0
      %580 = vmatpush1.msra.mxu0 0.0
      %581 = vmatprep.subr.mxu0 0.0
      %582 = vmatpush1.msra.mxu0 0.0
      %583 = vmatprep.subr.mxu0 0.0
      %584 = vmatpush1.msra.mxu0 0.0
      %585 = vmatprep.subr.mxu0 0.0
      %586 = vmatpush1.msra.mxu0 0.0
      %587 = vmatprep.subr.mxu0 0.0
      %588 = vmatpush1.msra.mxu0 0.0
      %589 = vmatprep.subr.mxu0 0.0
      %590 = vmatpush1.msra.mxu0 0.0
      %591 = vmatprep.subr.mxu0 0.0
      %592 = vmatpush1.msra.mxu0 0.0
      %593 = vmatprep.subr.mxu0 0.0
      %594 = vmatpush1.msra.mxu0 0.0
      %595 = vmatprep.subr.mxu0 0.0
      %596 = vmatpush1.msra.mxu0 0.0
      %597 = vmatprep.subr.mxu0 0.0
      %598 = vmatpush1.msra.mxu0 0.0
      %599 = vmatprep.subr.mxu0 0.0
      %600 = vmatpush1.msra.mxu0 0.0
      %601 = vmatprep.subr.mxu0 0.0
      %602 = vmatpush1.msra.mxu0 0.0
      %603 = vmatprep.subr.mxu0 0.0
      %604 = vmatpush1.msra.mxu0 0.0
      %605 = vmatprep.subr.mxu0 0.0
      %606 = vmatpush1.msra.mxu0 0.0
      %607 = vmatprep.subr.mxu0 0.0
      %608 = vmatpush1.msra.mxu0 0.0
      %609 = vmatprep.subr.mxu0 0.0
      %610 = vmatpush1.msra.mxu0 0.0
      %611 = vmatprep.subr.mxu0 0.0
      %612 = vmatpush1.msra.mxu0 0.0
      %613 = vmatprep.subr.mxu0 0.0
      %614 = vmatpush1.msra.mxu0 0.0
      %615 = vmatprep.subr.mxu0 0.0
      %616 = vmatpush1.msra.mxu0 0.0
      %617 = vmatprep.subr.mxu0 0.0
      %618 = vmatpush1.msra.mxu0 0.0
      %619 = vmatprep.subr.mxu0 0.0
      %620 = vmatpush1.msra.mxu0 0.0
      %621 = vmatprep.subr.mxu0 0.0
      %622 = vmatpush1.msra.mxu0 0.0
      %623 = vmatprep.subr.mxu0 0.0
      %624 = vmatpush1.msra.mxu0 0.0
      %625 = vmatprep.subr.mxu0 0.0
      %626 = vmatpush1.msra.mxu0 0.0
      %627 = vmatprep.mubr.f32.mxu0 0.0
      %628 = vmatmul.mubr.f32.gmra.mrb[0].mxu0 %v557
      %v629 = vpop.f32.mrb[0].mxu0
      %v630 = vadd.f32 %v553, %v629
      %v631 = vpop.f32.mrb[0].mxu0
      %632 = vdwg.mxu0
      %v633 = vand.u32 2147483647, %v630
      %vm634 = vcmp.le.f32.partialorder %v633, 0.7853982
      %vm635 = vcmp.lt.s32.totalorder %v630, 0
      %v636 = vand.u32 %v630, 2139095040
      %v637 = vshrl.u32 %v636, 23
      %v638 = vsub.s32 %v637, 127
      %v639 = vand.u32 2147483647, %v630
      %v640 = vand.u32 %v639, 8388607
      %v641 = vor.u32 %v640, 8388608
      %v642 = vsub.s32 0, %v641
      %v643 = vadd.s32 %v638, 1
      %vm644 = vcmp.gt.s32.totalorder %v643, 0
      %v645 = vsel %vm644, %v643, 0
      %v646 = vshrl.u32 %v645, 5
      %v647 = vand.u32 %v645, 31
      %v648 = vsub.s32 32, %v647
      %v649 = vshrl.u32 683565275, %v648
      %v650 = vshll.u32 683565275, %v647
      %v651 = vshrl.u32 2475754826, %v648
      %v652 = vor.u32 %v650, %v651
      %v653 = vshll.u32 2475754826, %v647
      %v654 = vshrl.u32 2131351028, %v648
      %v655 = vor.u32 %v653, %v654
      %v656 = vshll.u32 2131351028, %v647
      %v657 = vshrl.u32 2102212464, %v648
      %v658 = vor.u32 %v656, %v657
      %v659 = vshll.u32 2102212464, %v647
      %v660 = vshrl.u32 920167782, %v648
      %v661 = vor.u32 %v659, %v660
      %v662 = vshll.u32 920167782, %v647
      %v663 = vshrl.u32 1326507024, %v648
      %v664 = vor.u32 %v662, %v663
      %vm665 = vcmp.lt.s32.totalorder %v646, 1
      %vm666 = vcmp.lt.s32.totalorder %v646, 2
      %vm667 = vcmp.lt.s32.totalorder %v646, 3
      %vm668 = vcmp.lt.s32.totalorder %v646, 4
      %v669 = vsel %vm665, %v649, %v652
      %v670 = vsel %vm668, %v658, 2102212464
      %v671 = vsel %vm667, %v655, %v670
      %v672 = vsel %vm666, %v669, %v671
      %v673 = vsel %vm665, %v652, %v655
      %v674 = vsel %vm668, %v661, 920167782
      %v675 = vsel %vm667, %v658, %v674
      %v676 = vsel %vm666, %v673, %v675
      %v677 = vsel %vm665, %v655, %v658
      %v678 = vsel %vm668, %v664, 1326507024
      %v679 = vsel %vm667, %v661, %v678
      %v680 = vsel %vm666, %v677, %v679
      %v681 = vshll.u32 %v641, 8
      %v682 = vmul.u32.u64.compose %v681, %v680
      %v683 = vextract.low.u32 %v682
      %v684 = vextract.high.u32 %v682
      %v685 = vmul.u32.u64.compose %v681, %v676
      %v686 = vextract.low.u32 %v685
      %v687 = vextract.high.u32 %v685
      %v688 = vmul.u32 %v681, %v672
      %v689 = vadd.s32 %v684, %v686
      %vm690 = vc.u32 %v684, %v686
      %v691 = vadd.s32 %v687, 1
      %v692 = vsel %vm690, %v691, %v687
      %v693 = vadd.s32 %v688, %v692
      %v694 = vadd.s32 %v693, 536870912
      %v695 = vshrl.u32 %v694, 30
      %v696 = vshll.u32 %v695, 30
      %v697 = vsub.s32 %v693, %v696
      %vm698 = vcmp.lt.s32.totalorder %v697, 0
      %v699 = vsub.s32 0, %v697
      %v700 = vsel %vm698, %v699, %v697
      %v701 = vclz %v700
      %v702 = vsub.s32 %v701, 2
      %vm703 = vcmp.gt.s32.totalorder 0, %v702
      %v704 = vsel %vm703, 0, %v702
      %v705 = vsub.s32 32, %v704
      %v706 = vshll.u32 %v697, %v704
      %v707 = vshrl.u32 %v689, %v705
      %v708 = vor.u32 %v706, %v707
      %v709 = vsub.s32 4294967266, %v704
      %v710 = vadd.s32 %v709, 127
      %v711 = vshll.u32 %v710, 23
      %v712 = vor.u32 4788187, %v711
      %v713 = vand.u32 2147483647, %v712
      %v715 = vcvt.s32.f32 %v708
      %v716 = vmul.f32 %v715, %v713
      %v717 = vxor.u32 %v716, 2147483648
      %v718 = vsel %vm635, %v717, %v716
      %v719 = vsub.s32 4, %v695
      %v720 = vsel %vm635, %v719, %v695
      %v721 = vsel %vm634, %v630, %v718
      %v722 = vsel %vm634, 0, %v720
      %v723 = vcosq.f32.pop %v721
      %v724 = vsinq.f32.pop %v721
      %vm725 = vweird.f32 %v630
      %v726 = vadd.s32 %v722, 3
      %v727 = vand.u32 %v726, 3
      %vm728 = vcmp.lt.s32.totalorder %v727, 2
      %vm729 = vcmp.eq.s32.totalorder %v727, 0
      %v730 = vxor.u32 %v724, 2147483648
      %v731 = vsel %vm729, %v723, %v730
      %vm732 = vcmp.eq.s32.totalorder %v727, 2
      %v733 = vxor.u32 %v723, 2147483648
      %v734 = vsel %vm732, %v733, %v724
      %v735 = vsel %vm728, %v731, %v734
      %v736 = vsel %vm725, nan, %v735
      %v737 = vld [vmem:[%s4] sm:$0xff]
      %v738 = vld [vmem:[%s4 + $0x8] sm:$0xff]
      %v739 = vld [vmem:[%s4 + $0x10] sm:$0xff]
      %v740 = vld [vmem:[%s4 + $0x18] sm:$0xff]
      %v741 = vld [vmem:[%s4 + $0x20] sm:$0xff]
      %v742 = vld [vmem:[%s4 + $0x28] sm:$0xff]
      %v743 = vld [vmem:[%s4 + $0x30] sm:$0xff]
      %v744 = vld [vmem:[%s4 + $0x38] sm:$0xff]
      %v745 = vld [vmem:[%s5] sm:$0x1]
      %v747 = vlaneseq
      %v748 = vshrl.u32 %v747, 7
      %v749 = vsub.s32 0, %v748
      %v750 = vrot.slane %v745, %v749
      %vm752 = vcmask 523264
      %v754 = vsel %vm752, %v736, 0
      %756 = vmatprep.subr.mxu0 0.0
      %757 = vmatpush1.msra.mxu0 %v737
      %758 = vmatprep.subr.mxu0 0.0
      %759 = vmatpush1.msra.mxu0 %v738
      %760 = vmatprep.subr.mxu0 0.0
      %761 = vmatpush1.msra.mxu0 %v739
      %762 = vmatprep.subr.mxu0 0.0
      %763 = vmatpush1.msra.mxu0 %v740
      %764 = vmatprep.subr.mxu0 0.0
      %765 = vmatpush1.msra.mxu0 %v741
      %766 = vmatprep.subr.mxu0 0.0
      %767 = vmatpush1.msra.mxu0 %v742
      %768 = vmatprep.subr.mxu0 0.0
      %769 = vmatpush1.msra.mxu0 %v743
      %770 = vmatprep.subr.mxu0 0.0
      %771 = vmatpush1.msra.mxu0 %v744
      %772 = vmatprep.subr.mxu0 0.0
      %773 = vmatpush1.msra.mxu0 0.0
      %774 = vmatprep.subr.mxu0 0.0
      %775 = vmatpush1.msra.mxu0 0.0
      %776 = vmatprep.subr.mxu0 0.0
      %777 = vmatpush1.msra.mxu0 0.0
      %778 = vmatprep.subr.mxu0 0.0
      %779 = vmatpush1.msra.mxu0 0.0
      %780 = vmatprep.subr.mxu0 0.0
      %781 = vmatpush1.msra.mxu0 0.0
      %782 = vmatprep.subr.mxu0 0.0
      %783 = vmatpush1.msra.mxu0 0.0
      %784 = vmatprep.subr.mxu0 0.0
      %785 = vmatpush1.msra.mxu0 0.0
      %786 = vmatprep.subr.mxu0 0.0
      %787 = vmatpush1.msra.mxu0 0.0
      %788 = vmatprep.subr.mxu0 0.0
      %789 = vmatpush1.msra.mxu0 0.0
      %790 = vmatprep.subr.mxu0 0.0
      %791 = vmatpush1.msra.mxu0 0.0
      %792 = vmatprep.subr.mxu0 0.0
      %793 = vmatpush1.msra.mxu0 0.0
      %794 = vmatprep.subr.mxu0 0.0
      %795 = vmatpush1.msra.mxu0 0.0
      %796 = vmatprep.subr.mxu0 0.0
      %797 = vmatpush1.msra.mxu0 0.0
      %798 = vmatprep.subr.mxu0 0.0
      %799 = vmatpush1.msra.mxu0 0.0
      %800 = vmatprep.subr.mxu0 0.0
      %801 = vmatpush1.msra.mxu0 0.0
      %802 = vmatprep.subr.mxu0 0.0
      %803 = vmatpush1.msra.mxu0 0.0
      %804 = vmatprep.subr.mxu0 0.0
      %805 = vmatpush1.msra.mxu0 0.0
      %806 = vmatprep.subr.mxu0 0.0
      %807 = vmatpush1.msra.mxu0 0.0
      %808 = vmatprep.subr.mxu0 0.0
      %809 = vmatpush1.msra.mxu0 0.0
      %810 = vmatprep.subr.mxu0 0.0
      %811 = vmatpush1.msra.mxu0 0.0
      %812 = vmatprep.subr.mxu0 0.0
      %813 = vmatpush1.msra.mxu0 0.0
      %814 = vmatprep.subr.mxu0 0.0
      %815 = vmatpush1.msra.mxu0 0.0
      %816 = vmatprep.subr.mxu0 0.0
      %817 = vmatpush1.msra.mxu0 0.0
      %818 = vmatprep.subr.mxu0 0.0
      %819 = vmatpush1.msra.mxu0 0.0
      %820 = vmatprep.mubr.f32.mxu0 0.0
      %821 = vmatmul.mubr.f32.gmra.mrb[0].mxu0 %v754
      %v822 = vpop.f32.mrb[0].mxu0
      %v823 = vadd.f32 %v750, %v822
      %v824 = vpop.f32.mrb[0].mxu0
      %825 = vdwg.mxu0
      %v826 = vand.u32 2147483647, %v823
      %vm827 = vcmp.le.f32.partialorder %v826, 0.7853982
      %vm828 = vcmp.lt.s32.totalorder %v823, 0
      %v829 = vand.u32 %v823, 2139095040
      %v830 = vshrl.u32 %v829, 23
      %v831 = vsub.s32 %v830, 127
      %v832 = vand.u32 2147483647, %v823
      %v833 = vand.u32 %v832, 8388607
      %v834 = vor.u32 %v833, 8388608
      %v835 = vsub.s32 0, %v834
      %v836 = vadd.s32 %v831, 1
      %vm837 = vcmp.gt.s32.totalorder %v836, 0
      %v838 = vsel %vm837, %v836, 0
      %v839 = vshrl.u32 %v838, 5
      %v840 = vand.u32 %v838, 31
      %v841 = vsub.s32 32, %v840
      %v842 = vshrl.u32 683565275, %v841
      %v843 = vshll.u32 683565275, %v840
      %v844 = vshrl.u32 2475754826, %v841
      %v845 = vor.u32 %v843, %v844
      %v846 = vshll.u32 2475754826, %v840
      %v847 = vshrl.u32 2131351028, %v841
      %v848 = vor.u32 %v846, %v847
      %v849 = vshll.u32 2131351028, %v840
      %v850 = vshrl.u32 2102212464, %v841
      %v851 = vor.u32 %v849, %v850
      %v852 = vshll.u32 2102212464, %v840
      %v853 = vshrl.u32 920167782, %v841
      %v854 = vor.u32 %v852, %v853
      %v855 = vshll.u32 920167782, %v840
      %v856 = vshrl.u32 1326507024, %v841
      %v857 = vor.u32 %v855, %v856
      %vm858 = vcmp.lt.s32.totalorder %v839, 1
      %vm859 = vcmp.lt.s32.totalorder %v839, 2
      %vm860 = vcmp.lt.s32.totalorder %v839, 3
      %vm861 = vcmp.lt.s32.totalorder %v839, 4
      %v862 = vsel %vm858, %v842, %v845
      %v863 = vsel %vm861, %v851, 2102212464
      %v864 = vsel %vm860, %v848, %v863
      %v865 = vsel %vm859, %v862, %v864
      %v866 = vsel %vm858, %v845, %v848
      %v867 = vsel %vm861, %v854, 920167782
      %v868 = vsel %vm860, %v851, %v867
      %v869 = vsel %vm859, %v866, %v868
      %v870 = vsel %vm858, %v848, %v851
      %v871 = vsel %vm861, %v857, 1326507024
      %v872 = vsel %vm860, %v854, %v871
      %v873 = vsel %vm859, %v870, %v872
      %v874 = vshll.u32 %v834, 8
      %v875 = vmul.u32.u64.compose %v874, %v873
      %v876 = vextract.low.u32 %v875
      %v877 = vextract.high.u32 %v875
      %v878 = vmul.u32.u64.compose %v874, %v869
      %v879 = vextract.low.u32 %v878
      %v880 = vextract.high.u32 %v878
      %v881 = vmul.u32 %v874, %v865
      %v882 = vadd.s32 %v877, %v879
      %vm883 = vc.u32 %v877, %v879
      %v884 = vadd.s32 %v880, 1
      %v885 = vsel %vm883, %v884, %v880
      %v886 = vadd.s32 %v881, %v885
      %v887 = vadd.s32 %v886, 536870912
      %v888 = vshrl.u32 %v887, 30
      %v889 = vshll.u32 %v888, 30
      %v890 = vsub.s32 %v886, %v889
      %vm891 = vcmp.lt.s32.totalorder %v890, 0
      %v892 = vsub.s32 0, %v890
      %v893 = vsel %vm891, %v892, %v890
      %v894 = vclz %v893
      %v895 = vsub.s32 %v894, 2
      %vm896 = vcmp.gt.s32.totalorder 0, %v895
      %v897 = vsel %vm896, 0, %v895
      %v898 = vsub.s32 32, %v897
      %v899 = vshll.u32 %v890, %v897
      %v900 = vshrl.u32 %v882, %v898
      %v901 = vor.u32 %v899, %v900
      %v902 = vsub.s32 4294967266, %v897
      %v903 = vadd.s32 %v902, 127
      %v904 = vshll.u32 %v903, 23
      %v905 = vor.u32 4788187, %v904
      %v906 = vand.u32 2147483647, %v905
      %v908 = vcvt.s32.f32 %v901
      %v909 = vmul.f32 %v908, %v906
      %v910 = vxor.u32 %v909, 2147483648
      %v911 = vsel %vm828, %v910, %v909
      %v912 = vsub.s32 4, %v888
      %v913 = vsel %vm828, %v912, %v888
      %v914 = vsel %vm827, %v823, %v911
      %v915 = vsel %vm827, 0, %v913
      %v916 = vcosq.f32.pop %v914
      %v917 = vsinq.f32.pop %v914
      %vm918 = vweird.f32 %v823
      %v919 = vadd.s32 %v915, 3
      %v920 = vand.u32 %v919, 3
      %vm921 = vcmp.lt.s32.totalorder %v920, 2
      %vm922 = vcmp.eq.s32.totalorder %v920, 0
      %v923 = vxor.u32 %v917, 2147483648
      %v924 = vsel %vm922, %v916, %v923
      %vm925 = vcmp.eq.s32.totalorder %v920, 2
      %v926 = vxor.u32 %v916, 2147483648
      %v927 = vsel %vm925, %v926, %v917
      %v928 = vsel %vm921, %v924, %v927
      %v929 = vsel %vm918, nan, %v928
      %v930 = vld [vmem:[%s6] sm:$0xff]
      %v931 = vld [vmem:[%s6 + $0x8] sm:$0xff]
      %v932 = vld [vmem:[%s6 + $0x10] sm:$0xff]
      %v933 = vld [vmem:[%s6 + $0x18] sm:$0xff]
      %v934 = vld [vmem:[%s6 + $0x20] sm:$0xff]
      %v935 = vld [vmem:[%s6 + $0x28] sm:$0xff]
      %v936 = vld [vmem:[%s6 + $0x30] sm:$0xff]
      %v937 = vld [vmem:[%s6 + $0x38] sm:$0xff]
      %v938 = vld [vmem:[%s7] sm:$0x1]
      %v940 = vlaneseq
      %v941 = vshrl.u32 %v940, 7
      %v942 = vsub.s32 0, %v941
      %v943 = vrot.slane %v938, %v942
      %v946 = vsel %vm752, %v929, 0
      %948 = vmatprep.subr.mxu0 0.0
      %949 = vmatpush1.msra.mxu0 %v930
      %950 = vmatprep.subr.mxu0 0.0
      %951 = vmatpush1.msra.mxu0 %v931
      %952 = vmatprep.subr.mxu0 0.0
      %953 = vmatpush1.msra.mxu0 %v932
      %954 = vmatprep.subr.mxu0 0.0
      %955 = vmatpush1.msra.mxu0 %v933
      %956 = vmatprep.subr.mxu0 0.0
      %957 = vmatpush1.msra.mxu0 %v934
      %958 = vmatprep.subr.mxu0 0.0
      %959 = vmatpush1.msra.mxu0 %v935
      %960 = vmatprep.subr.mxu0 0.0
      %961 = vmatpush1.msra.mxu0 %v936
      %962 = vmatprep.subr.mxu0 0.0
      %963 = vmatpush1.msra.mxu0 %v937
      %964 = vmatprep.subr.mxu0 0.0
      %965 = vmatpush1.msra.mxu0 0.0
      %966 = vmatprep.subr.mxu0 0.0
      %967 = vmatpush1.msra.mxu0 0.0
      %968 = vmatprep.subr.mxu0 0.0
      %969 = vmatpush1.msra.mxu0 0.0
      %970 = vmatprep.subr.mxu0 0.0
      %971 = vmatpush1.msra.mxu0 0.0
      %972 = vmatprep.subr.mxu0 0.0
      %973 = vmatpush1.msra.mxu0 0.0
      %974 = vmatprep.subr.mxu0 0.0
      %975 = vmatpush1.msra.mxu0 0.0
      %976 = vmatprep.subr.mxu0 0.0
      %977 = vmatpush1.msra.mxu0 0.0
      %978 = vmatprep.subr.mxu0 0.0
      %979 = vmatpush1.msra.mxu0 0.0
      %980 = vmatprep.subr.mxu0 0.0
      %981 = vmatpush1.msra.mxu0 0.0
      %982 = vmatprep.subr.mxu0 0.0
      %983 = vmatpush1.msra.mxu0 0.0
      %984 = vmatprep.subr.mxu0 0.0
      %985 = vmatpush1.msra.mxu0 0.0
      %986 = vmatprep.subr.mxu0 0.0
      %987 = vmatpush1.msra.mxu0 0.0
      %988 = vmatprep.subr.mxu0 0.0
      %989 = vmatpush1.msra.mxu0 0.0
      %990 = vmatprep.subr.mxu0 0.0
      %991 = vmatpush1.msra.mxu0 0.0
      %992 = vmatprep.subr.mxu0 0.0
      %993 = vmatpush1.msra.mxu0 0.0
      %994 = vmatprep.subr.mxu0 0.0
      %995 = vmatpush1.msra.mxu0 0.0
      %996 = vmatprep.subr.mxu0 0.0
      %997 = vmatpush1.msra.mxu0 0.0
      %998 = vmatprep.subr.mxu0 0.0
      %999 = vmatpush1.msra.mxu0 0.0
      %1000 = vmatprep.subr.mxu0 0.0
      %1001 = vmatpush1.msra.mxu0 0.0
      %1002 = vmatprep.subr.mxu0 0.0
      %1003 = vmatpush1.msra.mxu0 0.0
      %1004 = vmatprep.subr.mxu0 0.0
      %1005 = vmatpush1.msra.mxu0 0.0
      %1006 = vmatprep.subr.mxu0 0.0
      %1007 = vmatpush1.msra.mxu0 0.0
      %1008 = vmatprep.subr.mxu0 0.0
      %1009 = vmatpush1.msra.mxu0 0.0
      %1010 = vmatprep.subr.mxu0 0.0
      %1011 = vmatpush1.msra.mxu0 0.0
      %1012 = vmatprep.mubr.f32.mxu0 0.0
      %1013 = vmatmul.mubr.f32.gmra.mrb[0].mxu0 %v946
      %v1014 = vpop.f32.mrb[0].mxu0
      %v1015 = vadd.f32 %v943, %v1014
      %v1016 = vpop.f32.mrb[0].mxu0
      %1017 = vdwg.mxu0
      %v1018 = vld [vmem:[%s8] sm:$0xff]
      %v1019 = vld [vmem:[%s8 + $0x8] sm:$0xff]
      %v1020 = vld [vmem:[%s8 + $0x10] sm:$0xff]
      %v1021 = vld [vmem:[%s8 + $0x18] sm:$0xff]
      %v1022 = vld [vmem:[%s9] sm:$0x1]
      %v1024 = vlaneseq
      %v1025 = vshrl.u32 %v1024, 7
      %v1026 = vsub.s32 0, %v1025
      %v1027 = vrot.slane %v1022, %v1026
      %vm1029 = vcmask 261120
      %v1031 = vsel %vm1029, %v1015, 0
      %1033 = vmatprep.subr.mxu0 0.0
      %1034 = vmatpush1.msra.mxu0 %v1018
      %1035 = vmatprep.subr.mxu0 0.0
      %1036 = vmatpush1.msra.mxu0 %v1019
      %1037 = vmatprep.subr.mxu0 0.0
      %1038 = vmatpush1.msra.mxu0 %v1020
      %1039 = vmatprep.subr.mxu0 0.0
      %1040 = vmatpush1.msra.mxu0 %v1021
      %1041 = vmatprep.subr.mxu0 0.0
      %1042 = vmatpush1.msra.mxu0 0.0
      %1043 = vmatprep.subr.mxu0 0.0
      %1044 = vmatpush1.msra.mxu0 0.0
      %1045 = vmatprep.subr.mxu0 0.0
      %1046 = vmatpush1.msra.mxu0 0.0
      %1047 = vmatprep.subr.mxu0 0.0
      %1048 = vmatpush1.msra.mxu0 0.0
      %1049 = vmatprep.subr.mxu0 0.0
      %1050 = vmatpush1.msra.mxu0 0.0
      %1051 = vmatprep.subr.mxu0 0.0
      %1052 = vmatpush1.msra.mxu0 0.0
      %1053 = vmatprep.subr.mxu0 0.0
      %1054 = vmatpush1.msra.mxu0 0.0
      %1055 = vmatprep.subr.mxu0 0.0
      %1056 = vmatpush1.msra.mxu0 0.0
      %1057 = vmatprep.subr.mxu0 0.0
      %1058 = vmatpush1.msra.mxu0 0.0
      %1059 = vmatprep.subr.mxu0 0.0
      %1060 = vmatpush1.msra.mxu0 0.0
      %1061 = vmatprep.subr.mxu0 0.0
      %1062 = vmatpush1.msra.mxu0 0.0
      %1063 = vmatprep.subr.mxu0 0.0
      %1064 = vmatpush1.msra.mxu0 0.0
      %1065 = vmatprep.subr.mxu0 0.0
      %1066 = vmatpush1.msra.mxu0 0.0
      %1067 = vmatprep.subr.mxu0 0.0
      %1068 = vmatpush1.msra.mxu0 0.0
      %1069 = vmatprep.subr.mxu0 0.0
      %1070 = vmatpush1.msra.mxu0 0.0
      %1071 = vmatprep.subr.mxu0 0.0
      %1072 = vmatpush1.msra.mxu0 0.0
      %1073 = vmatprep.subr.mxu0 0.0
      %1074 = vmatpush1.msra.mxu0 0.0
      %1075 = vmatprep.subr.mxu0 0.0
      %1076 = vmatpush1.msra.mxu0 0.0
      %1077 = vmatprep.subr.mxu0 0.0
      %1078 = vmatpush1.msra.mxu0 0.0
      %1079 = vmatprep.subr.mxu0 0.0
      %1080 = vmatpush1.msra.mxu0 0.0
      %1081 = vmatprep.subr.mxu0 0.0
      %1082 = vmatpush1.msra.mxu0 0.0
      %1083 = vmatprep.subr.mxu0 0.0
      %1084 = vmatpush1.msra.mxu0 0.0
      %1085 = vmatprep.subr.mxu0 0.0
      %1086 = vmatpush1.msra.mxu0 0.0
      %1087 = vmatprep.subr.mxu0 0.0
      %1088 = vmatpush1.msra.mxu0 0.0
      %1089 = vmatprep.subr.mxu0 0.0
      %1090 = vmatpush1.msra.mxu0 0.0
      %1091 = vmatprep.subr.mxu0 0.0
      %1092 = vmatpush1.msra.mxu0 0.0
      %1093 = vmatprep.subr.mxu0 0.0
      %1094 = vmatpush1.msra.mxu0 0.0
      %1095 = vmatprep.subr.mxu0 0.0
      %1096 = vmatpush1.msra.mxu0 0.0
      %1097 = vmatprep.mubr.f32.mxu0 0.0
      %1098 = vmatmul.mubr.f32.gmra.mrb[0].mxu0 %v1031
      %v1099 = vpop.f32.mrb[0].mxu0
      %v1100 = vadd.f32 %v1027, %v1099
      %v1101 = vpop.f32.mrb[0].mxu0
      %1102 = vdwg.mxu0
      %v1103 = vand.u32 2147483647, %v1100
      %vm1104 = vcmp.le.f32.partialorder %v1103, 0.7853982
      %vm1105 = vcmp.lt.s32.totalorder %v1100, 0
      %v1106 = vand.u32 %v1100, 2139095040
      %v1107 = vshrl.u32 %v1106, 23
      %v1108 = vsub.s32 %v1107, 127
      %v1109 = vand.u32 2147483647, %v1100
      %v1110 = vand.u32 %v1109, 8388607
      %v1111 = vor.u32 %v1110, 8388608
      %v1112 = vsub.s32 0, %v1111
      %v1113 = vadd.s32 %v1108, 1
      %vm1114 = vcmp.gt.s32.totalorder %v1113, 0
      %v1115 = vsel %vm1114, %v1113, 0
      %v1116 = vshrl.u32 %v1115, 5
      %v1117 = vand.u32 %v1115, 31
      %v1118 = vsub.s32 32, %v1117
      %v1119 = vshrl.u32 683565275, %v1118
      %v1120 = vshll.u32 683565275, %v1117
      %v1121 = vshrl.u32 2475754826, %v1118
      %v1122 = vor.u32 %v1120, %v1121
      %v1123 = vshll.u32 2475754826, %v1117
      %v1124 = vshrl.u32 2131351028, %v1118
      %v1125 = vor.u32 %v1123, %v1124
      %v1126 = vshll.u32 2131351028, %v1117
      %v1127 = vshrl.u32 2102212464, %v1118
      %v1128 = vor.u32 %v1126, %v1127
      %v1129 = vshll.u32 2102212464, %v1117
      %v1130 = vshrl.u32 920167782, %v1118
      %v1131 = vor.u32 %v1129, %v1130
      %v1132 = vshll.u32 920167782, %v1117
      %v1133 = vshrl.u32 1326507024, %v1118
      %v1134 = vor.u32 %v1132, %v1133
      %vm1135 = vcmp.lt.s32.totalorder %v1116, 1
      %vm1136 = vcmp.lt.s32.totalorder %v1116, 2
      %vm1137 = vcmp.lt.s32.totalorder %v1116, 3
      %vm1138 = vcmp.lt.s32.totalorder %v1116, 4
      %v1139 = vsel %vm1135, %v1119, %v1122
      %v1140 = vsel %vm1138, %v1128, 2102212464
      %v1141 = vsel %vm1137, %v1125, %v1140
      %v1142 = vsel %vm1136, %v1139, %v1141
      %v1143 = vsel %vm1135, %v1122, %v1125
      %v1144 = vsel %vm1138, %v1131, 920167782
      %v1145 = vsel %vm1137, %v1128, %v1144
      %v1146 = vsel %vm1136, %v1143, %v1145
      %v1147 = vsel %vm1135, %v1125, %v1128
      %v1148 = vsel %vm1138, %v1134, 1326507024
      %v1149 = vsel %vm1137, %v1131, %v1148
      %v1150 = vsel %vm1136, %v1147, %v1149
      %v1151 = vshll.u32 %v1111, 8
      %v1152 = vmul.u32.u64.compose %v1151, %v1150
      %v1153 = vextract.low.u32 %v1152
      %v1154 = vextract.high.u32 %v1152
      %v1155 = vmul.u32.u64.compose %v1151, %v1146
      %v1156 = vextract.low.u32 %v1155
      %v1157 = vextract.high.u32 %v1155
      %v1158 = vmul.u32 %v1151, %v1142
      %v1159 = vadd.s32 %v1154, %v1156
      %vm1160 = vc.u32 %v1154, %v1156
      %v1161 = vadd.s32 %v1157, 1
      %v1162 = vsel %vm1160, %v1161, %v1157
      %v1163 = vadd.s32 %v1158, %v1162
      %v1164 = vadd.s32 %v1163, 536870912
      %v1165 = vshrl.u32 %v1164, 30
      %v1166 = vshll.u32 %v1165, 30
      %v1167 = vsub.s32 %v1163, %v1166
      %vm1168 = vcmp.lt.s32.totalorder %v1167, 0
      %v1169 = vsub.s32 0, %v1167
      %v1170 = vsel %vm1168, %v1169, %v1167
      %v1171 = vclz %v1170
      %v1172 = vsub.s32 %v1171, 2
      %vm1173 = vcmp.gt.s32.totalorder 0, %v1172
      %v1174 = vsel %vm1173, 0, %v1172
      %v1175 = vsub.s32 32, %v1174
      %v1176 = vshll.u32 %v1167, %v1174
      %v1177 = vshrl.u32 %v1159, %v1175
      %v1178 = vor.u32 %v1176, %v1177
      %v1179 = vsub.s32 4294967266, %v1174
      %v1180 = vadd.s32 %v1179, 127
      %v1181 = vshll.u32 %v1180, 23
      %v1182 = vor.u32 4788187, %v1181
      %v1183 = vand.u32 2147483647, %v1182
      %v1185 = vcvt.s32.f32 %v1178
      %v1186 = vmul.f32 %v1185, %v1183
      %v1187 = vxor.u32 %v1186, 2147483648
      %v1188 = vsel %vm1105, %v1187, %v1186
      %v1189 = vsub.s32 4, %v1165
      %v1190 = vsel %vm1105, %v1189, %v1165
      %v1191 = vsel %vm1104, %v1100, %v1188
      %v1192 = vsel %vm1104, 0, %v1190
      %v1193 = vcosq.f32.pop %v1191
      %v1194 = vsinq.f32.pop %v1191
      %vm1195 = vweird.f32 %v1100
      %v1196 = vadd.s32 %v1192, 3
      %v1197 = vand.u32 %v1196, 3
      %vm1198 = vcmp.lt.s32.totalorder %v1197, 2
      %vm1199 = vcmp.eq.s32.totalorder %v1197, 0
      %v1200 = vxor.u32 %v1194, 2147483648
      %v1201 = vsel %vm1199, %v1193, %v1200
      %vm1202 = vcmp.eq.s32.totalorder %v1197, 2
      %v1203 = vxor.u32 %v1193, 2147483648
      %v1204 = vsel %vm1202, %v1203, %v1194
      %v1205 = vsel %vm1198, %v1201, %v1204
      %v1206 = vsel %vm1195, nan, %v1205
      %v1207 = vld [vmem:[%s10] sm:$0xff]
      %v1208 = vld [vmem:[%s10 + $0x8] sm:$0xff]
      %v1209 = vld [vmem:[%s10 + $0x10] sm:$0xff]
      %v1210 = vld [vmem:[%s10 + $0x18] sm:$0xff]
      %v1211 = vld [vmem:[#allocation2] sm:$0x1]
      %v1213 = vlaneseq
      %v1214 = vshrl.u32 %v1213, 7
      %v1215 = vsub.s32 0, %v1214
      %v1216 = vrot.slane %v1211, %v1215
      %v1219 = vsel %vm1029, %v1206, 0
      %1221 = vmatprep.subr.mxu0 0.0
      %1222 = vmatpush1.msra.mxu0 %v1207
      %1223 = vmatprep.subr.mxu0 0.0
      %1224 = vmatpush1.msra.mxu0 %v1208
      %1225 = vmatprep.subr.mxu0 0.0
      %1226 = vmatpush1.msra.mxu0 %v1209
      %1227 = vmatprep.subr.mxu0 0.0
      %1228 = vmatpush1.msra.mxu0 %v1210
      %1229 = vmatprep.subr.mxu0 0.0
      %1230 = vmatpush1.msra.mxu0 0.0
      %1231 = vmatprep.subr.mxu0 0.0
      %1232 = vmatpush1.msra.mxu0 0.0
      %1233 = vmatprep.subr.mxu0 0.0
      %1234 = vmatpush1.msra.mxu0 0.0
      %1235 = vmatprep.subr.mxu0 0.0
      %1236 = vmatpush1.msra.mxu0 0.0
      %1237 = vmatprep.subr.mxu0 0.0
      %1238 = vmatpush1.msra.mxu0 0.0
      %1239 = vmatprep.subr.mxu0 0.0
      %1240 = vmatpush1.msra.mxu0 0.0
      %1241 = vmatprep.subr.mxu0 0.0
      %1242 = vmatpush1.msra.mxu0 0.0
      %1243 = vmatprep.subr.mxu0 0.0
      %1244 = vmatpush1.msra.mxu0 0.0
      %1245 = vmatprep.subr.mxu0 0.0
      %1246 = vmatpush1.msra.mxu0 0.0
      %1247 = vmatprep.subr.mxu0 0.0
      %1248 = vmatpush1.msra.mxu0 0.0
      %1249 = vmatprep.subr.mxu0 0.0
      %1250 = vmatpush1.msra.mxu0 0.0
      %1251 = vmatprep.subr.mxu0 0.0
      %1252 = vmatpush1.msra.mxu0 0.0
      %1253 = vmatprep.subr.mxu0 0.0
      %1254 = vmatpush1.msra.mxu0 0.0
      %1255 = vmatprep.subr.mxu0 0.0
      %1256 = vmatpush1.msra.mxu0 0.0
      %1257 = vmatprep.subr.mxu0 0.0
      %1258 = vmatpush1.msra.mxu0 0.0
      %1259 = vmatprep.subr.mxu0 0.0
      %1260 = vmatpush1.msra.mxu0 0.0
      %1261 = vmatprep.subr.mxu0 0.0
      %1262 = vmatpush1.msra.mxu0 0.0
      %1263 = vmatprep.subr.mxu0 0.0
      %1264 = vmatpush1.msra.mxu0 0.0
      %1265 = vmatprep.subr.mxu0 0.0
      %1266 = vmatpush1.msra.mxu0 0.0
      %1267 = vmatprep.subr.mxu0 0.0
      %1268 = vmatpush1.msra.mxu0 0.0
      %1269 = vmatprep.subr.mxu0 0.0
      %1270 = vmatpush1.msra.mxu0 0.0
      %1271 = vmatprep.subr.mxu0 0.0
      %1272 = vmatpush1.msra.mxu0 0.0
      %1273 = vmatprep.subr.mxu0 0.0
      %1274 = vmatpush1.msra.mxu0 0.0
      %1275 = vmatprep.subr.mxu0 0.0
      %1276 = vmatpush1.msra.mxu0 0.0
      %1277 = vmatprep.subr.mxu0 0.0
      %1278 = vmatpush1.msra.mxu0 0.0
      %1279 = vmatprep.subr.mxu0 0.0
      %1280 = vmatpush1.msra.mxu0 0.0
      %1281 = vmatprep.subr.mxu0 0.0
      %1282 = vmatpush1.msra.mxu0 0.0
      %1283 = vmatprep.subr.mxu0 0.0
      %1284 = vmatpush1.msra.mxu0 0.0
      %1285 = vmatprep.mubr.f32.mxu0 0.0
      %1286 = vmatmul.mubr.f32.gmra.mrb[0].mxu0 %v1219
      %v1287 = vpop.f32.mrb[0].mxu0
      %v1288 = vadd.f32 %v1216, %v1287
      %v1289 = vpop.f32.mrb[0].mxu0
      %1290 = vdwg.mxu0
      %v1291 = vld [vmem:[%s16] sm:$0x1]
      %v1292 = vand.u32 2147483647, %v1100
      %vm1293 = vcmp.le.f32.partialorder %v1292, 0.7853982
      %vm1294 = vcmp.lt.s32.totalorder %v1100, 0
      %v1295 = vand.u32 %v1100, 2139095040
      %v1296 = vshrl.u32 %v1295, 23
      %v1297 = vsub.s32 %v1296, 127
      %v1298 = vand.u32 2147483647, %v1100
      %v1299 = vand.u32 %v1298, 8388607
      %v1300 = vor.u32 %v1299, 8388608
      %v1301 = vsub.s32 0, %v1300
      %v1302 = vadd.s32 %v1297, 1
      %vm1303 = vcmp.gt.s32.totalorder %v1302, 0
      %v1304 = vsel %vm1303, %v1302, 0
      %v1305 = vshrl.u32 %v1304, 5
      %v1306 = vand.u32 %v1304, 31
      %v1307 = vsub.s32 32, %v1306
      %v1308 = vshrl.u32 683565275, %v1307
      %v1309 = vshll.u32 683565275, %v1306
      %v1310 = vshrl.u32 2475754826, %v1307
      %v1311 = vor.u32 %v1309, %v1310
      %v1312 = vshll.u32 2475754826, %v1306
      %v1313 = vshrl.u32 2131351028, %v1307
      %v1314 = vor.u32 %v1312, %v1313
      %v1315 = vshll.u32 2131351028, %v1306
      %v1316 = vshrl.u32 2102212464, %v1307
      %v1317 = vor.u32 %v1315, %v1316
      %v1318 = vshll.u32 2102212464, %v1306
      %v1319 = vshrl.u32 920167782, %v1307
      %v1320 = vor.u32 %v1318, %v1319
      %v1321 = vshll.u32 920167782, %v1306
      %v1322 = vshrl.u32 1326507024, %v1307
      %v1323 = vor.u32 %v1321, %v1322
      %vm1324 = vcmp.lt.s32.totalorder %v1305, 1
      %vm1325 = vcmp.lt.s32.totalorder %v1305, 2
      %vm1326 = vcmp.lt.s32.totalorder %v1305, 3
      %vm1327 = vcmp.lt.s32.totalorder %v1305, 4
      %v1328 = vsel %vm1324, %v1308, %v1311
      %v1329 = vsel %vm1327, %v1317, 2102212464
      %v1330 = vsel %vm1326, %v1314, %v1329
      %v1331 = vsel %vm1325, %v1328, %v1330
      %v1332 = vsel %vm1324, %v1311, %v1314
      %v1333 = vsel %vm1327, %v1320, 920167782
      %v1334 = vsel %vm1326, %v1317, %v1333
      %v1335 = vsel %vm1325, %v1332, %v1334
      %v1336 = vsel %vm1324, %v1314, %v1317
      %v1337 = vsel %vm1327, %v1323, 1326507024
      %v1338 = vsel %vm1326, %v1320, %v1337
      %v1339 = vsel %vm1325, %v1336, %v1338
      %v1340 = vshll.u32 %v1300, 8
      %v1341 = vmul.u32.u64.compose %v1340, %v1339
      %v1342 = vextract.low.u32 %v1341
      %v1343 = vextract.high.u32 %v1341
      %v1344 = vmul.u32.u64.compose %v1340, %v1335
      %v1345 = vextract.low.u32 %v1344
      %v1346 = vextract.high.u32 %v1344
      %v1347 = vmul.u32 %v1340, %v1331
      %v1348 = vadd.s32 %v1343, %v1345
      %vm1349 = vc.u32 %v1343, %v1345
      %v1350 = vadd.s32 %v1346, 1
      %v1351 = vsel %vm1349, %v1350, %v1346
      %v1352 = vadd.s32 %v1347, %v1351
      %v1353 = vadd.s32 %v1352, 536870912
      %v1354 = vshrl.u32 %v1353, 30
      %v1355 = vshll.u32 %v1354, 30
      %v1356 = vsub.s32 %v1352, %v1355
      %vm1357 = vcmp.lt.s32.totalorder %v1356, 0
      %v1358 = vsub.s32 0, %v1356
      %v1359 = vsel %vm1357, %v1358, %v1356
      %v1360 = vclz %v1359
      %v1361 = vsub.s32 %v1360, 2
      %vm1362 = vcmp.gt.s32.totalorder 0, %v1361
      %v1363 = vsel %vm1362, 0, %v1361
      %v1364 = vsub.s32 32, %v1363
      %v1365 = vshll.u32 %v1356, %v1363
      %v1366 = vshrl.u32 %v1348, %v1364
      %v1367 = vor.u32 %v1365, %v1366
      %v1368 = vsub.s32 4294967266, %v1363
      %v1369 = vadd.s32 %v1368, 127
      %v1370 = vshll.u32 %v1369, 23
      %v1371 = vor.u32 4788187, %v1370
      %v1372 = vand.u32 2147483647, %v1371
      %v1374 = vcvt.s32.f32 %v1367
      %v1375 = vmul.f32 %v1374, %v1372
      %v1376 = vxor.u32 %v1375, 2147483648
      %v1377 = vsel %vm1294, %v1376, %v1375
      %v1378 = vsub.s32 4, %v1354
      %v1379 = vsel %vm1294, %v1378, %v1354
      %v1380 = vsel %vm1293, %v1100, %v1377
      %v1381 = vsel %vm1293, 0, %v1379
      %v1382 = vcosq.f32.pop %v1380
      %v1383 = vsinq.f32.pop %v1380
      %vm1384 = vweird.f32 %v1100
      %v1385 = vand.u32 %v1381, 3
      %vm1386 = vcmp.lt.s32.totalorder %v1385, 2
      %vm1387 = vcmp.eq.s32.totalorder %v1385, 0
      %v1388 = vxor.u32 %v1383, 2147483648
      %v1389 = vsel %vm1387, %v1382, %v1388
      %vm1390 = vcmp.eq.s32.totalorder %v1385, 2
      %v1391 = vxor.u32 %v1382, 2147483648
      %v1392 = vsel %vm1390, %v1391, %v1383
      %v1393 = vsel %vm1386, %v1389, %v1392
      %v1394 = vsel %vm1384, nan, %v1393
      %v1396 = vlaneseq
      %v1397 = vshrl.u32 %v1396, 7
      %v1398 = vsub.s32 0, %v1397
      %v1399 = vrot.slane %v1291, %v1398
      %v1401 = vmul.f32 %v1399, %v1394
      %v1402 = vld [vmem:[%s15] sm:$0xff]
      %v1403 = vld [vmem:[%s15 + $0x8] sm:$0xff]
      %v1404 = vld [vmem:[%s15 + $0x10] sm:$0xff]
      %v1405 = vld [vmem:[%s15 + $0x18] sm:$0xff]
      %v1407 = vsel %vm1029, %v1401, 0
      %1409 = vmatprep.subr.mxu0 0.0
      %1410 = vmatpush1.msra.mxu0 %v1402
      %1411 = vmatprep.subr.mxu0 0.0
      %1412 = vmatpush1.msra.mxu0 %v1403
      %1413 = vmatprep.subr.mxu0 0.0
      %1414 = vmatpush1.msra.mxu0 %v1404
      %1415 = vmatprep.subr.mxu0 0.0
      %1416 = vmatpush1.msra.mxu0 %v1405
      %1417 = vmatprep.subr.mxu0 0.0
      %1418 = vmatpush1.msra.mxu0 0.0
      %1419 = vmatprep.subr.mxu0 0.0
      %1420 = vmatpush1.msra.mxu0 0.0
      %1421 = vmatprep.subr.mxu0 0.0
      %1422 = vmatpush1.msra.mxu0 0.0
      %1423 = vmatprep.subr.mxu0 0.0
      %1424 = vmatpush1.msra.mxu0 0.0
      %1425 = vmatprep.subr.mxu0 0.0
      %1426 = vmatpush1.msra.mxu0 0.0
      %1427 = vmatprep.subr.mxu0 0.0
      %1428 = vmatpush1.msra.mxu0 0.0
      %1429 = vmatprep.subr.mxu0 0.0
      %1430 = vmatpush1.msra.mxu0 0.0
      %1431 = vmatprep.subr.mxu0 0.0
      %1432 = vmatpush1.msra.mxu0 0.0
      %1433 = vmatprep.subr.mxu0 0.0
      %1434 = vmatpush1.msra.mxu0 0.0
      %1435 = vmatprep.subr.mxu0 0.0
      %1436 = vmatpush1.msra.mxu0 0.0
      %1437 = vmatprep.subr.mxu0 0.0
      %1438 = vmatpush1.msra.mxu0 0.0
      %1439 = vmatprep.subr.mxu0 0.0
      %1440 = vmatpush1.msra.mxu0 0.0
      %1441 = vmatprep.subr.mxu0 0.0
      %1442 = vmatpush1.msra.mxu0 0.0
      %1443 = vmatprep.subr.mxu0 0.0
      %1444 = vmatpush1.msra.mxu0 0.0
      %1445 = vmatprep.subr.mxu0 0.0
      %1446 = vmatpush1.msra.mxu0 0.0
      %1447 = vmatprep.subr.mxu0 0.0
      %1448 = vmatpush1.msra.mxu0 0.0
      %1449 = vmatprep.subr.mxu0 0.0
      %1450 = vmatpush1.msra.mxu0 0.0
      %1451 = vmatprep.subr.mxu0 0.0
      %1452 = vmatpush1.msra.mxu0 0.0
      %1453 = vmatprep.subr.mxu0 0.0
      %1454 = vmatpush1.msra.mxu0 0.0
      %1455 = vmatprep.subr.mxu0 0.0
      %1456 = vmatpush1.msra.mxu0 0.0
      %1457 = vmatprep.subr.mxu0 0.0
      %1458 = vmatpush1.msra.mxu0 0.0
      %1459 = vmatprep.subr.mxu0 0.0
      %1460 = vmatpush1.msra.mxu0 0.0
      %1461 = vmatprep.subr.mxu0 0.0
      %1462 = vmatpush1.msra.mxu0 0.0
      %1463 = vmatprep.subr.mxu0 0.0
      %1464 = vmatpush1.msra.mxu0 0.0
      %1465 = vmatprep.subr.mxu0 0.0
      %1466 = vmatpush1.msra.mxu0 0.0
      %1467 = vmatprep.subr.mxu0 0.0
      %1468 = vmatpush1.msra.mxu0 0.0
      %1469 = vmatprep.subr.mxu0 0.0
      %1470 = vmatpush1.msra.mxu0 0.0
      %1471 = vmatprep.subr.mxu0 0.0
      %1472 = vmatpush1.msra.mxu0 0.0
      %1473 = vmatprep.mubr.f32.mxu0 0.0
      %1474 = vmatmul.mubr.f32.gmra.mrb[0].mxu0 %v1407
      %v1475 = vpop.f32.mrb[0].mxu0
      %v1476 = vadd.f32 0.0, %v1475
      %v1477 = vpop.f32.mrb[0].mxu0
      %1478 = vdwg.mxu0
      %v1479 = vld [vmem:[%s14] sm:$0xff]
      %v1480 = vld [vmem:[%s14 + $0x8] sm:$0xff]
      %v1481 = vld [vmem:[%s14 + $0x10] sm:$0xff]
      %v1482 = vld [vmem:[%s14 + $0x18] sm:$0xff]
      %v1484 = vsel %vm1029, %v1476, 0
      %1486 = vmatprep.subr.mxu0 0.0
      %1487 = vmatpush1.msra.mxu0 %v1479
      %1488 = vmatprep.subr.mxu0 0.0
      %1489 = vmatpush1.msra.mxu0 %v1480
      %1490 = vmatprep.subr.mxu0 0.0
      %1491 = vmatpush1.msra.mxu0 %v1481
      %1492 = vmatprep.subr.mxu0 0.0
      %1493 = vmatpush1.msra.mxu0 %v1482
      %1494 = vmatprep.subr.mxu0 0.0
      %1495 = vmatpush1.msra.mxu0 0.0
      %1496 = vmatprep.subr.mxu0 0.0
      %1497 = vmatpush1.msra.mxu0 0.0
      %1498 = vmatprep.subr.mxu0 0.0
      %1499 = vmatpush1.msra.mxu0 0.0
      %1500 = vmatprep.subr.mxu0 0.0
      %1501 = vmatpush1.msra.mxu0 0.0
      %1502 = vmatprep.subr.mxu0 0.0
      %1503 = vmatpush1.msra.mxu0 0.0
      %1504 = vmatprep.subr.mxu0 0.0
      %1505 = vmatpush1.msra.mxu0 0.0
      %1506 = vmatprep.subr.mxu0 0.0
      %1507 = vmatpush1.msra.mxu0 0.0
      %1508 = vmatprep.subr.mxu0 0.0
      %1509 = vmatpush1.msra.mxu0 0.0
      %1510 = vmatprep.subr.mxu0 0.0
      %1511 = vmatpush1.msra.mxu0 0.0
      %1512 = vmatprep.subr.mxu0 0.0
      %1513 = vmatpush1.msra.mxu0 0.0
      %1514 = vmatprep.subr.mxu0 0.0
      %1515 = vmatpush1.msra.mxu0 0.0
      %1516 = vmatprep.subr.mxu0 0.0
      %1517 = vmatpush1.msra.mxu0 0.0
      %1518 = vmatprep.subr.mxu0 0.0
      %1519 = vmatpush1.msra.mxu0 0.0
      %1520 = vmatprep.subr.mxu0 0.0
      %1521 = vmatpush1.msra.mxu0 0.0
      %1522 = vmatprep.subr.mxu0 0.0
      %1523 = vmatpush1.msra.mxu0 0.0
      %1524 = vmatprep.subr.mxu0 0.0
      %1525 = vmatpush1.msra.mxu0 0.0
      %1526 = vmatprep.subr.mxu0 0.0
      %1527 = vmatpush1.msra.mxu0 0.0
      %1528 = vmatprep.subr.mxu0 0.0
      %1529 = vmatpush1.msra.mxu0 0.0
      %1530 = vmatprep.subr.mxu0 0.0
      %1531 = vmatpush1.msra.mxu0 0.0
      %1532 = vmatprep.subr.mxu0 0.0
      %1533 = vmatpush1.msra.mxu0 0.0
      %1534 = vmatprep.subr.mxu0 0.0
      %1535 = vmatpush1.msra.mxu0 0.0
      %1536 = vmatprep.subr.mxu0 0.0
      %1537 = vmatpush1.msra.mxu0 0.0
      %1538 = vmatprep.subr.mxu0 0.0
      %1539 = vmatpush1.msra.mxu0 0.0
      %1540 = vmatprep.subr.mxu0 0.0
      %1541 = vmatpush1.msra.mxu0 0.0
      %1542 = vmatprep.subr.mxu0 0.0
      %1543 = vmatpush1.msra.mxu0 0.0
      %1544 = vmatprep.subr.mxu0 0.0
      %1545 = vmatpush1.msra.mxu0 0.0
      %1546 = vmatprep.subr.mxu0 0.0
      %1547 = vmatpush1.msra.mxu0 0.0
      %1548 = vmatprep.subr.mxu0 0.0
      %1549 = vmatpush1.msra.mxu0 0.0
      %1550 = vmatprep.mubr.f32.mxu0 0.0
      %1551 = vmatmul.mubr.f32.gmra.mrb[0].mxu0 %v1484
      %v1552 = vpop.f32.mrb[0].mxu0
      %v1553 = vadd.f32 0.0, %v1552
      %v1554 = vpop.f32.mrb[0].mxu0
      %1555 = vdwg.mxu0
      %v1556 = vand.u32 2147483647, %v823
      %vm1557 = vcmp.le.f32.partialorder %v1556, 0.7853982
      %vm1558 = vcmp.lt.s32.totalorder %v823, 0
      %v1559 = vand.u32 %v823, 2139095040
      %v1560 = vshrl.u32 %v1559, 23
      %v1561 = vsub.s32 %v1560, 127
      %v1562 = vand.u32 2147483647, %v823
      %v1563 = vand.u32 %v1562, 8388607
      %v1564 = vor.u32 %v1563, 8388608
      %v1565 = vsub.s32 0, %v1564
      %v1566 = vadd.s32 %v1561, 1
      %vm1567 = vcmp.gt.s32.totalorder %v1566, 0
      %v1568 = vsel %vm1567, %v1566, 0
      %v1569 = vshrl.u32 %v1568, 5
      %v1570 = vand.u32 %v1568, 31
      %v1571 = vsub.s32 32, %v1570
      %v1572 = vshrl.u32 683565275, %v1571
      %v1573 = vshll.u32 683565275, %v1570
      %v1574 = vshrl.u32 2475754826, %v1571
      %v1575 = vor.u32 %v1573, %v1574
      %v1576 = vshll.u32 2475754826, %v1570
      %v1577 = vshrl.u32 2131351028, %v1571
      %v1578 = vor.u32 %v1576, %v1577
      %v1579 = vshll.u32 2131351028, %v1570
      %v1580 = vshrl.u32 2102212464, %v1571
      %v1581 = vor.u32 %v1579, %v1580
      %v1582 = vshll.u32 2102212464, %v1570
      %v1583 = vshrl.u32 920167782, %v1571
      %v1584 = vor.u32 %v1582, %v1583
      %v1585 = vshll.u32 920167782, %v1570
      %v1586 = vshrl.u32 1326507024, %v1571
      %v1587 = vor.u32 %v1585, %v1586
      %vm1588 = vcmp.lt.s32.totalorder %v1569, 1
      %vm1589 = vcmp.lt.s32.totalorder %v1569, 2
      %vm1590 = vcmp.lt.s32.totalorder %v1569, 3
      %vm1591 = vcmp.lt.s32.totalorder %v1569, 4
      %v1592 = vsel %vm1588, %v1572, %v1575
      %v1593 = vsel %vm1591, %v1581, 2102212464
      %v1594 = vsel %vm1590, %v1578, %v1593
      %v1595 = vsel %vm1589, %v1592, %v1594
      %v1596 = vsel %vm1588, %v1575, %v1578
      %v1597 = vsel %vm1591, %v1584, 920167782
      %v1598 = vsel %vm1590, %v1581, %v1597
      %v1599 = vsel %vm1589, %v1596, %v1598
      %v1600 = vsel %vm1588, %v1578, %v1581
      %v1601 = vsel %vm1591, %v1587, 1326507024
      %v1602 = vsel %vm1590, %v1584, %v1601
      %v1603 = vsel %vm1589, %v1600, %v1602
      %v1604 = vshll.u32 %v1564, 8
      %v1605 = vmul.u32.u64.compose %v1604, %v1603
      %v1606 = vextract.low.u32 %v1605
      %v1607 = vextract.high.u32 %v1605
      %v1608 = vmul.u32.u64.compose %v1604, %v1599
      %v1609 = vextract.low.u32 %v1608
      %v1610 = vextract.high.u32 %v1608
      %v1611 = vmul.u32 %v1604, %v1595
      %v1612 = vadd.s32 %v1607, %v1609
      %vm1613 = vc.u32 %v1607, %v1609
      %v1614 = vadd.s32 %v1610, 1
      %v1615 = vsel %vm1613, %v1614, %v1610
      %v1616 = vadd.s32 %v1611, %v1615
      %v1617 = vadd.s32 %v1616, 536870912
      %v1618 = vshrl.u32 %v1617, 30
      %v1619 = vshll.u32 %v1618, 30
      %v1620 = vsub.s32 %v1616, %v1619
      %vm1621 = vcmp.lt.s32.totalorder %v1620, 0
      %v1622 = vsub.s32 0, %v1620
      %v1623 = vsel %vm1621, %v1622, %v1620
      %v1624 = vclz %v1623
      %v1625 = vsub.s32 %v1624, 2
      %vm1626 = vcmp.gt.s32.totalorder 0, %v1625
      %v1627 = vsel %vm1626, 0, %v1625
      %v1628 = vsub.s32 32, %v1627
      %v1629 = vshll.u32 %v1620, %v1627
      %v1630 = vshrl.u32 %v1612, %v1628
      %v1631 = vor.u32 %v1629, %v1630
      %v1632 = vsub.s32 4294967266, %v1627
      %v1633 = vadd.s32 %v1632, 127
      %v1634 = vshll.u32 %v1633, 23
      %v1635 = vor.u32 4788187, %v1634
      %v1636 = vand.u32 2147483647, %v1635
      %v1638 = vcvt.s32.f32 %v1631
      %v1639 = vmul.f32 %v1638, %v1636
      %v1640 = vxor.u32 %v1639, 2147483648
      %v1641 = vsel %vm1558, %v1640, %v1639
      %v1642 = vsub.s32 4, %v1618
      %v1643 = vsel %vm1558, %v1642, %v1618
      %v1644 = vsel %vm1557, %v823, %v1641
      %v1645 = vsel %vm1557, 0, %v1643
      %v1646 = vcosq.f32.pop %v1644
      %v1647 = vsinq.f32.pop %v1644
      %vm1648 = vweird.f32 %v823
      %v1649 = vand.u32 %v1645, 3
      %vm1650 = vcmp.lt.s32.totalorder %v1649, 2
      %vm1651 = vcmp.eq.s32.totalorder %v1649, 0
      %v1652 = vxor.u32 %v1647, 2147483648
      %v1653 = vsel %vm1651, %v1646, %v1652
      %vm1654 = vcmp.eq.s32.totalorder %v1649, 2
      %v1655 = vxor.u32 %v1646, 2147483648
      %v1656 = vsel %vm1654, %v1655, %v1647
      %v1657 = vsel %vm1650, %v1653, %v1656
      %v1658 = vsel %vm1648, nan, %v1657
      %v1659 = vmul.f32 %v1553, %v1658
      %v1660 = vld [vmem:[%s13] sm:$0xff]
      %v1661 = vld [vmem:[%s13 + $0x8] sm:$0xff]
      %v1662 = vld [vmem:[%s13 + $0x10] sm:$0xff]
      %v1663 = vld [vmem:[%s13 + $0x18] sm:$0xff]
      %v1664 = vld [vmem:[%s13 + $0x20] sm:$0xff]
      %v1665 = vld [vmem:[%s13 + $0x28] sm:$0xff]
      %v1666 = vld [vmem:[%s13 + $0x30] sm:$0xff]
      %v1667 = vld [vmem:[%s13 + $0x38] sm:$0xff]
      %v1669 = vsel %vm752, %v1659, 0
      %1671 = vmatprep.subr.mxu0 0.0
      %1672 = vmatpush1.msra.mxu0 %v1660
      %1673 = vmatprep.subr.mxu0 0.0
      %1674 = vmatpush1.msra.mxu0 %v1661
      %1675 = vmatprep.subr.mxu0 0.0
      %1676 = vmatpush1.msra.mxu0 %v1662
      %1677 = vmatprep.subr.mxu0 0.0
      %1678 = vmatpush1.msra.mxu0 %v1663
      %1679 = vmatprep.subr.mxu0 0.0
      %1680 = vmatpush1.msra.mxu0 %v1664
      %1681 = vmatprep.subr.mxu0 0.0
      %1682 = vmatpush1.msra.mxu0 %v1665
      %1683 = vmatprep.subr.mxu0 0.0
      %1684 = vmatpush1.msra.mxu0 %v1666
      %1685 = vmatprep.subr.mxu0 0.0
      %1686 = vmatpush1.msra.mxu0 %v1667
      %1687 = vmatprep.subr.mxu0 0.0
      %1688 = vmatpush1.msra.mxu0 0.0
      %1689 = vmatprep.subr.mxu0 0.0
      %1690 = vmatpush1.msra.mxu0 0.0
      %1691 = vmatprep.subr.mxu0 0.0
      %1692 = vmatpush1.msra.mxu0 0.0
      %1693 = vmatprep.subr.mxu0 0.0
      %1694 = vmatpush1.msra.mxu0 0.0
      %1695 = vmatprep.subr.mxu0 0.0
      %1696 = vmatpush1.msra.mxu0 0.0
      %1697 = vmatprep.subr.mxu0 0.0
      %1698 = vmatpush1.msra.mxu0 0.0
      %1699 = vmatprep.subr.mxu0 0.0
      %1700 = vmatpush1.msra.mxu0 0.0
      %1701 = vmatprep.subr.mxu0 0.0
      %1702 = vmatpush1.msra.mxu0 0.0
      %1703 = vmatprep.subr.mxu0 0.0
      %1704 = vmatpush1.msra.mxu0 0.0
      %1705 = vmatprep.subr.mxu0 0.0
      %1706 = vmatpush1.msra.mxu0 0.0
      %1707 = vmatprep.subr.mxu0 0.0
      %1708 = vmatpush1.msra.mxu0 0.0
      %1709 = vmatprep.subr.mxu0 0.0
      %1710 = vmatpush1.msra.mxu0 0.0
      %1711 = vmatprep.subr.mxu0 0.0
      %1712 = vmatpush1.msra.mxu0 0.0
      %1713 = vmatprep.subr.mxu0 0.0
      %1714 = vmatpush1.msra.mxu0 0.0
      %1715 = vmatprep.subr.mxu0 0.0
      %1716 = vmatpush1.msra.mxu0 0.0
      %1717 = vmatprep.subr.mxu0 0.0
      %1718 = vmatpush1.msra.mxu0 0.0
      %1719 = vmatprep.subr.mxu0 0.0
      %1720 = vmatpush1.msra.mxu0 0.0
      %1721 = vmatprep.subr.mxu0 0.0
      %1722 = vmatpush1.msra.mxu0 0.0
      %1723 = vmatprep.subr.mxu0 0.0
      %1724 = vmatpush1.msra.mxu0 0.0
      %1725 = vmatprep.subr.mxu0 0.0
      %1726 = vmatpush1.msra.mxu0 0.0
      %1727 = vmatprep.subr.mxu0 0.0
      %1728 = vmatpush1.msra.mxu0 0.0
      %1729 = vmatprep.subr.mxu0 0.0
      %1730 = vmatpush1.msra.mxu0 0.0
      %1731 = vmatprep.subr.mxu0 0.0
      %1732 = vmatpush1.msra.mxu0 0.0
      %1733 = vmatprep.subr.mxu0 0.0
      %1734 = vmatpush1.msra.mxu0 0.0
      %1735 = vmatprep.mubr.f32.mxu0 0.0
      %1736 = vmatmul.mubr.f32.gmra.mrb[0].mxu0 %v1669
      %v1737 = vpop.f32.mrb[0].mxu0
      %v1738 = vadd.f32 0.0, %v1737
      %v1739 = vpop.f32.mrb[0].mxu0
      %1740 = vdwg.mxu0
      %v1741 = vand.u32 2147483647, %v630
      %vm1742 = vcmp.le.f32.partialorder %v1741, 0.7853982
      %vm1743 = vcmp.lt.s32.totalorder %v630, 0
      %v1744 = vand.u32 %v630, 2139095040
      %v1745 = vshrl.u32 %v1744, 23
      %v1746 = vsub.s32 %v1745, 127
      %v1747 = vand.u32 2147483647, %v630
      %v1748 = vand.u32 %v1747, 8388607
      %v1749 = vor.u32 %v1748, 8388608
      %v1750 = vsub.s32 0, %v1749
      %v1751 = vadd.s32 %v1746, 1
      %vm1752 = vcmp.gt.s32.totalorder %v1751, 0
      %v1753 = vsel %vm1752, %v1751, 0
      %v1754 = vshrl.u32 %v1753, 5
      %v1755 = vand.u32 %v1753, 31
      %v1756 = vsub.s32 32, %v1755
      %v1757 = vshrl.u32 683565275, %v1756
      %v1758 = vshll.u32 683565275, %v1755
      %v1759 = vshrl.u32 2475754826, %v1756
      %v1760 = vor.u32 %v1758, %v1759
      %v1761 = vshll.u32 2475754826, %v1755
      %v1762 = vshrl.u32 2131351028, %v1756
      %v1763 = vor.u32 %v1761, %v1762
      %v1764 = vshll.u32 2131351028, %v1755
      %v1765 = vshrl.u32 2102212464, %v1756
      %v1766 = vor.u32 %v1764, %v1765
      %v1767 = vshll.u32 2102212464, %v1755
      %v1768 = vshrl.u32 920167782, %v1756
      %v1769 = vor.u32 %v1767, %v1768
      %v1770 = vshll.u32 920167782, %v1755
      %v1771 = vshrl.u32 1326507024, %v1756
      %v1772 = vor.u32 %v1770, %v1771
      %vm1773 = vcmp.lt.s32.totalorder %v1754, 1
      %vm1774 = vcmp.lt.s32.totalorder %v1754, 2
      %vm1775 = vcmp.lt.s32.totalorder %v1754, 3
      %vm1776 = vcmp.lt.s32.totalorder %v1754, 4
      %v1777 = vsel %vm1773, %v1757, %v1760
      %v1778 = vsel %vm1776, %v1766, 2102212464
      %v1779 = vsel %vm1775, %v1763, %v1778
      %v1780 = vsel %vm1774, %v1777, %v1779
      %v1781 = vsel %vm1773, %v1760, %v1763
      %v1782 = vsel %vm1776, %v1769, 920167782
      %v1783 = vsel %vm1775, %v1766, %v1782
      %v1784 = vsel %vm1774, %v1781, %v1783
      %v1785 = vsel %vm1773, %v1763, %v1766
      %v1786 = vsel %vm1776, %v1772, 1326507024
      %v1787 = vsel %vm1775, %v1769, %v1786
      %v1788 = vsel %vm1774, %v1785, %v1787
      %v1789 = vshll.u32 %v1749, 8
      %v1790 = vmul.u32.u64.compose %v1789, %v1788
      %v1791 = vextract.low.u32 %v1790
      %v1792 = vextract.high.u32 %v1790
      %v1793 = vmul.u32.u64.compose %v1789, %v1784
      %v1794 = vextract.low.u32 %v1793
      %v1795 = vextract.high.u32 %v1793
      %v1796 = vmul.u32 %v1789, %v1780
      %v1797 = vadd.s32 %v1792, %v1794
      %vm1798 = vc.u32 %v1792, %v1794
      %v1799 = vadd.s32 %v1795, 1
      %v1800 = vsel %vm1798, %v1799, %v1795
      %v1801 = vadd.s32 %v1796, %v1800
      %v1802 = vadd.s32 %v1801, 536870912
      %v1803 = vshrl.u32 %v1802, 30
      %v1804 = vshll.u32 %v1803, 30
      %v1805 = vsub.s32 %v1801, %v1804
      %vm1806 = vcmp.lt.s32.totalorder %v1805, 0
      %v1807 = vsub.s32 0, %v1805
      %v1808 = vsel %vm1806, %v1807, %v1805
      %v1809 = vclz %v1808
      %v1810 = vsub.s32 %v1809, 2
      %vm1811 = vcmp.gt.s32.totalorder 0, %v1810
      %v1812 = vsel %vm1811, 0, %v1810
      %v1813 = vsub.s32 32, %v1812
      %v1814 = vshll.u32 %v1805, %v1812
      %v1815 = vshrl.u32 %v1797, %v1813
      %v1816 = vor.u32 %v1814, %v1815
      %v1817 = vsub.s32 4294967266, %v1812
      %v1818 = vadd.s32 %v1817, 127
      %v1819 = vshll.u32 %v1818, 23
      %v1820 = vor.u32 4788187, %v1819
      %v1821 = vand.u32 2147483647, %v1820
      %v1823 = vcvt.s32.f32 %v1816
      %v1824 = vmul.f32 %v1823, %v1821
      %v1825 = vxor.u32 %v1824, 2147483648
      %v1826 = vsel %vm1743, %v1825, %v1824
      %v1827 = vsub.s32 4, %v1803
      %v1828 = vsel %vm1743, %v1827, %v1803
      %v1829 = vsel %vm1742, %v630, %v1826
      %v1830 = vsel %vm1742, 0, %v1828
      %v1831 = vcosq.f32.pop %v1829
      %v1832 = vsinq.f32.pop %v1829
      %vm1833 = vweird.f32 %v630
      %v1834 = vand.u32 %v1830, 3
      %vm1835 = vcmp.lt.s32.totalorder %v1834, 2
      %vm1836 = vcmp.eq.s32.totalorder %v1834, 0
      %v1837 = vxor.u32 %v1832, 2147483648
      %v1838 = vsel %vm1836, %v1831, %v1837
      %vm1839 = vcmp.eq.s32.totalorder %v1834, 2
      %v1840 = vxor.u32 %v1831, 2147483648
      %v1841 = vsel %vm1839, %v1840, %v1832
      %v1842 = vsel %vm1835, %v1838, %v1841
      %v1843 = vsel %vm1833, nan, %v1842
      %v1844 = vmul.f32 %v1738, %v1843
      %v1845 = vld [vmem:[%s12] sm:$0xff]
      %v1846 = vld [vmem:[%s12 + $0x8] sm:$0xff]
      %v1847 = vld [vmem:[%s12 + $0x10] sm:$0xff]
      %v1848 = vld [vmem:[%s12 + $0x18] sm:$0xff]
      %v1849 = vld [vmem:[%s12 + $0x20] sm:$0xff]
      %v1850 = vld [vmem:[%s12 + $0x28] sm:$0xff]
      %v1851 = vld [vmem:[%s12 + $0x30] sm:$0xff]
      %v1852 = vld [vmem:[%s12 + $0x38] sm:$0xff]
      %v1854 = vsel %vm752, %v1844, 0
      %1856 = vmatprep.subr.mxu0 0.0
      %1857 = vmatpush1.msra.mxu0 %v1845
      %1858 = vmatprep.subr.mxu0 0.0
      %1859 = vmatpush1.msra.mxu0 %v1846
      %1860 = vmatprep.subr.mxu0 0.0
      %1861 = vmatpush1.msra.mxu0 %v1847
      %1862 = vmatprep.subr.mxu0 0.0
      %1863 = vmatpush1.msra.mxu0 %v1848
      %1864 = vmatprep.subr.mxu0 0.0
      %1865 = vmatpush1.msra.mxu0 %v1849
      %1866 = vmatprep.subr.mxu0 0.0
      %1867 = vmatpush1.msra.mxu0 %v1850
      %1868 = vmatprep.subr.mxu0 0.0
      %1869 = vmatpush1.msra.mxu0 %v1851
      %1870 = vmatprep.subr.mxu0 0.0
      %1871 = vmatpush1.msra.mxu0 %v1852
      %1872 = vmatprep.subr.mxu0 0.0
      %1873 = vmatpush1.msra.mxu0 0.0
      %1874 = vmatprep.subr.mxu0 0.0
      %1875 = vmatpush1.msra.mxu0 0.0
      %1876 = vmatprep.subr.mxu0 0.0
      %1877 = vmatpush1.msra.mxu0 0.0
      %1878 = vmatprep.subr.mxu0 0.0
      %1879 = vmatpush1.msra.mxu0 0.0
      %1880 = vmatprep.subr.mxu0 0.0
      %1881 = vmatpush1.msra.mxu0 0.0
      %1882 = vmatprep.subr.mxu0 0.0
      %1883 = vmatpush1.msra.mxu0 0.0
      %1884 = vmatprep.subr.mxu0 0.0
      %1885 = vmatpush1.msra.mxu0 0.0
      %1886 = vmatprep.subr.mxu0 0.0
      %1887 = vmatpush1.msra.mxu0 0.0
      %1888 = vmatprep.subr.mxu0 0.0
      %1889 = vmatpush1.msra.mxu0 0.0
      %1890 = vmatprep.subr.mxu0 0.0
      %1891 = vmatpush1.msra.mxu0 0.0
      %1892 = vmatprep.subr.mxu0 0.0
      %1893 = vmatpush1.msra.mxu0 0.0
      %1894 = vmatprep.subr.mxu0 0.0
      %1895 = vmatpush1.msra.mxu0 0.0
      %1896 = vmatprep.subr.mxu0 0.0
      %1897 = vmatpush1.msra.mxu0 0.0
      %1898 = vmatprep.subr.mxu0 0.0
      %1899 = vmatpush1.msra.mxu0 0.0
      %1900 = vmatprep.subr.mxu0 0.0
      %1901 = vmatpush1.msra.mxu0 0.0
      %1902 = vmatprep.subr.mxu0 0.0
      %1903 = vmatpush1.msra.mxu0 0.0
      %1904 = vmatprep.subr.mxu0 0.0
      %1905 = vmatpush1.msra.mxu0 0.0
      %1906 = vmatprep.subr.mxu0 0.0
      %1907 = vmatpush1.msra.mxu0 0.0
      %1908 = vmatprep.subr.mxu0 0.0
      %1909 = vmatpush1.msra.mxu0 0.0
      %1910 = vmatprep.subr.mxu0 0.0
      %1911 = vmatpush1.msra.mxu0 0.0
      %1912 = vmatprep.subr.mxu0 0.0
      %1913 = vmatpush1.msra.mxu0 0.0
      %1914 = vmatprep.subr.mxu0 0.0
      %1915 = vmatpush1.msra.mxu0 0.0
      %1916 = vmatprep.subr.mxu0 0.0
      %1917 = vmatpush1.msra.mxu0 0.0
      %1918 = vmatprep.subr.mxu0 0.0
      %1919 = vmatpush1.msra.mxu0 0.0
      %1920 = vmatprep.mubr.f32.mxu0 0.0
      %1921 = vmatmul.mubr.f32.gmra.mrb[0].mxu0 %v1854
      %v1922 = vpop.f32.mrb[0].mxu0
      %v1923 = vadd.f32 0.0, %v1922
      %v1924 = vpop.f32.mrb[0].mxu0
      %1925 = vdwg.mxu0
      %v1926 = vlaneseq
      %v1927 = vand.u32 %v1926, 127
      %vm1928 = vcmp.eq.s32.totalorder %v1927, 12
      %v1929 = vsel %vm1928, 1, 0
      %v1930 = vcvt.s32.f32 %v1929
      %v1931 = vld [vmem:[%s1] sm:$0x3f]
      %v1933 = vsel %vm559, %v1931, 0
      %1935 = vmatprep.subr.mxu0 0.0
      %1936 = vmatpush1.msra.mxu0 %v1933
      %1937 = vmatprep.subr.mxu0 0.0
      %1938 = vmatpush1.msra.mxu0 0.0
      %1939 = vmatprep.subr.mxu0 0.0
      %1940 = vmatpush1.msra.mxu0 0.0
      %1941 = vmatprep.subr.mxu0 0.0
      %1942 = vmatpush1.msra.mxu0 0.0
      %1943 = vmatprep.subr.mxu0 0.0
      %1944 = vmatpush1.msra.mxu0 0.0
      %1945 = vmatprep.subr.mxu0 0.0
      %1946 = vmatpush1.msra.mxu0 0.0
      %1947 = vmatprep.subr.mxu0 0.0
      %1948 = vmatpush1.msra.mxu0 0.0
      %1949 = vmatprep.subr.mxu0 0.0
      %1950 = vmatpush1.msra.mxu0 0.0
      %1951 = vmatprep.subr.mxu0 0.0
      %1952 = vmatpush1.msra.mxu0 0.0
      %1953 = vmatprep.subr.mxu0 0.0
      %1954 = vmatpush1.msra.mxu0 0.0
      %1955 = vmatprep.subr.mxu0 0.0
      %1956 = vmatpush1.msra.mxu0 0.0
      %1957 = vmatprep.subr.mxu0 0.0
      %1958 = vmatpush1.msra.mxu0 0.0
      %1959 = vmatprep.subr.mxu0 0.0
      %1960 = vmatpush1.msra.mxu0 0.0
      %1961 = vmatprep.subr.mxu0 0.0
      %1962 = vmatpush1.msra.mxu0 0.0
      %1963 = vmatprep.subr.mxu0 0.0
      %1964 = vmatpush1.msra.mxu0 0.0
      %1965 = vmatprep.subr.mxu0 0.0
      %1966 = vmatpush1.msra.mxu0 0.0
      %1967 = vmatprep.subr.mxu0 0.0
      %1968 = vmatpush1.msra.mxu0 0.0
      %1969 = vmatprep.subr.mxu0 0.0
      %1970 = vmatpush1.msra.mxu0 0.0
      %1971 = vmatprep.subr.mxu0 0.0
      %1972 = vmatpush1.msra.mxu0 0.0
      %1973 = vmatprep.subr.mxu0 0.0
      %1974 = vmatpush1.msra.mxu0 0.0
      %1975 = vmatprep.subr.mxu0 0.0
      %1976 = vmatpush1.msra.mxu0 0.0
      %1977 = vmatprep.subr.mxu0 0.0
      %1978 = vmatpush1.msra.mxu0 0.0
      %1979 = vmatprep.subr.mxu0 0.0
      %1980 = vmatpush1.msra.mxu0 0.0
      %1981 = vmatprep.subr.mxu0 0.0
      %1982 = vmatpush1.msra.mxu0 0.0
      %1983 = vmatprep.subr.mxu0 0.0
      %1984 = vmatpush1.msra.mxu0 0.0
      %1985 = vmatprep.subr.mxu0 0.0
      %1986 = vmatpush1.msra.mxu0 0.0
      %1987 = vmatprep.subr.mxu0 0.0
      %1988 = vmatpush1.msra.mxu0 0.0
      %1989 = vmatprep.subr.mxu0 0.0
      %1990 = vmatpush1.msra.mxu0 0.0
      %1991 = vmatprep.subr.mxu0 0.0
      %1992 = vmatpush1.msra.mxu0 0.0
      %1993 = vmatprep.subr.mxu0 0.0
      %1994 = vmatpush1.msra.mxu0 0.0
      %1995 = vmatprep.subr.mxu0 0.0
      %1996 = vmatpush1.msra.mxu0 0.0
      %1997 = vmatprep.subr.mxu0 0.0
      %1998 = vmatpush1.msra.mxu0 0.0
      %1999 = vmatprep.mubr.f32.mxu0 0.0
      %2000 = vmatmul.mubr.f32.gmra.mrb[0].mxu0 %v557
      %v2001 = vpop.f32.mrb[0].mxu0
      %v2002 = vadd.f32 %v1923, %v2001
      %v2003 = vpop.f32.mrb[0].mxu0
      %2004 = vdwg.mxu0
      %2006 = vset.pattern.permute.xlu0 0
      %2007 = vperm.xlu0 %2006, %v1288
      %v2008 = vpop.permute.xlu0 %2007
      %v2010 = vmul.f32 %v2008, %v1930
      %v2011 = vadd.f32 %v2002, %v2010
      %vm2012 = vcmask 130048
      %2013 = vst.msk [vmem:[%s545] sm:$0xff] %vm2012, %v2011
      %p2014 = scmp.lt.s32.totalorder %s30, 1
      %s2015 = scalar_select %p2014, %s30, 1
      %s2016 = smul.addr %s2015, 8
      %s2017 = scalar_lea.vmem %s17, %s2016
      // Predicated region
      $region89: #{pinn_forward.2} parent=87 // pred_check
        %p2018 = pneg %p410
      $region90: #{pinn_forward.2} parent=87 // pred_check_branch
        %2020 = sbr.rel (%p2018) target = $region92
      $region91: #{pinn_forward.2} parent=87 // pred_region
        _
      $region92: #{pinn_forward.2} parent=87 // pred_fallthru
        _
    $region88: #{pinn_forward.2} parent=5 // pred_fallthru
      _
    %p2021 = scmp.le.s32.totalorder 2, %s25
    // Predicated region
    $region93: #{pinn_forward.2} parent=5 // pred_check
      %p2022 = pneg %p2021
    $region94: #{pinn_forward.2} parent=5 // pred_check_branch
      %2024 = sbr.rel (%p2022) target = $region96
    $region95: #{pinn_forward.2} parent=5 // pred_region
      %s2025 = ssub.s32 %s25, 2
      // Predicated region
      $region97: #{pinn_forward.2} parent=95 // pred_check
        %p2026 = pneg %p416
      $region98: #{pinn_forward.2} parent=95 // pred_check_branch
        %2028 = sbr.rel (%p2026) target = $region100
      $region99: #{pinn_forward.2} parent=95 // pred_region
        %p2029 = scmp.lt.s32.totalorder %s31, 1
        %s2030 = scalar_select %p2029, %s31, 1
        %s2031 = smul.addr %s2030, 8
        %s2032 = scalar_lea.vmem %s17, %s2031
      $region100: #{pinn_forward.2} parent=95 // pred_fallthru
        _
    $region96: #{pinn_forward.2} parent=5 // pred_fallthru
      _
  $region6: #{pinn_forward.2} parent=0 // loop_footer
    %s29 = sadd.s32 1, %s25
  $region7: #{pinn_forward.2} parent=0 // loop_footer_branch
    %24 = sbr.rel target = $region3
  $region8: #{pinn_forward.2} parent=0 // loop_exit
    _

// kernel: pinn_forward.3
$region0: #{pinn_forward.3}
  #allocation0 [shape = 'u32[]', space=smem, size = 0x4, offset = 0x4, fixed_abs, tag = 'smem constant byte address 0x4 - core index']
  #allocation1 [shape = 'u32[144,128]{1,0:T(1,128)}', space=vmem, size = 0x12000, scoped, tag = 'internal scratch']
  #allocation2 [shape = 'f32[1,1]{1,0:T(1,128)S(1)}', space=vmem, size = 0x200, scoped, tag = 'scoped memory for pinn_forward.3']
  %s0 = inlined_call_operand.smem [shape: u32[35], index: -1, kind: input, shape index: {}]
  %s1 = sld [smem:[%s0]]
  %s2 = scalar_lea.smem %s0, 1
  %s3 = sld [smem:[%s2]]
  %s4 = scalar_lea.smem %s0, 2
  %s5 = sld [smem:[%s4]]
  %s6 = scalar_lea.smem %s0, 3
  %s7 = sld [smem:[%s6]]
  %s8 = scalar_lea.smem %s0, 4
  %s9 = sld [smem:[%s8]]
  %s10 = scalar_lea.smem %s0, 5
  %s11 = sld [smem:[%s10]]
  %s12 = scalar_lea.smem %s0, 6
  %s13 = sld [smem:[%s12]]
  %s14 = scalar_lea.smem %s0, 7
  %s15 = sld [smem:[%s14]]
  %s16 = scalar_lea.smem %s0, 8
  %s17 = sld [smem:[%s16]]
  %s18 = scalar_lea.smem %s0, 9
  %s19 = sld [smem:[%s18]]
  %s20 = scalar_lea.smem %s0, 10
  %s21 = sld [smem:[%s20]]
  %s22 = scalar_lea.smem %s0, 11
  %s23 = sld [smem:[%s22]]
  %s24 = scalar_lea.smem %s0, 12
  %s25 = sld [smem:[%s24]]
  %s26 = scalar_lea.smem %s0, 13
  %s27 = sld [smem:[%s26]]
  %s28 = scalar_lea.smem %s0, 14
  %s29 = sld [smem:[%s28]]
  %s30 = scalar_lea.smem %s0, 15
  %s31 = sld [smem:[%s30]]
  %s32 = scalar_lea.smem %s0, 16
  %s33 = sld [smem:[%s32]]
  %s34 = scalar_lea.smem %s0, 17
  %s35 = sld [smem:[%s34]]
  %s36 = scalar_lea.smem %s0, 18
  %s37 = sld [smem:[%s36]]
  %s38 = scalar_lea.smem %s0, 19
  %s39 = sld [smem:[%s38]]
  %s40 = scalar_lea.smem %s0, 20
  %s41 = sld [smem:[%s40]]
  %s42 = scalar_lea.smem %s0, 21
  %s43 = sld [smem:[%s42]]
  %s44 = scalar_lea.smem %s0, 22
  %s45 = sld [smem:[%s44]]
  %s46 = scalar_lea.smem %s0, 23
  %s47 = sld [smem:[%s46]]
  %s48 = scalar_lea.smem %s0, 24
  %s49 = sld [smem:[%s48]]
  %s50 = scalar_lea.smem %s0, 25
  %s51 = sld [smem:[%s50]]
  %s52 = scalar_lea.smem %s0, 26
  %s53 = sld [smem:[%s52]]
  %s54 = scalar_lea.smem %s0, 27
  %s55 = sld [smem:[%s54]]
  %s56 = scalar_lea.smem %s0, 28
  %s57 = sld [smem:[%s56]]
  %s58 = scalar_lea.smem %s0, 29
  %s59 = sld [smem:[%s58]]
  %s60 = scalar_lea.smem %s0, 30
  %s61 = sld [smem:[%s60]]
  %s62 = scalar_lea.smem %s0, 31
  %s63 = sld [smem:[%s62]]
  %s64 = scalar_lea.smem %s0, 32
  %s65 = sld [smem:[%s64]]
  %s66 = scalar_lea.smem %s0, 33
  %s67 = sld [smem:[%s66]]
  %s68 = scalar_lea.smem %s0, 34
  %s69 = sld [smem:[%s68]]
  %70 = xla_tuple %s67, %s69
  %s71 = sld [smem:[#allocation0]]
  $region162: #{pinn_forward.3} parent=0
    _
  %s73 = ssub.s32 1, %s71
  %s74 = scalar_select 0, %s73, %s71
  %v75 = vstv %s65
  %76 = vst [vmem:[#allocation2] sm:$0x1] %v75
  $region1: #{pinn_forward.3} parent=0
    #allocation3 [shape = 'u8[512]{0}', space=vmem, size = 0x400, scoped, tag = 'input window, operand 7, single buffered']
    #allocation4 [shape = 's32[1]{0}', space=sflag, size = 0x4, scoped, tag = 'scoped memory for pinn_forward.3']
    #allocation5 [shape = 'u8[512]{0}', space=vmem, size = 0x400, scoped, tag = 'input window, operand 28, single buffered']
    #allocation6 [shape = 's32[1]{0}', space=sflag, size = 0x4, scoped, tag = 'scoped memory for pinn_forward.3']
    #allocation7 [shape = 'u8[512]{0}', space=vmem, size = 0x400, scoped, tag = 'input window, operand 30, single buffered']
    %77 = vsyncpa [#allocation4], 0
    %78 = vsyncpa [#allocation6], 0
    // Predicated region
    $region2: #{pinn_forward.3} parent=1 // pred_check
      _
    $region3: #{pinn_forward.3} parent=1 // pred_check_branch
      %80 = sbr.rel (0) target = $region5
    $region4: #{pinn_forward.3} parent=1 // pred_region
      _
    $region5: #{pinn_forward.3} parent=1 // pred_fallthru
      _
    // Predicated region
    $region6: #{pinn_forward.3} parent=1 // pred_check
      _
    $region7: #{pinn_forward.3} parent=1 // pred_check_branch
      %82 = sbr.rel (0) target = $region9
    $region8: #{pinn_forward.3} parent=1 // pred_region
      _
    $region9: #{pinn_forward.3} parent=1 // pred_fallthru
      _
    // Predicated region
    $region10: #{pinn_forward.3} parent=1 // pred_check
      _
    $region11: #{pinn_forward.3} parent=1 // pred_check_branch
      %84 = sbr.rel (0) target = $region13
    $region12: #{pinn_forward.3} parent=1 // pred_region
      _
    $region13: #{pinn_forward.3} parent=1 // pred_fallthru
      _
    // Predicated region
    $region14: #{pinn_forward.3} parent=1 // pred_check
      _
    $region15: #{pinn_forward.3} parent=1 // pred_check_branch
      %86 = sbr.rel (0) target = $region17
    $region16: #{pinn_forward.3} parent=1 // pred_region
      _
    $region17: #{pinn_forward.3} parent=1 // pred_fallthru
      _
    // Predicated region
    $region18: #{pinn_forward.3} parent=1 // pred_check
      _
    $region19: #{pinn_forward.3} parent=1 // pred_check_branch
      %88 = sbr.rel (0) target = $region21
    $region20: #{pinn_forward.3} parent=1 // pred_region
      _
    $region21: #{pinn_forward.3} parent=1 // pred_fallthru
      _
    // Predicated region
    $region22: #{pinn_forward.3} parent=1 // pred_check
      _
    $region23: #{pinn_forward.3} parent=1 // pred_check_branch
      %90 = sbr.rel (0) target = $region25
    $region24: #{pinn_forward.3} parent=1 // pred_region
      _
    $region25: #{pinn_forward.3} parent=1 // pred_fallthru
      _
    // Predicated region
    $region26: #{pinn_forward.3} parent=1 // pred_check
      _
    $region27: #{pinn_forward.3} parent=1 // pred_check_branch
      %92 = sbr.rel (0) target = $region29
    $region28: #{pinn_forward.3} parent=1 // pred_region
      _
    $region29: #{pinn_forward.3} parent=1 // pred_fallthru
      _
    // Predicated region
    $region30: #{pinn_forward.3} parent=1 // pred_check
      _
    $region31: #{pinn_forward.3} parent=1 // pred_check_branch
      %94 = sbr.rel (0) target = $region33
    $region32: #{pinn_forward.3} parent=1 // pred_region
      %s96 = ssub.s32 16, 16
      %97 = vsyncadd [#allocation4], %s96
      %s99 = sshll.u32 [#allocation3], 4
      %s100 = int_to_ptr.vmem [resolvable:$true] %s99
      %102 = dma.hbm_to_vmem [thread:$0]  %s15, 16, %s100, [#allocation4]
    $region33: #{pinn_forward.3} parent=1 // pred_fallthru
      _
    // Predicated region
    $region34: #{pinn_forward.3} parent=1 // pred_check
      _
    $region35: #{pinn_forward.3} parent=1 // pred_check_branch
      %104 = sbr.rel (0) target = $region37
    $region36: #{pinn_forward.3} parent=1 // pred_region
      _
    $region37: #{pinn_forward.3} parent=1 // pred_fallthru
      _
    // Predicated region
    $region38: #{pinn_forward.3} parent=1 // pred_check
      _
    $region39: #{pinn_forward.3} parent=1 // pred_check_branch
      %106 = sbr.rel (0) target = $region41
    $region40: #{pinn_forward.3} parent=1 // pred_region
      _
    $region41: #{pinn_forward.3} parent=1 // pred_fallthru
      _
    // Predicated region
    $region42: #{pinn_forward.3} parent=1 // pred_check
      _
    $region43: #{pinn_forward.3} parent=1 // pred_check_branch
      %108 = sbr.rel (0) target = $region45
    $region44: #{pinn_forward.3} parent=1 // pred_region
      _
    $region45: #{pinn_forward.3} parent=1 // pred_fallthru
      _
    // Predicated region
    $region46: #{pinn_forward.3} parent=1 // pred_check
      _
    $region47: #{pinn_forward.3} parent=1 // pred_check_branch
      %110 = sbr.rel (0) target = $region49
    $region48: #{pinn_forward.3} parent=1 // pred_region
      _
    $region49: #{pinn_forward.3} parent=1 // pred_fallthru
      _
    // Predicated region
    $region50: #{pinn_forward.3} parent=1 // pred_check
      _
    $region51: #{pinn_forward.3} parent=1 // pred_check_branch
      %112 = sbr.rel (0) target = $region53
    $region52: #{pinn_forward.3} parent=1 // pred_region
      _
    $region53: #{pinn_forward.3} parent=1 // pred_fallthru
      _
    // Predicated region
    $region54: #{pinn_forward.3} parent=1 // pred_check
      _
    $region55: #{pinn_forward.3} parent=1 // pred_check_branch
      %114 = sbr.rel (0) target = $region57
    $region56: #{pinn_forward.3} parent=1 // pred_region
      _
    $region57: #{pinn_forward.3} parent=1 // pred_fallthru
      _
    // Predicated region
    $region58: #{pinn_forward.3} parent=1 // pred_check
      _
    $region59: #{pinn_forward.3} parent=1 // pred_check_branch
      %116 = sbr.rel (0) target = $region61
    $region60: #{pinn_forward.3} parent=1 // pred_region
      _
    $region61: #{pinn_forward.3} parent=1 // pred_fallthru
      _
    // Predicated region
    $region62: #{pinn_forward.3} parent=1 // pred_check
      _
    $region63: #{pinn_forward.3} parent=1 // pred_check_branch
      %118 = sbr.rel (0) target = $region65
    $region64: #{pinn_forward.3} parent=1 // pred_region
      _
    $region65: #{pinn_forward.3} parent=1 // pred_fallthru
      _
    // Predicated region
    $region66: #{pinn_forward.3} parent=1 // pred_check
      _
    $region67: #{pinn_forward.3} parent=1 // pred_check_branch
      %120 = sbr.rel (0) target = $region69
    $region68: #{pinn_forward.3} parent=1 // pred_region
      _
    $region69: #{pinn_forward.3} parent=1 // pred_fallthru
      _
    // Predicated region
    $region70: #{pinn_forward.3} parent=1 // pred_check
      _
    $region71: #{pinn_forward.3} parent=1 // pred_check_branch
      %122 = sbr.rel (0) target = $region73
    $region72: #{pinn_forward.3} parent=1 // pred_region
      _
    $region73: #{pinn_forward.3} parent=1 // pred_fallthru
      _
    // Predicated region
    $region74: #{pinn_forward.3} parent=1 // pred_check
      _
    $region75: #{pinn_forward.3} parent=1 // pred_check_branch
      %124 = sbr.rel (0) target = $region77
    $region76: #{pinn_forward.3} parent=1 // pred_region
      _
    $region77: #{pinn_forward.3} parent=1 // pred_fallthru
      _
    // Predicated region
    $region78: #{pinn_forward.3} parent=1 // pred_check
      _
    $region79: #{pinn_forward.3} parent=1 // pred_check_branch
      %126 = sbr.rel (0) target = $region81
    $region80: #{pinn_forward.3} parent=1 // pred_region
      _
    $region81: #{pinn_forward.3} parent=1 // pred_fallthru
      _
    // Predicated region
    $region82: #{pinn_forward.3} parent=1 // pred_check
      _
    $region83: #{pinn_forward.3} parent=1 // pred_check_branch
      %128 = sbr.rel (0) target = $region85
    $region84: #{pinn_forward.3} parent=1 // pred_region
      _
    $region85: #{pinn_forward.3} parent=1 // pred_fallthru
      _
    // Predicated region
    $region86: #{pinn_forward.3} parent=1 // pred_check
      _
    $region87: #{pinn_forward.3} parent=1 // pred_check_branch
      %130 = sbr.rel (0) target = $region89
    $region88: #{pinn_forward.3} parent=1 // pred_region
      _
    $region89: #{pinn_forward.3} parent=1 // pred_fallthru
      _
    // Predicated region
    $region90: #{pinn_forward.3} parent=1 // pred_check
      _
    $region91: #{pinn_forward.3} parent=1 // pred_check_branch
      %132 = sbr.rel (0) target = $region93
    $region92: #{pinn_forward.3} parent=1 // pred_region
      _
    $region93: #{pinn_forward.3} parent=1 // pred_fallthru
      _
    // Predicated region
    $region94: #{pinn_forward.3} parent=1 // pred_check
      _
    $region95: #{pinn_forward.3} parent=1 // pred_check_branch
      %134 = sbr.rel (0) target = $region97
    $region96: #{pinn_forward.3} parent=1 // pred_region
      _
    $region97: #{pinn_forward.3} parent=1 // pred_fallthru
      _
    // Predicated region
    $region98: #{pinn_forward.3} parent=1 // pred_check
      _
    $region99: #{pinn_forward.3} parent=1 // pred_check_branch
      %136 = sbr.rel (0) target = $region101
    $region100: #{pinn_forward.3} parent=1 // pred_region
      _
    $region101: #{pinn_forward.3} parent=1 // pred_fallthru
      _
    // Predicated region
    $region102: #{pinn_forward.3} parent=1 // pred_check
      _
    $region103: #{pinn_forward.3} parent=1 // pred_check_branch
      %138 = sbr.rel (0) target = $region105
    $region104: #{pinn_forward.3} parent=1 // pred_region
      _
    $region105: #{pinn_forward.3} parent=1 // pred_fallthru
      _
    // Predicated region
    $region106: #{pinn_forward.3} parent=1 // pred_check
      _
    $region107: #{pinn_forward.3} parent=1 // pred_check_branch
      %140 = sbr.rel (0) target = $region109
    $region108: #{pinn_forward.3} parent=1 // pred_region
      _
    $region109: #{pinn_forward.3} parent=1 // pred_fallthru
      _
    // Predicated region
    $region110: #{pinn_forward.3} parent=1 // pred_check
      _
    $region111: #{pinn_forward.3} parent=1 // pred_check_branch
      %142 = sbr.rel (0) target = $region113
    $region112: #{pinn_forward.3} parent=1 // pred_region
      _
    $region113: #{pinn_forward.3} parent=1 // pred_fallthru
      _
    // Predicated region
    $region114: #{pinn_forward.3} parent=1 // pred_check
      _
    $region115: #{pinn_forward.3} parent=1 // pred_check_branch
      %144 = sbr.rel (0) target = $region117
    $region116: #{pinn_forward.3} parent=1 // pred_region
      %s146 = ssub.s32 16, 16
      %147 = vsyncadd [#allocation6], %s146
      %s149 = sshll.u32 [#allocation5], 4
      %s150 = int_to_ptr.vmem [resolvable:$true] %s149
      %152 = dma.hbm_to_vmem [thread:$0]  %s57, 16, %s150, [#allocation6]
    $region117: #{pinn_forward.3} parent=1 // pred_fallthru
      _
    // Predicated region
    $region118: #{pinn_forward.3} parent=1 // pred_check
      _
    $region119: #{pinn_forward.3} parent=1 // pred_check_branch
      %154 = sbr.rel (0) target = $region121
    $region120: #{pinn_forward.3} parent=1 // pred_region
      _
    $region121: #{pinn_forward.3} parent=1 // pred_fallthru
      _
    // Predicated region
    $region122: #{pinn_forward.3} parent=1 // pred_check
      _
    $region123: #{pinn_forward.3} parent=1 // pred_check_branch
      %156 = sbr.rel (0) target = $region125
    $region124: #{pinn_forward.3} parent=1 // pred_region
      %s158 = ssub.s32 16, 16
      %159 = vsyncadd [#allocation6], %s158
      %s161 = sshll.u32 [#allocation7], 4
      %s162 = int_to_ptr.vmem [resolvable:$true] %s161
      %164 = dma.hbm_to_vmem [thread:$0]  %s61, 16, %s162, [#allocation6]
    $region125: #{pinn_forward.3} parent=1 // pred_fallthru
      _
    // Predicated region
    $region126: #{pinn_forward.3} parent=1 // pred_check
      _
    $region127: #{pinn_forward.3} parent=1 // pred_check_branch
      %166 = sbr.rel (0) target = $region129
    $region128: #{pinn_forward.3} parent=1 // pred_region
      _
    $region129: #{pinn_forward.3} parent=1 // pred_fallthru
      _
    // Predicated region
    $region130: #{pinn_forward.3} parent=1 // pred_check
      _
    $region131: #{pinn_forward.3} parent=1 // pred_check_branch
      %168 = sbr.rel (0) target = $region133
    $region132: #{pinn_forward.3} parent=1 // pred_region
      _
    $region133: #{pinn_forward.3} parent=1 // pred_fallthru
      _
    // Predicated region
    $region134: #{pinn_forward.3} parent=1 // pred_check
      _
    $region135: #{pinn_forward.3} parent=1 // pred_check_branch
      %170 = sbr.rel (0) target = $region137
    $region136: #{pinn_forward.3} parent=1 // pred_region
      %171 = dma.done [#allocation4], 16
    $region137: #{pinn_forward.3} parent=1 // pred_fallthru
      _
    // Predicated region
    $region138: #{pinn_forward.3} parent=1 // pred_check
      _
    $region139: #{pinn_forward.3} parent=1 // pred_check_branch
      %173 = sbr.rel (0) target = $region141
    $region140: #{pinn_forward.3} parent=1 // pred_region
      %174 = dma.done [#allocation6], 16
    $region141: #{pinn_forward.3} parent=1 // pred_fallthru
      _
    // Predicated region
    $region142: #{pinn_forward.3} parent=1 // pred_check
      _
    $region143: #{pinn_forward.3} parent=1 // pred_check_branch
      %176 = sbr.rel (0) target = $region145
    $region144: #{pinn_forward.3} parent=1 // pred_region
      %177 = dma.done [#allocation6], 16
    $region145: #{pinn_forward.3} parent=1 // pred_fallthru
      _
    %v179 = vld [vmem:[%s1] sm:$0xff]
    %v180 = vld [vmem:[%s1 + $0x8] sm:$0xff]
    %v181 = vld [vmem:[%s3] sm:$0x3]
    %vm182 = vcmask 130048
    %v184 = vsel %vm182, %v181, 0
    %186 = vmatprep.subr.mxu0 0.0
    %187 = vmatpush1.msra.mxu0 %v179
    %188 = vmatprep.subr.mxu0 0.0
    %189 = vmatpush1.msra.mxu0 %v180
    %190 = vmatprep.subr.mxu0 0.0
    %191 = vmatpush1.msra.mxu0 0.0
    %192 = vmatprep.subr.mxu0 0.0
    %193 = vmatpush1.msra.mxu0 0.0
    %194 = vmatprep.subr.mxu0 0.0
    %195 = vmatpush1.msra.mxu0 0.0
    %196 = vmatprep.subr.mxu0 0.0
    %197 = vmatpush1.msra.mxu0 0.0
    %198 = vmatprep.subr.mxu0 0.0
    %199 = vmatpush1.msra.mxu0 0.0
    %200 = vmatprep.subr.mxu0 0.0
    %201 = vmatpush1.msra.mxu0 0.0
    %202 = vmatprep.subr.mxu0 0.0
    %203 = vmatpush1.msra.mxu0 0.0
    %204 = vmatprep.subr.mxu0 0.0
    %205 = vmatpush1.msra.mxu0 0.0
    %206 = vmatprep.subr.mxu0 0.0
    %207 = vmatpush1.msra.mxu0 0.0
    %208 = vmatprep.subr.mxu0 0.0
    %209 = vmatpush1.msra.mxu0 0.0
    %210 = vmatprep.subr.mxu0 0.0
    %211 = vmatpush1.msra.mxu0 0.0
    %212 = vmatprep.subr.mxu0 0.0
    %213 = vmatpush1.msra.mxu0 0.0
    %214 = vmatprep.subr.mxu0 0.0
    %215 = vmatpush1.msra.mxu0 0.0
    %216 = vmatprep.subr.mxu0 0.0
    %217 = vmatpush1.msra.mxu0 0.0
    %218 = vmatprep.subr.mxu0 0.0
    %219 = vmatpush1.msra.mxu0 0.0
    %220 = vmatprep.subr.mxu0 0.0
    %221 = vmatpush1.msra.mxu0 0.0
    %222 = vmatprep.subr.mxu0 0.0
    %223 = vmatpush1.msra.mxu0 0.0
    %224 = vmatprep.subr.mxu0 0.0
    %225 = vmatpush1.msra.mxu0 0.0
    %226 = vmatprep.subr.mxu0 0.0
    %227 = vmatpush1.msra.mxu0 0.0
    %228 = vmatprep.subr.mxu0 0.0
    %229 = vmatpush1.msra.mxu0 0.0
    %230 = vmatprep.subr.mxu0 0.0
    %231 = vmatpush1.msra.mxu0 0.0
    %232 = vmatprep.subr.mxu0 0.0
    %233 = vmatpush1.msra.mxu0 0.0
    %234 = vmatprep.subr.mxu0 0.0
    %235 = vmatpush1.msra.mxu0 0.0
    %236 = vmatprep.subr.mxu0 0.0
    %237 = vmatpush1.msra.mxu0 0.0
    %238 = vmatprep.subr.mxu0 0.0
    %239 = vmatpush1.msra.mxu0 0.0
    %240 = vmatprep.subr.mxu0 0.0
    %241 = vmatpush1.msra.mxu0 0.0
    %242 = vmatprep.subr.mxu0 0.0
    %243 = vmatpush1.msra.mxu0 0.0
    %244 = vmatprep.subr.mxu0 0.0
    %245 = vmatpush1.msra.mxu0 0.0
    %246 = vmatprep.subr.mxu0 0.0
    %247 = vmatpush1.msra.mxu0 0.0
    %248 = vmatprep.subr.mxu0 0.0
    %249 = vmatpush1.msra.mxu0 0.0
    %250 = vmatprep.mubr.f32.mxu0 0.0
    %251 = vmatmul.mubr.f32.gmra.mrb[0].mxu0 %v184
    %v252 = vpop.f32.mrb[0].mxu0
    %v253 = vadd.f32 0.0, %v252
    %v254 = vpop.f32.mrb[0].mxu0
    %255 = vdwg.mxu0
    %v256 = vpack.c.bf16 %v180, %v179
    %s257 = scalar_lea.vmem %s17, 8
    %v258 = vld [vmem:[%s257] sm:$0xf]
    %v259 = vld [vmem:[%s257 + $0x4] sm:$0xf]
    %v260 = vld [vmem:[%s5] sm:$0xf]
    %v261 = vld [vmem:[%s5 + $0x4] sm:$0xf]
    %v264 = vunpack.c.l.b16 %v260
    %v265 = vunpack.c.l.b16 %v261
    %v266 = vpack.c.b16 %v265, %v264
    %v268 = vsel %vm182, %v266, 0
    %270 = vmatprep.subr.bf16.mxu0 0
    %271 = vmatpush1.bf16.msra.mxu0 %v256
    %272 = vmatprep.subr.bf16.mxu0 0
    %273 = vmatpush1.bf16.msra.mxu0 0
    %274 = vmatprep.subr.bf16.mxu0 0
    %275 = vmatpush1.bf16.msra.mxu0 0
    %276 = vmatprep.subr.bf16.mxu0 0
    %277 = vmatpush1.bf16.msra.mxu0 0
    %278 = vmatprep.subr.bf16.mxu0 0
    %279 = vmatpush1.bf16.msra.mxu0 0
    %280 = vmatprep.subr.bf16.mxu0 0
    %281 = vmatpush1.bf16.msra.mxu0 0
    %282 = vmatprep.subr.bf16.mxu0 0
    %283 = vmatpush1.bf16.msra.mxu0 0
    %284 = vmatprep.subr.bf16.mxu0 0
    %285 = vmatpush1.bf16.msra.mxu0 0
    %286 = vmatprep.subr.bf16.mxu0 0
    %287 = vmatpush1.bf16.msra.mxu0 0
    %288 = vmatprep.subr.bf16.mxu0 0
    %289 = vmatpush1.bf16.msra.mxu0 0
    %290 = vmatprep.subr.bf16.mxu0 0
    %291 = vmatpush1.bf16.msra.mxu0 0
    %292 = vmatprep.subr.bf16.mxu0 0
    %293 = vmatpush1.bf16.msra.mxu0 0
    %294 = vmatprep.subr.bf16.mxu0 0
    %295 = vmatpush1.bf16.msra.mxu0 0
    %296 = vmatprep.subr.bf16.mxu0 0
    %297 = vmatpush1.bf16.msra.mxu0 0
    %298 = vmatprep.subr.bf16.mxu0 0
    %299 = vmatpush1.bf16.msra.mxu0 0
    %300 = vmatprep.subr.bf16.mxu0 0
    %301 = vmatpush1.bf16.msra.mxu0 0
    %302 = vmatprep.mubr.bf16.mxu0 0
    %303 = vmatmul.mubr.bf16.gmra.mrb[0].mxu0 %v268
    %v304 = vpop.f32.mrb[0].mxu0
    %v305 = vadd.f32 0.0, %v304
    %v306 = vpop.f32.mrb[0].mxu0
    %v307 = vpop.f32.mrb[0].mxu0
    %v308 = vadd.f32 0.0, %v307
    %v309 = vpop.f32.mrb[0].mxu0
    %310 = vdwg.mxu0
    %v311 = vpack.c.bf16 %v308, %v305
    %v312 = vld [vmem:[%s17] sm:$0xf]
    %v313 = vld [vmem:[%s17 + $0x4] sm:$0xf]
    %v316 = vunpack.c.l.b16 %v312
    %v317 = vunpack.c.l.b16 %v313
    %v318 = vpack.c.b16 %v317, %v316
    %v321 = vsel %vm182, %v311, 0
    %323 = vmatprep.subr.bf16.mxu0 0
    %324 = vmatpush1.bf16.msra.mxu0 %v318
    %325 = vmatprep.subr.bf16.mxu0 0
    %326 = vmatpush1.bf16.msra.mxu0 0
    %327 = vmatprep.subr.bf16.mxu0 0
    %328 = vmatpush1.bf16.msra.mxu0 0
    %329 = vmatprep.subr.bf16.mxu0 0
    %330 = vmatpush1.bf16.msra.mxu0 0
    %331 = vmatprep.subr.bf16.mxu0 0
    %332 = vmatpush1.bf16.msra.mxu0 0
    %333 = vmatprep.subr.bf16.mxu0 0
    %334 = vmatpush1.bf16.msra.mxu0 0
    %335 = vmatprep.subr.bf16.mxu0 0
    %336 = vmatpush1.bf16.msra.mxu0 0
    %337 = vmatprep.subr.bf16.mxu0 0
    %338 = vmatpush1.bf16.msra.mxu0 0
    %339 = vmatprep.subr.bf16.mxu0 0
    %340 = vmatpush1.bf16.msra.mxu0 0
    %341 = vmatprep.subr.bf16.mxu0 0
    %342 = vmatpush1.bf16.msra.mxu0 0
    %343 = vmatprep.subr.bf16.mxu0 0
    %344 = vmatpush1.bf16.msra.mxu0 0
    %345 = vmatprep.subr.bf16.mxu0 0
    %346 = vmatpush1.bf16.msra.mxu0 0
    %347 = vmatprep.subr.bf16.mxu0 0
    %348 = vmatpush1.bf16.msra.mxu0 0
    %349 = vmatprep.subr.bf16.mxu0 0
    %350 = vmatpush1.bf16.msra.mxu0 0
    %351 = vmatprep.subr.bf16.mxu0 0
    %352 = vmatpush1.bf16.msra.mxu0 0
    %353 = vmatprep.subr.bf16.mxu0 0
    %354 = vmatpush1.bf16.msra.mxu0 0
    %355 = vmatprep.mubr.bf16.mxu0 0
    %356 = vmatmul.mubr.bf16.gmra.mrb[0].mxu0 %v321
    %v357 = vpop.f32.mrb[0].mxu0
    %v358 = vadd.f32 0.0, %v357
    %v359 = vpop.f32.mrb[0].mxu0
    %v360 = vpop.f32.mrb[0].mxu0
    %v361 = vadd.f32 0.0, %v360
    %v362 = vpop.f32.mrb[0].mxu0
    %363 = vdwg.mxu0
    %v366 = vunpack.c.l.b16 %v258
    %v367 = vunpack.c.l.b16 %v259
    %v368 = vpack.c.b16 %v367, %v366
    %v371 = vsel %vm182, %v256, 0
    %373 = vmatprep.subr.bf16.mxu0 0
    %374 = vmatpush1.bf16.msra.mxu0 %v368
    %375 = vmatprep.subr.bf16.mxu0 0
    %376 = vmatpush1.bf16.msra.mxu0 0
    %377 = vmatprep.subr.bf16.mxu0 0
    %378 = vmatpush1.bf16.msra.mxu0 0
    %379 = vmatprep.subr.bf16.mxu0 0
    %380 = vmatpush1.bf16.msra.mxu0 0
    %381 = vmatprep.subr.bf16.mxu0 0
    %382 = vmatpush1.bf16.msra.mxu0 0
    %383 = vmatprep.subr.bf16.mxu0 0
    %384 = vmatpush1.bf16.msra.mxu0 0
    %385 = vmatprep.subr.bf16.mxu0 0
    %386 = vmatpush1.bf16.msra.mxu0 0
    %387 = vmatprep.subr.bf16.mxu0 0
    %388 = vmatpush1.bf16.msra.mxu0 0
    %389 = vmatprep.subr.bf16.mxu0 0
    %390 = vmatpush1.bf16.msra.mxu0 0
    %391 = vmatprep.subr.bf16.mxu0 0
    %392 = vmatpush1.bf16.msra.mxu0 0
    %393 = vmatprep.subr.bf16.mxu0 0
    %394 = vmatpush1.bf16.msra.mxu0 0
    %395 = vmatprep.subr.bf16.mxu0 0
    %396 = vmatpush1.bf16.msra.mxu0 0
    %397 = vmatprep.subr.bf16.mxu0 0
    %398 = vmatpush1.bf16.msra.mxu0 0
    %399 = vmatprep.subr.bf16.mxu0 0
    %400 = vmatpush1.bf16.msra.mxu0 0
    %401 = vmatprep.subr.bf16.mxu0 0
    %402 = vmatpush1.bf16.msra.mxu0 0
    %403 = vmatprep.subr.bf16.mxu0 0
    %404 = vmatpush1.bf16.msra.mxu0 0
    %405 = vmatprep.mubr.bf16.mxu0 0
    %406 = vmatmul.mubr.bf16.gmra.mrb[0].mxu0 %v371
    %v407 = vpop.f32.mrb[0].mxu0
    %v408 = vadd.f32 %v358, %v407
    %v409 = vpop.f32.mrb[0].mxu0
    %v410 = vpop.f32.mrb[0].mxu0
    %v411 = vadd.f32 %v361, %v410
    %v412 = vpop.f32.mrb[0].mxu0
    %413 = vdwg.mxu0
    %s414 = scalar_lea.vmem %s5, 8
    %v415 = vld [vmem:[%s414] sm:$0xf]
    %v416 = vld [vmem:[%s414 + $0x4] sm:$0xf]
    %v419 = vunpack.c.l.b16 %v415
    %v420 = vunpack.c.l.b16 %v416
    %v421 = vpack.c.b16 %v420, %v419
    %v423 = vsel %vm182, %v421, 0
    %425 = vmatprep.subr.bf16.mxu0 0
    %426 = vmatpush1.bf16.msra.mxu0 %v256
    %427 = vmatprep.subr.bf16.mxu0 0
    %428 = vmatpush1.bf16.msra.mxu0 0
    %429 = vmatprep.subr.bf16.mxu0 0
    %430 = vmatpush1.bf16.msra.mxu0 0
    %431 = vmatprep.subr.bf16.mxu0 0
    %432 = vmatpush1.bf16.msra.mxu0 0
    %433 = vmatprep.subr.bf16.mxu0 0
    %434 = vmatpush1.bf16.msra.mxu0 0
    %435 = vmatprep.subr.bf16.mxu0 0
    %436 = vmatpush1.bf16.msra.mxu0 0
    %437 = vmatprep.subr.bf16.mxu0 0
    %438 = vmatpush1.bf16.msra.mxu0 0
    %439 = vmatprep.subr.bf16.mxu0 0
    %440 = vmatpush1.bf16.msra.mxu0 0
    %441 = vmatprep.subr.bf16.mxu0 0
    %442 = vmatpush1.bf16.msra.mxu0 0
    %443 = vmatprep.subr.bf16.mxu0 0
    %444 = vmatpush1.bf16.msra.mxu0 0
    %445 = vmatprep.subr.bf16.mxu0 0
    %446 = vmatpush1.bf16.msra.mxu0 0
    %447 = vmatprep.subr.bf16.mxu0 0
    %448 = vmatpush1.bf16.msra.mxu0 0
    %449 = vmatprep.subr.bf16.mxu0 0
    %450 = vmatpush1.bf16.msra.mxu0 0
    %451 = vmatprep.subr.bf16.mxu0 0
    %452 = vmatpush1.bf16.msra.mxu0 0
    %453 = vmatprep.subr.bf16.mxu0 0
    %454 = vmatpush1.bf16.msra.mxu0 0
    %455 = vmatprep.subr.bf16.mxu0 0
    %456 = vmatpush1.bf16.msra.mxu0 0
    %457 = vmatprep.mubr.bf16.mxu0 0
    %458 = vmatmul.mubr.bf16.gmra.mrb[0].mxu0 %v423
    %v459 = vpop.f32.mrb[0].mxu0
    %v460 = vadd.f32 0.0, %v459
    %v461 = vpop.f32.mrb[0].mxu0
    %v462 = vpop.f32.mrb[0].mxu0
    %v463 = vadd.f32 0.0, %v462
    %v464 = vpop.f32.mrb[0].mxu0
    %465 = vdwg.mxu0
    %v466 = vpack.c.bf16 %v463, %v460
    %s467 = scalar_lea.vmem %s17, 16
    %v468 = vld [vmem:[%s467] sm:$0xf]
    %v469 = vld [vmem:[%s467 + $0x4] sm:$0xf]
    %v472 = vunpack.c.l.b16 %v468
    %v473 = vunpack.c.l.b16 %v469
    %v474 = vpack.c.b16 %v473, %v472
    %v477 = vsel %vm182, %v466, 0
    %479 = vmatprep.subr.bf16.mxu0 0
    %480 = vmatpush1.bf16.msra.mxu0 %v474
    %481 = vmatprep.subr.bf16.mxu0 0
    %482 = vmatpush1.bf16.msra.mxu0 0
    %483 = vmatprep.subr.bf16.mxu0 0
    %484 = vmatpush1.bf16.msra.mxu0 0
    %485 = vmatprep.subr.bf16.mxu0 0
    %486 = vmatpush1.bf16.msra.mxu0 0
    %487 = vmatprep.subr.bf16.mxu0 0
    %488 = vmatpush1.bf16.msra.mxu0 0
    %489 = vmatprep.subr.bf16.mxu0 0
    %490 = vmatpush1.bf16.msra.mxu0 0
    %491 = vmatprep.subr.bf16.mxu0 0
    %492 = vmatpush1.bf16.msra.mxu0 0
    %493 = vmatprep.subr.bf16.mxu0 0
    %494 = vmatpush1.bf16.msra.mxu0 0
    %495 = vmatprep.subr.bf16.mxu0 0
    %496 = vmatpush1.bf16.msra.mxu0 0
    %497 = vmatprep.subr.bf16.mxu0 0
    %498 = vmatpush1.bf16.msra.mxu0 0
    %499 = vmatprep.subr.bf16.mxu0 0
    %500 = vmatpush1.bf16.msra.mxu0 0
    %501 = vmatprep.subr.bf16.mxu0 0
    %502 = vmatpush1.bf16.msra.mxu0 0
    %503 = vmatprep.subr.bf16.mxu0 0
    %504 = vmatpush1.bf16.msra.mxu0 0
    %505 = vmatprep.subr.bf16.mxu0 0
    %506 = vmatpush1.bf16.msra.mxu0 0
    %507 = vmatprep.subr.bf16.mxu0 0
    %508 = vmatpush1.bf16.msra.mxu0 0
    %509 = vmatprep.subr.bf16.mxu0 0
    %510 = vmatpush1.bf16.msra.mxu0 0
    %511 = vmatprep.mubr.bf16.mxu0 0
    %512 = vmatmul.mubr.bf16.gmra.mrb[0].mxu0 %v477
    %v513 = vpop.f32.mrb[0].mxu0
    %v514 = vadd.f32 0.0, %v513
    %v515 = vpop.f32.mrb[0].mxu0
    %v516 = vpop.f32.mrb[0].mxu0
    %v517 = vadd.f32 0.0, %v516
    %v518 = vpop.f32.mrb[0].mxu0
    %519 = vdwg.mxu0
    %v520 = vadd.f32 %v408, %v514
    %v521 = vadd.f32 %v411, %v517
    %v522 = vld [vmem:[%s19] sm:$0x1]
    %v524 = vlaneseq
    %v525 = vshrl.u32 %v524, 7
    %v526 = vsub.s32 0, %v525
    %v527 = vrot.slane %v522, %v526
    %v529 = vadd.f32 %v520, %v527
    %v530 = vadd.f32 %v521, %v527
    %v531 = vmax.f32 %v529, 0.0
    %v532 = vmax.f32 %v530, 0.0
    %v533 = vpack.c.bf16 %v532, %v531
    %v534 = vld [vmem:[%s7] sm:$0xf]
    %v536 = vsel %vm182, %v534, 0
    %538 = vmatprep.subr.bf16.mxu0 0
    %539 = vmatpush1.bf16.msra.mxu0 %v533
    %540 = vmatprep.subr.bf16.mxu0 0
    %541 = vmatpush1.bf16.msra.mxu0 0
    %542 = vmatprep.subr.bf16.mxu0 0
    %543 = vmatpush1.bf16.msra.mxu0 0
    %544 = vmatprep.subr.bf16.mxu0 0
    %545 = vmatpush1.bf16.msra.mxu0 0
    %546 = vmatprep.subr.bf16.mxu0 0
    %547 = vmatpush1.bf16.msra.mxu0 0
    %548 = vmatprep.subr.bf16.mxu0 0
    %549 = vmatpush1.bf16.msra.mxu0 0
    %550 = vmatprep.subr.bf16.mxu0 0
    %551 = vmatpush1.bf16.msra.mxu0 0
    %552 = vmatprep.subr.bf16.mxu0 0
    %553 = vmatpush1.bf16.msra.mxu0 0
    %554 = vmatprep.subr.bf16.mxu0 0
    %555 = vmatpush1.bf16.msra.mxu0 0
    %556 = vmatprep.subr.bf16.mxu0 0
    %557 = vmatpush1.bf16.msra.mxu0 0
    %558 = vmatprep.subr.bf16.mxu0 0
    %559 = vmatpush1.bf16.msra.mxu0 0
    %560 = vmatprep.subr.bf16.mxu0 0
    %561 = vmatpush1.bf16.msra.mxu0 0
    %562 = vmatprep.subr.bf16.mxu0 0
    %563 = vmatpush1.bf16.msra.mxu0 0
    %564 = vmatprep.subr.bf16.mxu0 0
    %565 = vmatpush1.bf16.msra.mxu0 0
    %566 = vmatprep.subr.bf16.mxu0 0
    %567 = vmatpush1.bf16.msra.mxu0 0
    %568 = vmatprep.subr.bf16.mxu0 0
    %569 = vmatpush1.bf16.msra.mxu0 0
    %570 = vmatprep.mubr.bf16.mxu0 0
    %571 = vmatmul.mubr.bf16.gmra.mrb[0].mxu0 %v536
    %v572 = vpop.f32.mrb[0].mxu0
    %v573 = vadd.f32 0.0, %v572
    %v574 = vpop.f32.mrb[0].mxu0
    %v575 = vpop.f32.mrb[0].mxu0
    %v576 = vpop.f32.mrb[0].mxu0
    %577 = vdwg.mxu0
    %v578 = vpack.c.bf16 %v573, %v573
    %v579 = vld [vmem:[%s21] sm:$0xf]
    %v580 = vld [vmem:[%s21 + $0x4] sm:$0xf]
    %v581 = vld [vmem:[%s21 + $0x8] sm:$0xf]
    %s582 = scalar_lea.vmem %s7, 4
    %v583 = vld [vmem:[%s582] sm:$0xf]
    %v585 = vsel %vm182, %v583, 0
    %587 = vmatprep.subr.bf16.mxu0 0
    %588 = vmatpush1.bf16.msra.mxu0 %v533
    %589 = vmatprep.subr.bf16.mxu0 0
    %590 = vmatpush1.bf16.msra.mxu0 0
    %591 = vmatprep.subr.bf16.mxu0 0
    %592 = vmatpush1.bf16.msra.mxu0 0
    %593 = vmatprep.subr.bf16.mxu0 0
    %594 = vmatpush1.bf16.msra.mxu0 0
    %595 = vmatprep.subr.bf16.mxu0 0
    %596 = vmatpush1.bf16.msra.mxu0 0
    %597 = vmatprep.subr.bf16.mxu0 0
    %598 = vmatpush1.bf16.msra.mxu0 0
    %599 = vmatprep.subr.bf16.mxu0 0
    %600 = vmatpush1.bf16.msra.mxu0 0
    %601 = vmatprep.subr.bf16.mxu0 0
    %602 = vmatpush1.bf16.msra.mxu0 0
    %603 = vmatprep.subr.bf16.mxu0 0
    %604 = vmatpush1.bf16.msra.mxu0 0
    %605 = vmatprep.subr.bf16.mxu0 0
    %606 = vmatpush1.bf16.msra.mxu0 0
    %607 = vmatprep.subr.bf16.mxu0 0
    %608 = vmatpush1.bf16.msra.mxu0 0
    %609 = vmatprep.subr.bf16.mxu0 0
    %610 = vmatpush1.bf16.msra.mxu0 0
    %611 = vmatprep.subr.bf16.mxu0 0
    %612 = vmatpush1.bf16.msra.mxu0 0
    %613 = vmatprep.subr.bf16.mxu0 0
    %614 = vmatpush1.bf16.msra.mxu0 0
    %615 = vmatprep.subr.bf16.mxu0 0
    %616 = vmatpush1.bf16.msra.mxu0 0
    %617 = vmatprep.subr.bf16.mxu0 0
    %618 = vmatpush1.bf16.msra.mxu0 0
    %619 = vmatprep.mubr.bf16.mxu0 0
    %620 = vmatmul.mubr.bf16.gmra.mrb[0].mxu0 %v585
    %v621 = vpop.f32.mrb[0].mxu0
    %v622 = vadd.f32 0.0, %v621
    %v623 = vpop.f32.mrb[0].mxu0
    %v624 = vpop.f32.mrb[0].mxu0
    %v625 = vpop.f32.mrb[0].mxu0
    %626 = vdwg.mxu0
    %v627 = vpack.c.bf16 %v622, %v622
    %s628 = scalar_lea.vmem %s21, 12
    %v629 = vld [vmem:[%s628] sm:$0xf]
    %v630 = vld [vmem:[%s628 + $0x4] sm:$0xf]
    %v631 = vld [vmem:[%s628 + $0x8] sm:$0xf]
    %v635 = vunpack.c.l.b16 %v629
    %v636 = vunpack.c.l.b16 %v630
    %v637 = vunpack.c.l.b16 %v631
    %v638 = vpack.c.b16 %v636, %v635
    %v639 = vpack.c.b16 %v637, %v637
    %vm641 = vcmask 195584
    %v643 = vsel %vm641, %v627, 0
    %vm645 = vcmask 1043456
    %v647 = vsel %vm645, %v639, 0
    %649 = vmatprep.subr.bf16.mxu0 0
    %650 = vmatpush1.bf16.msra.mxu0 %v638
    %651 = vmatprep.subr.bf16.mxu0 0
    %652 = vmatpush1.bf16.msra.mxu0 %v647
    %653 = vmatprep.subr.bf16.mxu0 0
    %654 = vmatpush1.bf16.msra.mxu0 0
    %655 = vmatprep.subr.bf16.mxu0 0
    %656 = vmatpush1.bf16.msra.mxu0 0
    %657 = vmatprep.subr.bf16.mxu0 0
    %658 = vmatpush1.bf16.msra.mxu0 0
    %659 = vmatprep.subr.bf16.mxu0 0
    %660 = vmatpush1.bf16.msra.mxu0 0
    %661 = vmatprep.subr.bf16.mxu0 0
    %662 = vmatpush1.bf16.msra.mxu0 0
    %663 = vmatprep.subr.bf16.mxu0 0
    %664 = vmatpush1.bf16.msra.mxu0 0
    %665 = vmatprep.subr.bf16.mxu0 0
    %666 = vmatpush1.bf16.msra.mxu0 0
    %667 = vmatprep.subr.bf16.mxu0 0
    %668 = vmatpush1.bf16.msra.mxu0 0
    %669 = vmatprep.subr.bf16.mxu0 0
    %670 = vmatpush1.bf16.msra.mxu0 0
    %671 = vmatprep.subr.bf16.mxu0 0
    %672 = vmatpush1.bf16.msra.mxu0 0
    %673 = vmatprep.subr.bf16.mxu0 0
    %674 = vmatpush1.bf16.msra.mxu0 0
    %675 = vmatprep.subr.bf16.mxu0 0
    %676 = vmatpush1.bf16.msra.mxu0 0
    %677 = vmatprep.subr.bf16.mxu0 0
    %678 = vmatpush1.bf16.msra.mxu0 0
    %679 = vmatprep.subr.bf16.mxu0 0
    %680 = vmatpush1.bf16.msra.mxu0 0
    %681 = vmatprep.mubr.bf16.mxu0 0
    %682 = vmatmul.mubr.bf16.gmra.mrb[0].mxu0 %v643
    %v683 = vpop.f32.mrb[0].mxu0
    %v684 = vadd.f32 0.0, %v683
    %v685 = vpop.f32.mrb[0].mxu0
    %v686 = vpop.f32.mrb[0].mxu0
    %v687 = vpop.f32.mrb[0].mxu0
    %688 = vdwg.mxu0
    %v692 = vunpack.c.l.b16 %v579
    %v693 = vunpack.c.l.b16 %v580
    %v694 = vunpack.c.l.b16 %v581
    %v695 = vpack.c.b16 %v693, %v692
    %v696 = vpack.c.b16 %v694, %v694
    %v699 = vsel %vm641, %v578, 0
    %v702 = vsel %vm645, %v696, 0
    %704 = vmatprep.subr.bf16.mxu0 0
    %705 = vmatpush1.bf16.msra.mxu0 %v695
    %706 = vmatprep.subr.bf16.mxu0 0
    %707 = vmatpush1.bf16.msra.mxu0 %v702
    %708 = vmatprep.subr.bf16.mxu0 0
    %709 = vmatpush1.bf16.msra.mxu0 0
    %710 = vmatprep.subr.bf16.mxu0 0
    %711 = vmatpush1.bf16.msra.mxu0 0
    %712 = vmatprep.subr.bf16.mxu0 0
    %713 = vmatpush1.bf16.msra.mxu0 0
    %714 = vmatprep.subr.bf16.mxu0 0
    %715 = vmatpush1.bf16.msra.mxu0 0
    %716 = vmatprep.subr.bf16.mxu0 0
    %717 = vmatpush1.bf16.msra.mxu0 0
    %718 = vmatprep.subr.bf16.mxu0 0
    %719 = vmatpush1.bf16.msra.mxu0 0
    %720 = vmatprep.subr.bf16.mxu0 0
    %721 = vmatpush1.bf16.msra.mxu0 0
    %722 = vmatprep.subr.bf16.mxu0 0
    %723 = vmatpush1.bf16.msra.mxu0 0
    %724 = vmatprep.subr.bf16.mxu0 0
    %725 = vmatpush1.bf16.msra.mxu0 0
    %726 = vmatprep.subr.bf16.mxu0 0
    %727 = vmatpush1.bf16.msra.mxu0 0
    %728 = vmatprep.subr.bf16.mxu0 0
    %729 = vmatpush1.bf16.msra.mxu0 0
    %730 = vmatprep.subr.bf16.mxu0 0
    %731 = vmatpush1.bf16.msra.mxu0 0
    %732 = vmatprep.subr.bf16.mxu0 0
    %733 = vmatpush1.bf16.msra.mxu0 0
    %734 = vmatprep.subr.bf16.mxu0 0
    %735 = vmatpush1.bf16.msra.mxu0 0
    %736 = vmatprep.mubr.bf16.mxu0 0
    %737 = vmatmul.mubr.bf16.gmra.mrb[0].mxu0 %v699
    %v738 = vpop.f32.mrb[0].mxu0
    %v739 = vadd.f32 %v684, %v738
    %v740 = vpop.f32.mrb[0].mxu0
    %v741 = vpop.f32.mrb[0].mxu0
    %v742 = vpop.f32.mrb[0].mxu0
    %743 = vdwg.mxu0
    %v744 = vld [vmem:[%s25] sm:$0xf]
    %v745 = vld [vmem:[%s25 + $0x4] sm:$0xf]
    %v746 = vld [vmem:[%s25 + $0x8] sm:$0xf]
    %v747 = vld [vmem:[%s27] sm:$0x1]
    %v749 = vlaneseq
    %v750 = vshrl.u32 %v749, 7
    %v751 = vsub.s32 0, %v750
    %v752 = vrot.slane %v747, %v751
    %v757 = vunpack.c.l.b16 %v744
    %v758 = vunpack.c.l.b16 %v745
    %v759 = vunpack.c.l.b16 %v746
    %v760 = vpack.c.b16 %v758, %v757
    %v761 = vpack.c.b16 %v759, %v759
    %v764 = vsel %vm645, %v761, 0
    %766 = vmatprep.subr.bf16.mxu0 0
    %767 = vmatpush1.bf16.msra.mxu0 %v760
    %768 = vmatprep.subr.bf16.mxu0 0
    %769 = vmatpush1.bf16.msra.mxu0 %v764
    %770 = vmatprep.subr.bf16.mxu0 0
    %771 = vmatpush1.bf16.msra.mxu0 0
    %772 = vmatprep.subr.bf16.mxu0 0
    %773 = vmatpush1.bf16.msra.mxu0 0
    %774 = vmatprep.subr.bf16.mxu0 0
    %775 = vmatpush1.bf16.msra.mxu0 0
    %776 = vmatprep.subr.bf16.mxu0 0
    %777 = vmatpush1.bf16.msra.mxu0 0
    %778 = vmatprep.subr.bf16.mxu0 0
    %779 = vmatpush1.bf16.msra.mxu0 0
    %780 = vmatprep.subr.bf16.mxu0 0
    %781 = vmatpush1.bf16.msra.mxu0 0
    %782 = vmatprep.subr.bf16.mxu0 0
    %783 = vmatpush1.bf16.msra.mxu0 0
    %784 = vmatprep.subr.bf16.mxu0 0
    %785 = vmatpush1.bf16.msra.mxu0 0
    %786 = vmatprep.subr.bf16.mxu0 0
    %787 = vmatpush1.bf16.msra.mxu0 0
    %788 = vmatprep.subr.bf16.mxu0 0
    %789 = vmatpush1.bf16.msra.mxu0 0
    %790 = vmatprep.subr.bf16.mxu0 0
    %791 = vmatpush1.bf16.msra.mxu0 0
    %792 = vmatprep.subr.bf16.mxu0 0
    %793 = vmatpush1.bf16.msra.mxu0 0
    %794 = vmatprep.subr.bf16.mxu0 0
    %795 = vmatpush1.bf16.msra.mxu0 0
    %796 = vmatprep.subr.bf16.mxu0 0
    %797 = vmatpush1.bf16.msra.mxu0 0
    %798 = vmatprep.mubr.bf16.mxu0 0
    %799 = vmatmul.mubr.bf16.gmra.mrb[0].mxu0 %v643
    %v800 = vpop.f32.mrb[0].mxu0
    %v801 = vadd.f32 %v752, %v800
    %v802 = vpop.f32.mrb[0].mxu0
    %v803 = vpop.f32.mrb[0].mxu0
    %v804 = vpop.f32.mrb[0].mxu0
    %805 = vdwg.mxu0
    %s806 = scalar_lea.vmem %s7, 8
    %v807 = vld [vmem:[%s806] sm:$0xf]
    %v809 = vsel %vm182, %v807, 0
    %811 = vmatprep.subr.bf16.mxu0 0
    %812 = vmatpush1.bf16.msra.mxu0 %v533
    %813 = vmatprep.subr.bf16.mxu0 0
    %814 = vmatpush1.bf16.msra.mxu0 0
    %815 = vmatprep.subr.bf16.mxu0 0
    %816 = vmatpush1.bf16.msra.mxu0 0
    %817 = vmatprep.subr.bf16.mxu0 0
    %818 = vmatpush1.bf16.msra.mxu0 0
    %819 = vmatprep.subr.bf16.mxu0 0
    %820 = vmatpush1.bf16.msra.mxu0 0
    %821 = vmatprep.subr.bf16.mxu0 0
    %822 = vmatpush1.bf16.msra.mxu0 0
    %823 = vmatprep.subr.bf16.mxu0 0
    %824 = vmatpush1.bf16.msra.mxu0 0
    %825 = vmatprep.subr.bf16.mxu0 0
    %826 = vmatpush1.bf16.msra.mxu0 0
    %827 = vmatprep.subr.bf16.mxu0 0
    %828 = vmatpush1.bf16.msra.mxu0 0
    %829 = vmatprep.subr.bf16.mxu0 0
    %830 = vmatpush1.bf16.msra.mxu0 0
    %831 = vmatprep.subr.bf16.mxu0 0
    %832 = vmatpush1.bf16.msra.mxu0 0
    %833 = vmatprep.subr.bf16.mxu0 0
    %834 = vmatpush1.bf16.msra.mxu0 0
    %835 = vmatprep.subr.bf16.mxu0 0
    %836 = vmatpush1.bf16.msra.mxu0 0
    %837 = vmatprep.subr.bf16.mxu0 0
    %838 = vmatpush1.bf16.msra.mxu0 0
    %839 = vmatprep.subr.bf16.mxu0 0
    %840 = vmatpush1.bf16.msra.mxu0 0
    %841 = vmatprep.subr.bf16.mxu0 0
    %842 = vmatpush1.bf16.msra.mxu0 0
    %843 = vmatprep.mubr.bf16.mxu0 0
    %844 = vmatmul.mubr.bf16.gmra.mrb[0].mxu0 %v809
    %v845 = vpop.f32.mrb[0].mxu0
    %v846 = vadd.f32 0.0, %v845
    %v847 = vpop.f32.mrb[0].mxu0
    %v848 = vpop.f32.mrb[0].mxu0
    %v849 = vpop.f32.mrb[0].mxu0
    %850 = vdwg.mxu0
    %v851 = vpack.c.bf16 %v846, %v846
    %s852 = scalar_lea.vmem %s21, 24
    %v853 = vld [vmem:[%s852] sm:$0xf]
    %v854 = vld [vmem:[%s852 + $0x4] sm:$0xf]
    %v855 = vld [vmem:[%s852 + $0x8] sm:$0xf]
    %v859 = vunpack.c.l.b16 %v853
    %v860 = vunpack.c.l.b16 %v854
    %v861 = vunpack.c.l.b16 %v855
    %v862 = vpack.c.b16 %v860, %v859
    %v863 = vpack.c.b16 %v861, %v861
    %v866 = vsel %vm641, %v851, 0
    %v869 = vsel %vm645, %v863, 0
    %871 = vmatprep.subr.bf16.mxu0 0
    %872 = vmatpush1.bf16.msra.mxu0 %v862
    %873 = vmatprep.subr.bf16.mxu0 0
    %874 = vmatpush1.bf16.msra.mxu0 %v869
    %875 = vmatprep.subr.bf16.mxu0 0
    %876 = vmatpush1.bf16.msra.mxu0 0
    %877 = vmatprep.subr.bf16.mxu0 0
    %878 = vmatpush1.bf16.msra.mxu0 0
    %879 = vmatprep.subr.bf16.mxu0 0
    %880 = vmatpush1.bf16.msra.mxu0 0
    %881 = vmatprep.subr.bf16.mxu0 0
    %882 = vmatpush1.bf16.msra.mxu0 0
    %883 = vmatprep.subr.bf16.mxu0 0
    %884 = vmatpush1.bf16.msra.mxu0 0
    %885 = vmatprep.subr.bf16.mxu0 0
    %886 = vmatpush1.bf16.msra.mxu0 0
    %887 = vmatprep.subr.bf16.mxu0 0
    %888 = vmatpush1.bf16.msra.mxu0 0
    %889 = vmatprep.subr.bf16.mxu0 0
    %890 = vmatpush1.bf16.msra.mxu0 0
    %891 = vmatprep.subr.bf16.mxu0 0
    %892 = vmatpush1.bf16.msra.mxu0 0
    %893 = vmatprep.subr.bf16.mxu0 0
    %894 = vmatpush1.bf16.msra.mxu0 0
    %895 = vmatprep.subr.bf16.mxu0 0
    %896 = vmatpush1.bf16.msra.mxu0 0
    %897 = vmatprep.subr.bf16.mxu0 0
    %898 = vmatpush1.bf16.msra.mxu0 0
    %899 = vmatprep.subr.bf16.mxu0 0
    %900 = vmatpush1.bf16.msra.mxu0 0
    %901 = vmatprep.subr.bf16.mxu0 0
    %902 = vmatpush1.bf16.msra.mxu0 0
    %903 = vmatprep.mubr.bf16.mxu0 0
    %904 = vmatmul.mubr.bf16.gmra.mrb[0].mxu0 %v866
    %v905 = vpop.f32.mrb[0].mxu0
    %v906 = vadd.f32 0.0, %v905
    %v907 = vpop.f32.mrb[0].mxu0
    %v908 = vpop.f32.mrb[0].mxu0
    %v909 = vpop.f32.mrb[0].mxu0
    %910 = vdwg.mxu0
    %v911 = vadd.f32 %v739, %v906
    %v912 = vld [vmem:[%s23] sm:$0x1]
    %v914 = vlaneseq
    %v915 = vshrl.u32 %v914, 7
    %v916 = vsub.s32 0, %v915
    %v917 = vrot.slane %v912, %v916
    %v919 = vadd.f32 %v911, %v917
    %v920 = vmax.f32 %v919, 0.0
    %v921 = vpack.c.bf16 %v920, %v920
    %s922 = scalar_lea.vmem %s29, 16
    %v923 = vld [vmem:[%s922] sm:$0xf]
    %v924 = vld [vmem:[%s922 + $0x4] sm:$0xf]
    %v925 = vld [vmem:[%s922 + $0x8] sm:$0xf]
    %v926 = vld [vmem:[%s922 + $0xc] sm:$0xf]
    %v927 = vld [vmem:[%s9] sm:$0xf]
    %vm928 = vcmask 64512
    %v930 = vsel %vm928, %v927, 0
    %v933 = vsel %vm645, %v921, 0
    %935 = vmatprep.subr.bf16.mxu0 0
    %936 = vmatpush1.bf16.msra.mxu0 %v933
    %937 = vmatprep.subr.bf16.mxu0 0
    %938 = vmatpush1.bf16.msra.mxu0 0
    %939 = vmatprep.subr.bf16.mxu0 0
    %940 = vmatpush1.bf16.msra.mxu0 0
    %941 = vmatprep.subr.bf16.mxu0 0
    %942 = vmatpush1.bf16.msra.mxu0 0
    %943 = vmatprep.subr.bf16.mxu0 0
    %944 = vmatpush1.bf16.msra.mxu0 0
    %945 = vmatprep.subr.bf16.mxu0 0
    %946 = vmatpush1.bf16.msra.mxu0 0
    %947 = vmatprep.subr.bf16.mxu0 0
    %948 = vmatpush1.bf16.msra.mxu0 0
    %949 = vmatprep.subr.bf16.mxu0 0
    %950 = vmatpush1.bf16.msra.mxu0 0
    %951 = vmatprep.subr.bf16.mxu0 0
    %952 = vmatpush1.bf16.msra.mxu0 0
    %953 = vmatprep.subr.bf16.mxu0 0
    %954 = vmatpush1.bf16.msra.mxu0 0
    %955 = vmatprep.subr.bf16.mxu0 0
    %956 = vmatpush1.bf16.msra.mxu0 0
    %957 = vmatprep.subr.bf16.mxu0 0
    %958 = vmatpush1.bf16.msra.mxu0 0
    %959 = vmatprep.subr.bf16.mxu0 0
    %960 = vmatpush1.bf16.msra.mxu0 0
    %961 = vmatprep.subr.bf16.mxu0 0
    %962 = vmatpush1.bf16.msra.mxu0 0
    %963 = vmatprep.subr.bf16.mxu0 0
    %964 = vmatpush1.bf16.msra.mxu0 0
    %965 = vmatprep.subr.bf16.mxu0 0
    %966 = vmatpush1.bf16.msra.mxu0 0
    %967 = vmatprep.mubr.bf16.mxu0 0
    %968 = vmatmul.mubr.bf16.gmra.mrb[0].mxu0 %v930
    %v969 = vpop.f32.mrb[0].mxu0
    %v970 = vadd.f32 0.0, %v969
    %v971 = vpop.f32.mrb[0].mxu0
    %v972 = vpop.f32.mrb[0].mxu0
    %v973 = vpop.f32.mrb[0].mxu0
    %974 = vdwg.mxu0
    %v975 = vpack.c.bf16 %v970, %v970
    %v976 = vld [vmem:[%s29] sm:$0xf]
    %v977 = vld [vmem:[%s29 + $0x4] sm:$0xf]
    %v978 = vld [vmem:[%s29 + $0x8] sm:$0xf]
    %v979 = vld [vmem:[%s29 + $0xc] sm:$0xf]
    %v984 = vunpack.c.l.b16 %v976
    %v985 = vunpack.c.l.b16 %v977
    %v986 = vunpack.c.l.b16 %v978
    %v987 = vunpack.c.l.b16 %v979
    %v988 = vpack.c.b16 %v985, %v984
    %v989 = vpack.c.b16 %v987, %v986
    %vm992 = vcmask 261120
    %v994 = vsel %vm992, %v975, 0
    %996 = vmatprep.subr.bf16.mxu0 0
    %997 = vmatpush1.bf16.msra.mxu0 %v988
    %998 = vmatprep.subr.bf16.mxu0 0
    %999 = vmatpush1.bf16.msra.mxu0 %v989
    %1000 = vmatprep.subr.bf16.mxu0 0
    %1001 = vmatpush1.bf16.msra.mxu0 0
    %1002 = vmatprep.subr.bf16.mxu0 0
    %1003 = vmatpush1.bf16.msra.mxu0 0
    %1004 = vmatprep.subr.bf16.mxu0 0
    %1005 = vmatpush1.bf16.msra.mxu0 0
    %1006 = vmatprep.subr.bf16.mxu0 0
    %1007 = vmatpush1.bf16.msra.mxu0 0
    %1008 = vmatprep.subr.bf16.mxu0 0
    %1009 = vmatpush1.bf16.msra.mxu0 0
    %1010 = vmatprep.subr.bf16.mxu0 0
    %1011 = vmatpush1.bf16.msra.mxu0 0
    %1012 = vmatprep.subr.bf16.mxu0 0
    %1013 = vmatpush1.bf16.msra.mxu0 0
    %1014 = vmatprep.subr.bf16.mxu0 0
    %1015 = vmatpush1.bf16.msra.mxu0 0
    %1016 = vmatprep.subr.bf16.mxu0 0
    %1017 = vmatpush1.bf16.msra.mxu0 0
    %1018 = vmatprep.subr.bf16.mxu0 0
    %1019 = vmatpush1.bf16.msra.mxu0 0
    %1020 = vmatprep.subr.bf16.mxu0 0
    %1021 = vmatpush1.bf16.msra.mxu0 0
    %1022 = vmatprep.subr.bf16.mxu0 0
    %1023 = vmatpush1.bf16.msra.mxu0 0
    %1024 = vmatprep.subr.bf16.mxu0 0
    %1025 = vmatpush1.bf16.msra.mxu0 0
    %1026 = vmatprep.subr.bf16.mxu0 0
    %1027 = vmatpush1.bf16.msra.mxu0 0
    %1028 = vmatprep.mubr.bf16.mxu0 0
    %1029 = vmatmul.mubr.bf16.gmra.mrb[0].mxu0 %v994
    %v1030 = vpop.f32.mrb[0].mxu0
    %v1031 = vadd.f32 0.0, %v1030
    %v1032 = vpop.f32.mrb[0].mxu0
    %v1033 = vpop.f32.mrb[0].mxu0
    %v1034 = vpop.f32.mrb[0].mxu0
    %1035 = vdwg.mxu0
    %v1040 = vunpack.c.l.b16 %v923
    %v1041 = vunpack.c.l.b16 %v924
    %v1042 = vunpack.c.l.b16 %v925
    %v1043 = vunpack.c.l.b16 %v926
    %v1044 = vpack.c.b16 %v1041, %v1040
    %v1045 = vpack.c.b16 %v1043, %v1042
    %v1048 = vsel %vm992, %v921, 0
    %1050 = vmatprep.subr.bf16.mxu0 0
    %1051 = vmatpush1.bf16.msra.mxu0 %v1044
    %1052 = vmatprep.subr.bf16.mxu0 0
    %1053 = vmatpush1.bf16.msra.mxu0 %v1045
    %1054 = vmatprep.subr.bf16.mxu0 0
    %1055 = vmatpush1.bf16.msra.mxu0 0
    %1056 = vmatprep.subr.bf16.mxu0 0
    %1057 = vmatpush1.bf16.msra.mxu0 0
    %1058 = vmatprep.subr.bf16.mxu0 0
    %1059 = vmatpush1.bf16.msra.mxu0 0
    %1060 = vmatprep.subr.bf16.mxu0 0
    %1061 = vmatpush1.bf16.msra.mxu0 0
    %1062 = vmatprep.subr.bf16.mxu0 0
    %1063 = vmatpush1.bf16.msra.mxu0 0
    %1064 = vmatprep.subr.bf16.mxu0 0
    %1065 = vmatpush1.bf16.msra.mxu0 0
    %1066 = vmatprep.subr.bf16.mxu0 0
    %1067 = vmatpush1.bf16.msra.mxu0 0
    %1068 = vmatprep.subr.bf16.mxu0 0
    %1069 = vmatpush1.bf16.msra.mxu0 0
    %1070 = vmatprep.subr.bf16.mxu0 0
    %1071 = vmatpush1.bf16.msra.mxu0 0
    %1072 = vmatprep.subr.bf16.mxu0 0
    %1073 = vmatpush1.bf16.msra.mxu0 0
    %1074 = vmatprep.subr.bf16.mxu0 0
    %1075 = vmatpush1.bf16.msra.mxu0 0
    %1076 = vmatprep.subr.bf16.mxu0 0
    %1077 = vmatpush1.bf16.msra.mxu0 0
    %1078 = vmatprep.subr.bf16.mxu0 0
    %1079 = vmatpush1.bf16.msra.mxu0 0
    %1080 = vmatprep.subr.bf16.mxu0 0
    %1081 = vmatpush1.bf16.msra.mxu0 0
    %1082 = vmatprep.mubr.bf16.mxu0 0
    %1083 = vmatmul.mubr.bf16.gmra.mrb[0].mxu0 %v1048
    %v1084 = vpop.f32.mrb[0].mxu0
    %v1085 = vadd.f32 %v1031, %v1084
    %v1086 = vpop.f32.mrb[0].mxu0
    %v1087 = vpop.f32.mrb[0].mxu0
    %v1088 = vpop.f32.mrb[0].mxu0
    %1089 = vdwg.mxu0
    %s1090 = scalar_lea.vmem %s9, 4
    %v1091 = vld [vmem:[%s1090] sm:$0xf]
    %v1093 = vsel %vm928, %v1091, 0
    %1095 = vmatprep.subr.bf16.mxu0 0
    %1096 = vmatpush1.bf16.msra.mxu0 %v933
    %1097 = vmatprep.subr.bf16.mxu0 0
    %1098 = vmatpush1.bf16.msra.mxu0 0
    %1099 = vmatprep.subr.bf16.mxu0 0
    %1100 = vmatpush1.bf16.msra.mxu0 0
    %1101 = vmatprep.subr.bf16.mxu0 0
    %1102 = vmatpush1.bf16.msra.mxu0 0
    %1103 = vmatprep.subr.bf16.mxu0 0
    %1104 = vmatpush1.bf16.msra.mxu0 0
    %1105 = vmatprep.subr.bf16.mxu0 0
    %1106 = vmatpush1.bf16.msra.mxu0 0
    %1107 = vmatprep.subr.bf16.mxu0 0
    %1108 = vmatpush1.bf16.msra.mxu0 0
    %1109 = vmatprep.subr.bf16.mxu0 0
    %1110 = vmatpush1.bf16.msra.mxu0 0
    %1111 = vmatprep.subr.bf16.mxu0 0
    %1112 = vmatpush1.bf16.msra.mxu0 0
    %1113 = vmatprep.subr.bf16.mxu0 0
    %1114 = vmatpush1.bf16.msra.mxu0 0
    %1115 = vmatprep.subr.bf16.mxu0 0
    %1116 = vmatpush1.bf16.msra.mxu0 0
    %1117 = vmatprep.subr.bf16.mxu0 0
    %1118 = vmatpush1.bf16.msra.mxu0 0
    %1119 = vmatprep.subr.bf16.mxu0 0
    %1120 = vmatpush1.bf16.msra.mxu0 0
    %1121 = vmatprep.subr.bf16.mxu0 0
    %1122 = vmatpush1.bf16.msra.mxu0 0
    %1123 = vmatprep.subr.bf16.mxu0 0
    %1124 = vmatpush1.bf16.msra.mxu0 0
    %1125 = vmatprep.subr.bf16.mxu0 0
    %1126 = vmatpush1.bf16.msra.mxu0 0
    %1127 = vmatprep.mubr.bf16.mxu0 0
    %1128 = vmatmul.mubr.bf16.gmra.mrb[0].mxu0 %v1093
    %v1129 = vpop.f32.mrb[0].mxu0
    %v1130 = vadd.f32 0.0, %v1129
    %v1131 = vpop.f32.mrb[0].mxu0
    %v1132 = vpop.f32.mrb[0].mxu0
    %v1133 = vpop.f32.mrb[0].mxu0
    %1134 = vdwg.mxu0
    %v1135 = vpack.c.bf16 %v1130, %v1130
    %s1136 = scalar_lea.vmem %s29, 32
    %v1137 = vld [vmem:[%s1136] sm:$0xf]
    %v1138 = vld [vmem:[%s1136 + $0x4] sm:$0xf]
    %v1139 = vld [vmem:[%s1136 + $0x8] sm:$0xf]
    %v1140 = vld [vmem:[%s1136 + $0xc] sm:$0xf]
    %v1145 = vunpack.c.l.b16 %v1137
    %v1146 = vunpack.c.l.b16 %v1138
    %v1147 = vunpack.c.l.b16 %v1139
    %v1148 = vunpack.c.l.b16 %v1140
    %v1149 = vpack.c.b16 %v1146, %v1145
    %v1150 = vpack.c.b16 %v1148, %v1147
    %v1154 = vsel %vm992, %v1135, 0
    %1156 = vmatprep.subr.bf16.mxu0 0
    %1157 = vmatpush1.bf16.msra.mxu0 %v1149
    %1158 = vmatprep.subr.bf16.mxu0 0
    %1159 = vmatpush1.bf16.msra.mxu0 %v1150
    %1160 = vmatprep.subr.bf16.mxu0 0
    %1161 = vmatpush1.bf16.msra.mxu0 0
    %1162 = vmatprep.subr.bf16.mxu0 0
    %1163 = vmatpush1.bf16.msra.mxu0 0
    %1164 = vmatprep.subr.bf16.mxu0 0
    %1165 = vmatpush1.bf16.msra.mxu0 0
    %1166 = vmatprep.subr.bf16.mxu0 0
    %1167 = vmatpush1.bf16.msra.mxu0 0
    %1168 = vmatprep.subr.bf16.mxu0 0
    %1169 = vmatpush1.bf16.msra.mxu0 0
    %1170 = vmatprep.subr.bf16.mxu0 0
    %1171 = vmatpush1.bf16.msra.mxu0 0
    %1172 = vmatprep.subr.bf16.mxu0 0
    %1173 = vmatpush1.bf16.msra.mxu0 0
    %1174 = vmatprep.subr.bf16.mxu0 0
    %1175 = vmatpush1.bf16.msra.mxu0 0
    %1176 = vmatprep.subr.bf16.mxu0 0
    %1177 = vmatpush1.bf16.msra.mxu0 0
    %1178 = vmatprep.subr.bf16.mxu0 0
    %1179 = vmatpush1.bf16.msra.mxu0 0
    %1180 = vmatprep.subr.bf16.mxu0 0
    %1181 = vmatpush1.bf16.msra.mxu0 0
    %1182 = vmatprep.subr.bf16.mxu0 0
    %1183 = vmatpush1.bf16.msra.mxu0 0
    %1184 = vmatprep.subr.bf16.mxu0 0
    %1185 = vmatpush1.bf16.msra.mxu0 0
    %1186 = vmatprep.subr.bf16.mxu0 0
    %1187 = vmatpush1.bf16.msra.mxu0 0
    %1188 = vmatprep.mubr.bf16.mxu0 0
    %1189 = vmatmul.mubr.bf16.gmra.mrb[0].mxu0 %v1154
    %v1190 = vpop.f32.mrb[0].mxu0
    %v1191 = vadd.f32 0.0, %v1190
    %v1192 = vpop.f32.mrb[0].mxu0
    %v1193 = vpop.f32.mrb[0].mxu0
    %v1194 = vpop.f32.mrb[0].mxu0
    %1195 = vdwg.mxu0
    %v1196 = vadd.f32 %v1085, %v1191
    %v1197 = vld [vmem:[%s31] sm:$0x1]
    %v1199 = vlaneseq
    %v1200 = vshrl.u32 %v1199, 7
    %v1201 = vsub.s32 0, %v1200
    %v1202 = vrot.slane %v1197, %v1201
    %v1204 = vadd.f32 %v1196, %v1202
    %v1205 = vadd.f32 %v1204, %v801
    %v1206 = vmax.f32 %v1205, 0.0
    %v1207 = vpack.c.bf16 %v1206, %v1206
    %v1208 = vld [vmem:[%s11] sm:$0x3]
    %v1210 = vsel %vm928, %v1208, 0
    %v1213 = vsel %vm645, %v1207, 0
    %1215 = vmatprep.subr.bf16.mxu0 0
    %1216 = vmatpush1.bf16.msra.mxu0 %v1213
    %1217 = vmatprep.subr.bf16.mxu0 0
    %1218 = vmatpush1.bf16.msra.mxu0 0
    %1219 = vmatprep.subr.bf16.mxu0 0
    %1220 = vmatpush1.bf16.msra.mxu0 0
    %1221 = vmatprep.subr.bf16.mxu0 0
    %1222 = vmatpush1.bf16.msra.mxu0 0
    %1223 = vmatprep.subr.bf16.mxu0 0
    %1224 = vmatpush1.bf16.msra.mxu0 0
    %1225 = vmatprep.subr.bf16.mxu0 0
    %1226 = vmatpush1.bf16.msra.mxu0 0
    %1227 = vmatprep.subr.bf16.mxu0 0
    %1228 = vmatpush1.bf16.msra.mxu0 0
    %1229 = vmatprep.subr.bf16.mxu0 0
    %1230 = vmatpush1.bf16.msra.mxu0 0
    %1231 = vmatprep.subr.bf16.mxu0 0
    %1232 = vmatpush1.bf16.msra.mxu0 0
    %1233 = vmatprep.subr.bf16.mxu0 0
    %1234 = vmatpush1.bf16.msra.mxu0 0
    %1235 = vmatprep.subr.bf16.mxu0 0
    %1236 = vmatpush1.bf16.msra.mxu0 0
    %1237 = vmatprep.subr.bf16.mxu0 0
    %1238 = vmatpush1.bf16.msra.mxu0 0
    %1239 = vmatprep.subr.bf16.mxu0 0
    %1240 = vmatpush1.bf16.msra.mxu0 0
    %1241 = vmatprep.subr.bf16.mxu0 0
    %1242 = vmatpush1.bf16.msra.mxu0 0
    %1243 = vmatprep.subr.bf16.mxu0 0
    %1244 = vmatpush1.bf16.msra.mxu0 0
    %1245 = vmatprep.subr.bf16.mxu0 0
    %1246 = vmatpush1.bf16.msra.mxu0 0
    %1247 = vmatprep.mubr.bf16.mxu0 0
    %1248 = vmatmul.mubr.bf16.gmra.mrb[0].mxu0 %v1210
    %v1249 = vpop.f32.mrb[0].mxu0
    %v1250 = vadd.f32 0.0, %v1249
    %v1251 = vpop.f32.mrb[0].mxu0
    %v1252 = vpop.f32.mrb[0].mxu0
    %v1253 = vpop.f32.mrb[0].mxu0
    %1254 = vdwg.mxu0
    %v1255 = vpack.c.bf16 %v1250, %v1250
    %v1256 = vld [vmem:[%s33] sm:$0xf]
    %v1257 = vld [vmem:[%s33 + $0x4] sm:$0xf]
    %v1258 = vld [vmem:[%s33 + $0x8] sm:$0xf]
    %v1259 = vld [vmem:[%s33 + $0xc] sm:$0xf]
    %s1260 = scalar_lea.vmem %s11, 2
    %v1261 = vld [vmem:[%s1260] sm:$0x3]
    %v1263 = vsel %vm928, %v1261, 0
    %1265 = vmatprep.subr.bf16.mxu0 0
    %1266 = vmatpush1.bf16.msra.mxu0 %v1213
    %1267 = vmatprep.subr.bf16.mxu0 0
    %1268 = vmatpush1.bf16.msra.mxu0 0
    %1269 = vmatprep.subr.bf16.mxu0 0
    %1270 = vmatpush1.bf16.msra.mxu0 0
    %1271 = vmatprep.subr.bf16.mxu0 0
    %1272 = vmatpush1.bf16.msra.mxu0 0
    %1273 = vmatprep.subr.bf16.mxu0 0
    %1274 = vmatpush1.bf16.msra.mxu0 0
    %1275 = vmatprep.subr.bf16.mxu0 0
    %1276 = vmatpush1.bf16.msra.mxu0 0
    %1277 = vmatprep.subr.bf16.mxu0 0
    %1278 = vmatpush1.bf16.msra.mxu0 0
    %1279 = vmatprep.subr.bf16.mxu0 0
    %1280 = vmatpush1.bf16.msra.mxu0 0
    %1281 = vmatprep.subr.bf16.mxu0 0
    %1282 = vmatpush1.bf16.msra.mxu0 0
    %1283 = vmatprep.subr.bf16.mxu0 0
    %1284 = vmatpush1.bf16.msra.mxu0 0
    %1285 = vmatprep.subr.bf16.mxu0 0
    %1286 = vmatpush1.bf16.msra.mxu0 0
    %1287 = vmatprep.subr.bf16.mxu0 0
    %1288 = vmatpush1.bf16.msra.mxu0 0
    %1289 = vmatprep.subr.bf16.mxu0 0
    %1290 = vmatpush1.bf16.msra.mxu0 0
    %1291 = vmatprep.subr.bf16.mxu0 0
    %1292 = vmatpush1.bf16.msra.mxu0 0
    %1293 = vmatprep.subr.bf16.mxu0 0
    %1294 = vmatpush1.bf16.msra.mxu0 0
    %1295 = vmatprep.subr.bf16.mxu0 0
    %1296 = vmatpush1.bf16.msra.mxu0 0
    %1297 = vmatprep.mubr.bf16.mxu0 0
    %1298 = vmatmul.mubr.bf16.gmra.mrb[0].mxu0 %v1263
    %v1299 = vpop.f32.mrb[0].mxu0
    %v1300 = vadd.f32 0.0, %v1299
    %v1301 = vpop.f32.mrb[0].mxu0
    %v1302 = vpop.f32.mrb[0].mxu0
    %v1303 = vpop.f32.mrb[0].mxu0
    %1304 = vdwg.mxu0
    %v1305 = vpack.c.bf16 %v1300, %v1300
    %s1306 = scalar_lea.vmem %s33, 16
    %v1307 = vld [vmem:[%s1306] sm:$0xf]
    %v1308 = vld [vmem:[%s1306 + $0x4] sm:$0xf]
    %v1309 = vld [vmem:[%s1306 + $0x8] sm:$0xf]
    %v1310 = vld [vmem:[%s1306 + $0xc] sm:$0xf]
    %v1315 = vunpack.c.l.b16 %v1307
    %v1316 = vunpack.c.l.b16 %v1308
    %v1317 = vunpack.c.l.b16 %v1309
    %v1318 = vunpack.c.l.b16 %v1310
    %v1319 = vpack.c.b16 %v1316, %v1315
    %v1320 = vpack.c.b16 %v1318, %v1317
    %v1324 = vsel %vm992, %v1305, 0
    %1326 = vmatprep.subr.bf16.mxu0 0
    %1327 = vmatpush1.bf16.msra.mxu0 %v1319
    %1328 = vmatprep.subr.bf16.mxu0 0
    %1329 = vmatpush1.bf16.msra.mxu0 %v1320
    %1330 = vmatprep.subr.bf16.mxu0 0
    %1331 = vmatpush1.bf16.msra.mxu0 0
    %1332 = vmatprep.subr.bf16.mxu0 0
    %1333 = vmatpush1.bf16.msra.mxu0 0
    %1334 = vmatprep.subr.bf16.mxu0 0
    %1335 = vmatpush1.bf16.msra.mxu0 0
    %1336 = vmatprep.subr.bf16.mxu0 0
    %1337 = vmatpush1.bf16.msra.mxu0 0
    %1338 = vmatprep.subr.bf16.mxu0 0
    %1339 = vmatpush1.bf16.msra.mxu0 0
    %1340 = vmatprep.subr.bf16.mxu0 0
    %1341 = vmatpush1.bf16.msra.mxu0 0
    %1342 = vmatprep.subr.bf16.mxu0 0
    %1343 = vmatpush1.bf16.msra.mxu0 0
    %1344 = vmatprep.subr.bf16.mxu0 0
    %1345 = vmatpush1.bf16.msra.mxu0 0
    %1346 = vmatprep.subr.bf16.mxu0 0
    %1347 = vmatpush1.bf16.msra.mxu0 0
    %1348 = vmatprep.subr.bf16.mxu0 0
    %1349 = vmatpush1.bf16.msra.mxu0 0
    %1350 = vmatprep.subr.bf16.mxu0 0
    %1351 = vmatpush1.bf16.msra.mxu0 0
    %1352 = vmatprep.subr.bf16.mxu0 0
    %1353 = vmatpush1.bf16.msra.mxu0 0
    %1354 = vmatprep.subr.bf16.mxu0 0
    %1355 = vmatpush1.bf16.msra.mxu0 0
    %1356 = vmatprep.subr.bf16.mxu0 0
    %1357 = vmatpush1.bf16.msra.mxu0 0
    %1358 = vmatprep.mubr.bf16.mxu0 0
    %1359 = vmatmul.mubr.bf16.gmra.mrb[0].mxu0 %v1324
    %v1360 = vpop.f32.mrb[0].mxu0
    %v1361 = vadd.f32 0.0, %v1360
    %v1362 = vpop.f32.mrb[0].mxu0
    %v1363 = vpop.f32.mrb[0].mxu0
    %v1364 = vpop.f32.mrb[0].mxu0
    %1365 = vdwg.mxu0
    %v1370 = vunpack.c.l.b16 %v1256
    %v1371 = vunpack.c.l.b16 %v1257
    %v1372 = vunpack.c.l.b16 %v1258
    %v1373 = vunpack.c.l.b16 %v1259
    %v1374 = vpack.c.b16 %v1371, %v1370
    %v1375 = vpack.c.b16 %v1373, %v1372
    %v1379 = vsel %vm992, %v1255, 0
    %1381 = vmatprep.subr.bf16.mxu0 0
    %1382 = vmatpush1.bf16.msra.mxu0 %v1374
    %1383 = vmatprep.subr.bf16.mxu0 0
    %1384 = vmatpush1.bf16.msra.mxu0 %v1375
    %1385 = vmatprep.subr.bf16.mxu0 0
    %1386 = vmatpush1.bf16.msra.mxu0 0
    %1387 = vmatprep.subr.bf16.mxu0 0
    %1388 = vmatpush1.bf16.msra.mxu0 0
    %1389 = vmatprep.subr.bf16.mxu0 0
    %1390 = vmatpush1.bf16.msra.mxu0 0
    %1391 = vmatprep.subr.bf16.mxu0 0
    %1392 = vmatpush1.bf16.msra.mxu0 0
    %1393 = vmatprep.subr.bf16.mxu0 0
    %1394 = vmatpush1.bf16.msra.mxu0 0
    %1395 = vmatprep.subr.bf16.mxu0 0
    %1396 = vmatpush1.bf16.msra.mxu0 0
    %1397 = vmatprep.subr.bf16.mxu0 0
    %1398 = vmatpush1.bf16.msra.mxu0 0
    %1399 = vmatprep.subr.bf16.mxu0 0
    %1400 = vmatpush1.bf16.msra.mxu0 0
    %1401 = vmatprep.subr.bf16.mxu0 0
    %1402 = vmatpush1.bf16.msra.mxu0 0
    %1403 = vmatprep.subr.bf16.mxu0 0
    %1404 = vmatpush1.bf16.msra.mxu0 0
    %1405 = vmatprep.subr.bf16.mxu0 0
    %1406 = vmatpush1.bf16.msra.mxu0 0
    %1407 = vmatprep.subr.bf16.mxu0 0
    %1408 = vmatpush1.bf16.msra.mxu0 0
    %1409 = vmatprep.subr.bf16.mxu0 0
    %1410 = vmatpush1.bf16.msra.mxu0 0
    %1411 = vmatprep.subr.bf16.mxu0 0
    %1412 = vmatpush1.bf16.msra.mxu0 0
    %1413 = vmatprep.mubr.bf16.mxu0 0
    %1414 = vmatmul.mubr.bf16.gmra.mrb[0].mxu0 %v1379
    %v1415 = vpop.f32.mrb[0].mxu0
    %v1416 = vadd.f32 %v1361, %v1415
    %v1417 = vpop.f32.mrb[0].mxu0
    %v1418 = vpop.f32.mrb[0].mxu0
    %v1419 = vpop.f32.mrb[0].mxu0
    %1420 = vdwg.mxu0
    %v1421 = vld [vmem:[%s37] sm:$0xf]
    %v1422 = vld [vmem:[%s37 + $0x4] sm:$0xf]
    %v1423 = vld [vmem:[%s37 + $0x8] sm:$0xf]
    %v1424 = vld [vmem:[%s37 + $0xc] sm:$0xf]
    %v1425 = vld [vmem:[%s39] sm:$0x1]
    %v1427 = vlaneseq
    %v1428 = vshrl.u32 %v1427, 7
    %v1429 = vsub.s32 0, %v1428
    %v1430 = vrot.slane %v1425, %v1429
    %v1436 = vunpack.c.l.b16 %v1421
    %v1437 = vunpack.c.l.b16 %v1422
    %v1438 = vunpack.c.l.b16 %v1423
    %v1439 = vunpack.c.l.b16 %v1424
    %v1440 = vpack.c.b16 %v1437, %v1436
    %v1441 = vpack.c.b16 %v1439, %v1438
    %1444 = vmatprep.subr.bf16.mxu0 0
    %1445 = vmatpush1.bf16.msra.mxu0 %v1440
    %1446 = vmatprep.subr.bf16.mxu0 0
    %1447 = vmatpush1.bf16.msra.mxu0 %v1441
    %1448 = vmatprep.subr.bf16.mxu0 0
    %1449 = vmatpush1.bf16.msra.mxu0 0
    %1450 = vmatprep.subr.bf16.mxu0 0
    %1451 = vmatpush1.bf16.msra.mxu0 0
    %1452 = vmatprep.subr.bf16.mxu0 0
    %1453 = vmatpush1.bf16.msra.mxu0 0
    %1454 = vmatprep.subr.bf16.mxu0 0
    %1455 = vmatpush1.bf16.msra.mxu0 0
    %1456 = vmatprep.subr.bf16.mxu0 0
    %1457 = vmatpush1.bf16.msra.mxu0 0
    %1458 = vmatprep.subr.bf16.mxu0 0
    %1459 = vmatpush1.bf16.msra.mxu0 0
    %1460 = vmatprep.subr.bf16.mxu0 0
    %1461 = vmatpush1.bf16.msra.mxu0 0
    %1462 = vmatprep.subr.bf16.mxu0 0
    %1463 = vmatpush1.bf16.msra.mxu0 0
    %1464 = vmatprep.subr.bf16.mxu0 0
    %1465 = vmatpush1.bf16.msra.mxu0 0
    %1466 = vmatprep.subr.bf16.mxu0 0
    %1467 = vmatpush1.bf16.msra.mxu0 0
    %1468 = vmatprep.subr.bf16.mxu0 0
    %1469 = vmatpush1.bf16.msra.mxu0 0
    %1470 = vmatprep.subr.bf16.mxu0 0
    %1471 = vmatpush1.bf16.msra.mxu0 0
    %1472 = vmatprep.subr.bf16.mxu0 0
    %1473 = vmatpush1.bf16.msra.mxu0 0
    %1474 = vmatprep.subr.bf16.mxu0 0
    %1475 = vmatpush1.bf16.msra.mxu0 0
    %1476 = vmatprep.mubr.bf16.mxu0 0
    %1477 = vmatmul.mubr.bf16.gmra.mrb[0].mxu0 %v1324
    %v1478 = vpop.f32.mrb[0].mxu0
    %v1479 = vadd.f32 %v1430, %v1478
    %v1480 = vpop.f32.mrb[0].mxu0
    %v1481 = vpop.f32.mrb[0].mxu0
    %v1482 = vpop.f32.mrb[0].mxu0
    %1483 = vdwg.mxu0
    %s1484 = scalar_lea.vmem %s11, 4
    %v1485 = vld [vmem:[%s1484] sm:$0x3]
    %v1487 = vsel %vm928, %v1485, 0
    %1489 = vmatprep.subr.bf16.mxu0 0
    %1490 = vmatpush1.bf16.msra.mxu0 %v1213
    %1491 = vmatprep.subr.bf16.mxu0 0
    %1492 = vmatpush1.bf16.msra.mxu0 0
    %1493 = vmatprep.subr.bf16.mxu0 0
    %1494 = vmatpush1.bf16.msra.mxu0 0
    %1495 = vmatprep.subr.bf16.mxu0 0
    %1496 = vmatpush1.bf16.msra.mxu0 0
    %1497 = vmatprep.subr.bf16.mxu0 0
    %1498 = vmatpush1.bf16.msra.mxu0 0
    %1499 = vmatprep.subr.bf16.mxu0 0
    %1500 = vmatpush1.bf16.msra.mxu0 0
    %1501 = vmatprep.subr.bf16.mxu0 0
    %1502 = vmatpush1.bf16.msra.mxu0 0
    %1503 = vmatprep.subr.bf16.mxu0 0
    %1504 = vmatpush1.bf16.msra.mxu0 0
    %1505 = vmatprep.subr.bf16.mxu0 0
    %1506 = vmatpush1.bf16.msra.mxu0 0
    %1507 = vmatprep.subr.bf16.mxu0 0
    %1508 = vmatpush1.bf16.msra.mxu0 0
    %1509 = vmatprep.subr.bf16.mxu0 0
    %1510 = vmatpush1.bf16.msra.mxu0 0
    %1511 = vmatprep.subr.bf16.mxu0 0
    %1512 = vmatpush1.bf16.msra.mxu0 0
    %1513 = vmatprep.subr.bf16.mxu0 0
    %1514 = vmatpush1.bf16.msra.mxu0 0
    %1515 = vmatprep.subr.bf16.mxu0 0
    %1516 = vmatpush1.bf16.msra.mxu0 0
    %1517 = vmatprep.subr.bf16.mxu0 0
    %1518 = vmatpush1.bf16.msra.mxu0 0
    %1519 = vmatprep.subr.bf16.mxu0 0
    %1520 = vmatpush1.bf16.msra.mxu0 0
    %1521 = vmatprep.mubr.bf16.mxu0 0
    %1522 = vmatmul.mubr.bf16.gmra.mrb[0].mxu0 %v1487
    %v1523 = vpop.f32.mrb[0].mxu0
    %v1524 = vadd.f32 0.0, %v1523
    %v1525 = vpop.f32.mrb[0].mxu0
    %v1526 = vpop.f32.mrb[0].mxu0
    %v1527 = vpop.f32.mrb[0].mxu0
    %1528 = vdwg.mxu0
    %v1529 = vpack.c.bf16 %v1524, %v1524
    %s1530 = scalar_lea.vmem %s33, 32
    %v1531 = vld [vmem:[%s1530] sm:$0xf]
    %v1532 = vld [vmem:[%s1530 + $0x4] sm:$0xf]
    %v1533 = vld [vmem:[%s1530 + $0x8] sm:$0xf]
    %v1534 = vld [vmem:[%s1530 + $0xc] sm:$0xf]
    %v1539 = vunpack.c.l.b16 %v1531
    %v1540 = vunpack.c.l.b16 %v1532
    %v1541 = vunpack.c.l.b16 %v1533
    %v1542 = vunpack.c.l.b16 %v1534
    %v1543 = vpack.c.b16 %v1540, %v1539
    %v1544 = vpack.c.b16 %v1542, %v1541
    %v1548 = vsel %vm992, %v1529, 0
    %1550 = vmatprep.subr.bf16.mxu0 0
    %1551 = vmatpush1.bf16.msra.mxu0 %v1543
    %1552 = vmatprep.subr.bf16.mxu0 0
    %1553 = vmatpush1.bf16.msra.mxu0 %v1544
    %1554 = vmatprep.subr.bf16.mxu0 0
    %1555 = vmatpush1.bf16.msra.mxu0 0
    %1556 = vmatprep.subr.bf16.mxu0 0
    %1557 = vmatpush1.bf16.msra.mxu0 0
    %1558 = vmatprep.subr.bf16.mxu0 0
    %1559 = vmatpush1.bf16.msra.mxu0 0
    %1560 = vmatprep.subr.bf16.mxu0 0
    %1561 = vmatpush1.bf16.msra.mxu0 0
    %1562 = vmatprep.subr.bf16.mxu0 0
    %1563 = vmatpush1.bf16.msra.mxu0 0
    %1564 = vmatprep.subr.bf16.mxu0 0
    %1565 = vmatpush1.bf16.msra.mxu0 0
    %1566 = vmatprep.subr.bf16.mxu0 0
    %1567 = vmatpush1.bf16.msra.mxu0 0
    %1568 = vmatprep.subr.bf16.mxu0 0
    %1569 = vmatpush1.bf16.msra.mxu0 0
    %1570 = vmatprep.subr.bf16.mxu0 0
    %1571 = vmatpush1.bf16.msra.mxu0 0
    %1572 = vmatprep.subr.bf16.mxu0 0
    %1573 = vmatpush1.bf16.msra.mxu0 0
    %1574 = vmatprep.subr.bf16.mxu0 0
    %1575 = vmatpush1.bf16.msra.mxu0 0
    %1576 = vmatprep.subr.bf16.mxu0 0
    %1577 = vmatpush1.bf16.msra.mxu0 0
    %1578 = vmatprep.subr.bf16.mxu0 0
    %1579 = vmatpush1.bf16.msra.mxu0 0
    %1580 = vmatprep.subr.bf16.mxu0 0
    %1581 = vmatpush1.bf16.msra.mxu0 0
    %1582 = vmatprep.mubr.bf16.mxu0 0
    %1583 = vmatmul.mubr.bf16.gmra.mrb[0].mxu0 %v1548
    %v1584 = vpop.f32.mrb[0].mxu0
    %v1585 = vadd.f32 0.0, %v1584
    %v1586 = vpop.f32.mrb[0].mxu0
    %v1587 = vpop.f32.mrb[0].mxu0
    %v1588 = vpop.f32.mrb[0].mxu0
    %1589 = vdwg.mxu0
    %v1590 = vadd.f32 %v1416, %v1585
    %v1591 = vld [vmem:[%s35] sm:$0x1]
    %v1593 = vlaneseq
    %v1594 = vshrl.u32 %v1593, 7
    %v1595 = vsub.s32 0, %v1594
    %v1596 = vrot.slane %v1591, %v1595
    %v1598 = vadd.f32 %v1590, %v1596
    %v1599 = vmax.f32 %v1598, 0.0
    %v1600 = vpack.c.bf16 %v1599, %v1599
    %s1601 = scalar_lea.vmem %s41, 24
    %v1602 = vld [vmem:[%s1601] sm:$0xf]
    %v1603 = vld [vmem:[%s1601 + $0x4] sm:$0xf]
    %v1604 = vld [vmem:[%s1601 + $0x8] sm:$0xf]
    %v1605 = vld [vmem:[%s1601 + $0xc] sm:$0xf]
    %v1606 = vld [vmem:[%s1601 + $0x10] sm:$0xf]
    %v1607 = vld [vmem:[%s1601 + $0x14] sm:$0xf]
    %v1608 = vld [vmem:[%s13] sm:$0x3]
    %vm1609 = vcmask 31744
    %v1611 = vsel %vm1609, %v1608, 0
    %vm1613 = vcmask 1041408
    %v1615 = vsel %vm1613, %v1600, 0
    %1617 = vmatprep.subr.bf16.mxu0 0
    %1618 = vmatpush1.bf16.msra.mxu0 %v1615
    %1619 = vmatprep.subr.bf16.mxu0 0
    %1620 = vmatpush1.bf16.msra.mxu0 0
    %1621 = vmatprep.subr.bf16.mxu0 0
    %1622 = vmatpush1.bf16.msra.mxu0 0
    %1623 = vmatprep.subr.bf16.mxu0 0
    %1624 = vmatpush1.bf16.msra.mxu0 0
    %1625 = vmatprep.subr.bf16.mxu0 0
    %1626 = vmatpush1.bf16.msra.mxu0 0
    %1627 = vmatprep.subr.bf16.mxu0 0
    %1628 = vmatpush1.bf16.msra.mxu0 0
    %1629 = vmatprep.subr.bf16.mxu0 0
    %1630 = vmatpush1.bf16.msra.mxu0 0
    %1631 = vmatprep.subr.bf16.mxu0 0
    %1632 = vmatpush1.bf16.msra.mxu0 0
    %1633 = vmatprep.subr.bf16.mxu0 0
    %1634 = vmatpush1.bf16.msra.mxu0 0
    %1635 = vmatprep.subr.bf16.mxu0 0
    %1636 = vmatpush1.bf16.msra.mxu0 0
    %1637 = vmatprep.subr.bf16.mxu0 0
    %1638 = vmatpush1.bf16.msra.mxu0 0
    %1639 = vmatprep.subr.bf16.mxu0 0
    %1640 = vmatpush1.bf16.msra.mxu0 0
    %1641 = vmatprep.subr.bf16.mxu0 0
    %1642 = vmatpush1.bf16.msra.mxu0 0
    %1643 = vmatprep.subr.bf16.mxu0 0
    %1644 = vmatpush1.bf16.msra.mxu0 0
    %1645 = vmatprep.subr.bf16.mxu0 0
    %1646 = vmatpush1.bf16.msra.mxu0 0
    %1647 = vmatprep.subr.bf16.mxu0 0
    %1648 = vmatpush1.bf16.msra.mxu0 0
    %1649 = vmatprep.mubr.bf16.mxu0 0
    %1650 = vmatmul.mubr.bf16.gmra.mrb[0].mxu0 %v1611
    %v1651 = vpop.f32.mrb[0].mxu0
    %v1652 = vadd.f32 0.0, %v1651
    %v1653 = vpop.f32.mrb[0].mxu0
    %v1654 = vpop.f32.mrb[0].mxu0
    %v1655 = vpop.f32.mrb[0].mxu0
    %1656 = vdwg.mxu0
    %v1657 = vpack.c.bf16 %v1652, %v1652
    %v1658 = vld [vmem:[%s41] sm:$0xf]
    %v1659 = vld [vmem:[%s41 + $0x4] sm:$0xf]
    %v1660 = vld [vmem:[%s41 + $0x8] sm:$0xf]
    %v1661 = vld [vmem:[%s41 + $0xc] sm:$0xf]
    %v1662 = vld [vmem:[%s41 + $0x10] sm:$0xf]
    %v1663 = vld [vmem:[%s41 + $0x14] sm:$0xf]
    %v1670 = vunpack.c.l.b16 %v1658
    %v1671 = vunpack.c.l.b16 %v1659
    %v1672 = vunpack.c.l.b16 %v1660
    %v1673 = vunpack.c.l.b16 %v1661
    %v1674 = vunpack.c.l.b16 %v1662
    %v1675 = vunpack.c.l.b16 %v1663
    %v1676 = vpack.c.b16 %v1671, %v1670
    %v1677 = vpack.c.b16 %v1673, %v1672
    %v1678 = vpack.c.b16 %v1675, %v1674
    %vm1682 = vcmask 392192
    %v1684 = vsel %vm1682, %v1657, 0
    %1686 = vmatprep.subr.bf16.mxu0 0
    %1687 = vmatpush1.bf16.msra.mxu0 %v1676
    %1688 = vmatprep.subr.bf16.mxu0 0
    %1689 = vmatpush1.bf16.msra.mxu0 %v1677
    %1690 = vmatprep.subr.bf16.mxu0 0
    %1691 = vmatpush1.bf16.msra.mxu0 %v1678
    %1692 = vmatprep.subr.bf16.mxu0 0
    %1693 = vmatpush1.bf16.msra.mxu0 0
    %1694 = vmatprep.subr.bf16.mxu0 0
    %1695 = vmatpush1.bf16.msra.mxu0 0
    %1696 = vmatprep.subr.bf16.mxu0 0
    %1697 = vmatpush1.bf16.msra.mxu0 0
    %1698 = vmatprep.subr.bf16.mxu0 0
    %1699 = vmatpush1.bf16.msra.mxu0 0
    %1700 = vmatprep.subr.bf16.mxu0 0
    %1701 = vmatpush1.bf16.msra.mxu0 0
    %1702 = vmatprep.subr.bf16.mxu0 0
    %1703 = vmatpush1.bf16.msra.mxu0 0
    %1704 = vmatprep.subr.bf16.mxu0 0
    %1705 = vmatpush1.bf16.msra.mxu0 0
    %1706 = vmatprep.subr.bf16.mxu0 0
    %1707 = vmatpush1.bf16.msra.mxu0 0
    %1708 = vmatprep.subr.bf16.mxu0 0
    %1709 = vmatpush1.bf16.msra.mxu0 0
    %1710 = vmatprep.subr.bf16.mxu0 0
    %1711 = vmatpush1.bf16.msra.mxu0 0
    %1712 = vmatprep.subr.bf16.mxu0 0
    %1713 = vmatpush1.bf16.msra.mxu0 0
    %1714 = vmatprep.subr.bf16.mxu0 0
    %1715 = vmatpush1.bf16.msra.mxu0 0
    %1716 = vmatprep.subr.bf16.mxu0 0
    %1717 = vmatpush1.bf16.msra.mxu0 0
    %1718 = vmatprep.mubr.bf16.mxu0 0
    %1719 = vmatmul.mubr.bf16.gmra.mrb[0].mxu0 %v1684
    %v1720 = vpop.f32.mrb[0].mxu0
    %v1721 = vadd.f32 0.0, %v1720
    %v1722 = vpop.f32.mrb[0].mxu0
    %v1723 = vpop.f32.mrb[0].mxu0
    %v1724 = vpop.f32.mrb[0].mxu0
    %1725 = vdwg.mxu0
    %v1732 = vunpack.c.l.b16 %v1602
    %v1733 = vunpack.c.l.b16 %v1603
    %v1734 = vunpack.c.l.b16 %v1604
    %v1735 = vunpack.c.l.b16 %v1605
    %v1736 = vunpack.c.l.b16 %v1606
    %v1737 = vunpack.c.l.b16 %v1607
    %v1738 = vpack.c.b16 %v1733, %v1732
    %v1739 = vpack.c.b16 %v1735, %v1734
    %v1740 = vpack.c.b16 %v1737, %v1736
    %v1744 = vsel %vm1682, %v1600, 0
    %1746 = vmatprep.subr.bf16.mxu0 0
    %1747 = vmatpush1.bf16.msra.mxu0 %v1738
    %1748 = vmatprep.subr.bf16.mxu0 0
    %1749 = vmatpush1.bf16.msra.mxu0 %v1739
    %1750 = vmatprep.subr.bf16.mxu0 0
    %1751 = vmatpush1.bf16.msra.mxu0 %v1740
    %1752 = vmatprep.subr.bf16.mxu0 0
    %1753 = vmatpush1.bf16.msra.mxu0 0
    %1754 = vmatprep.subr.bf16.mxu0 0
    %1755 = vmatpush1.bf16.msra.mxu0 0
    %1756 = vmatprep.subr.bf16.mxu0 0
    %1757 = vmatpush1.bf16.msra.mxu0 0
    %1758 = vmatprep.subr.bf16.mxu0 0
    %1759 = vmatpush1.bf16.msra.mxu0 0
    %1760 = vmatprep.subr.bf16.mxu0 0
    %1761 = vmatpush1.bf16.msra.mxu0 0
    %1762 = vmatprep.subr.bf16.mxu0 0
    %1763 = vmatpush1.bf16.msra.mxu0 0
    %1764 = vmatprep.subr.bf16.mxu0 0
    %1765 = vmatpush1.bf16.msra.mxu0 0
    %1766 = vmatprep.subr.bf16.mxu0 0
    %1767 = vmatpush1.bf16.msra.mxu0 0
    %1768 = vmatprep.subr.bf16.mxu0 0
    %1769 = vmatpush1.bf16.msra.mxu0 0
    %1770 = vmatprep.subr.bf16.mxu0 0
    %1771 = vmatpush1.bf16.msra.mxu0 0
    %1772 = vmatprep.subr.bf16.mxu0 0
    %1773 = vmatpush1.bf16.msra.mxu0 0
    %1774 = vmatprep.subr.bf16.mxu0 0
    %1775 = vmatpush1.bf16.msra.mxu0 0
    %1776 = vmatprep.subr.bf16.mxu0 0
    %1777 = vmatpush1.bf16.msra.mxu0 0
    %1778 = vmatprep.mubr.bf16.mxu0 0
    %1779 = vmatmul.mubr.bf16.gmra.mrb[0].mxu0 %v1744
    %v1780 = vpop.f32.mrb[0].mxu0
    %v1781 = vadd.f32 %v1721, %v1780
    %v1782 = vpop.f32.mrb[0].mxu0
    %v1783 = vpop.f32.mrb[0].mxu0
    %v1784 = vpop.f32.mrb[0].mxu0
    %1785 = vdwg.mxu0
    %s1786 = scalar_lea.vmem %s13, 2
    %v1787 = vld [vmem:[%s1786] sm:$0x3]
    %v1789 = vsel %vm1609, %v1787, 0
    %1791 = vmatprep.subr.bf16.mxu0 0
    %1792 = vmatpush1.bf16.msra.mxu0 %v1615
    %1793 = vmatprep.subr.bf16.mxu0 0
    %1794 = vmatpush1.bf16.msra.mxu0 0
    %1795 = vmatprep.subr.bf16.mxu0 0
    %1796 = vmatpush1.bf16.msra.mxu0 0
    %1797 = vmatprep.subr.bf16.mxu0 0
    %1798 = vmatpush1.bf16.msra.mxu0 0
    %1799 = vmatprep.subr.bf16.mxu0 0
    %1800 = vmatpush1.bf16.msra.mxu0 0
    %1801 = vmatprep.subr.bf16.mxu0 0
    %1802 = vmatpush1.bf16.msra.mxu0 0
    %1803 = vmatprep.subr.bf16.mxu0 0
    %1804 = vmatpush1.bf16.msra.mxu0 0
    %1805 = vmatprep.subr.bf16.mxu0 0
    %1806 = vmatpush1.bf16.msra.mxu0 0
    %1807 = vmatprep.subr.bf16.mxu0 0
    %1808 = vmatpush1.bf16.msra.mxu0 0
    %1809 = vmatprep.subr.bf16.mxu0 0
    %1810 = vmatpush1.bf16.msra.mxu0 0
    %1811 = vmatprep.subr.bf16.mxu0 0
    %1812 = vmatpush1.bf16.msra.mxu0 0
    %1813 = vmatprep.subr.bf16.mxu0 0
    %1814 = vmatpush1.bf16.msra.mxu0 0
    %1815 = vmatprep.subr.bf16.mxu0 0
    %1816 = vmatpush1.bf16.msra.mxu0 0
    %1817 = vmatprep.subr.bf16.mxu0 0
    %1818 = vmatpush1.bf16.msra.mxu0 0
    %1819 = vmatprep.subr.bf16.mxu0 0
    %1820 = vmatpush1.bf16.msra.mxu0 0
    %1821 = vmatprep.subr.bf16.mxu0 0
    %1822 = vmatpush1.bf16.msra.mxu0 0
    %1823 = vmatprep.mubr.bf16.mxu0 0
    %1824 = vmatmul.mubr.bf16.gmra.mrb[0].mxu0 %v1789
    %v1825 = vpop.f32.mrb[0].mxu0
    %v1826 = vadd.f32 0.0, %v1825
    %v1827 = vpop.f32.mrb[0].mxu0
    %v1828 = vpop.f32.mrb[0].mxu0
    %v1829 = vpop.f32.mrb[0].mxu0
    %1830 = vdwg.mxu0
    %v1831 = vpack.c.bf16 %v1826, %v1826
    %s1832 = scalar_lea.vmem %s41, 48
    %v1833 = vld [vmem:[%s1832] sm:$0xf]
    %v1834 = vld [vmem:[%s1832 + $0x4] sm:$0xf]
    %v1835 = vld [vmem:[%s1832 + $0x8] sm:$0xf]
    %v1836 = vld [vmem:[%s1832 + $0xc] sm:$0xf]
    %v1837 = vld [vmem:[%s1832 + $0x10] sm:$0xf]
    %v1838 = vld [vmem:[%s1832 + $0x14] sm:$0xf]
    %v1845 = vunpack.c.l.b16 %v1833
    %v1846 = vunpack.c.l.b16 %v1834
    %v1847 = vunpack.c.l.b16 %v1835
    %v1848 = vunpack.c.l.b16 %v1836
    %v1849 = vunpack.c.l.b16 %v1837
    %v1850 = vunpack.c.l.b16 %v1838
    %v1851 = vpack.c.b16 %v1846, %v1845
    %v1852 = vpack.c.b16 %v1848, %v1847
    %v1853 = vpack.c.b16 %v1850, %v1849
    %v1858 = vsel %vm1682, %v1831, 0
    %1860 = vmatprep.subr.bf16.mxu0 0
    %1861 = vmatpush1.bf16.msra.mxu0 %v1851
    %1862 = vmatprep.subr.bf16.mxu0 0
    %1863 = vmatpush1.bf16.msra.mxu0 %v1852
    %1864 = vmatprep.subr.bf16.mxu0 0
    %1865 = vmatpush1.bf16.msra.mxu0 %v1853
    %1866 = vmatprep.subr.bf16.mxu0 0
    %1867 = vmatpush1.bf16.msra.mxu0 0
    %1868 = vmatprep.subr.bf16.mxu0 0
    %1869 = vmatpush1.bf16.msra.mxu0 0
    %1870 = vmatprep.subr.bf16.mxu0 0
    %1871 = vmatpush1.bf16.msra.mxu0 0
    %1872 = vmatprep.subr.bf16.mxu0 0
    %1873 = vmatpush1.bf16.msra.mxu0 0
    %1874 = vmatprep.subr.bf16.mxu0 0
    %1875 = vmatpush1.bf16.msra.mxu0 0
    %1876 = vmatprep.subr.bf16.mxu0 0
    %1877 = vmatpush1.bf16.msra.mxu0 0
    %1878 = vmatprep.subr.bf16.mxu0 0
    %1879 = vmatpush1.bf16.msra.mxu0 0
    %1880 = vmatprep.subr.bf16.mxu0 0
    %1881 = vmatpush1.bf16.msra.mxu0 0
    %1882 = vmatprep.subr.bf16.mxu0 0
    %1883 = vmatpush1.bf16.msra.mxu0 0
    %1884 = vmatprep.subr.bf16.mxu0 0
    %1885 = vmatpush1.bf16.msra.mxu0 0
    %1886 = vmatprep.subr.bf16.mxu0 0
    %1887 = vmatpush1.bf16.msra.mxu0 0
    %1888 = vmatprep.subr.bf16.mxu0 0
    %1889 = vmatpush1.bf16.msra.mxu0 0
    %1890 = vmatprep.subr.bf16.mxu0 0
    %1891 = vmatpush1.bf16.msra.mxu0 0
    %1892 = vmatprep.mubr.bf16.mxu0 0
    %1893 = vmatmul.mubr.bf16.gmra.mrb[0].mxu0 %v1858
    %v1894 = vpop.f32.mrb[0].mxu0
    %v1895 = vadd.f32 0.0, %v1894
    %v1896 = vpop.f32.mrb[0].mxu0
    %v1897 = vpop.f32.mrb[0].mxu0
    %v1898 = vpop.f32.mrb[0].mxu0
    %1899 = vdwg.mxu0
    %v1900 = vadd.f32 %v1781, %v1895
    %v1901 = vld [vmem:[%s43] sm:$0x1]
    %v1903 = vlaneseq
    %v1904 = vshrl.u32 %v1903, 7
    %v1905 = vsub.s32 0, %v1904
    %v1906 = vrot.slane %v1901, %v1905
    %v1908 = vadd.f32 %v1900, %v1906
    %v1909 = vadd.f32 %v1908, %v1479
    %v1910 = vmax.f32 %v1909, 0.0
    %v1911 = vpack.c.bf16 %v1910, %v1910
    %v1912 = vld [vmem:[#allocation3] sm:$0x1]
    %v1914 = vsel %vm1609, %v1912, 0
    %v1917 = vsel %vm1613, %v1911, 0
    %1919 = vmatprep.subr.bf16.mxu0 0
    %1920 = vmatpush1.bf16.msra.mxu0 %v1917
    %1921 = vmatprep.subr.bf16.mxu0 0
    %1922 = vmatpush1.bf16.msra.mxu0 0
    %1923 = vmatprep.subr.bf16.mxu0 0
    %1924 = vmatpush1.bf16.msra.mxu0 0
    %1925 = vmatprep.subr.bf16.mxu0 0
    %1926 = vmatpush1.bf16.msra.mxu0 0
    %1927 = vmatprep.subr.bf16.mxu0 0
    %1928 = vmatpush1.bf16.msra.mxu0 0
    %1929 = vmatprep.subr.bf16.mxu0 0
    %1930 = vmatpush1.bf16.msra.mxu0 0
    %1931 = vmatprep.subr.bf16.mxu0 0
    %1932 = vmatpush1.bf16.msra.mxu0 0
    %1933 = vmatprep.subr.bf16.mxu0 0
    %1934 = vmatpush1.bf16.msra.mxu0 0
    %1935 = vmatprep.subr.bf16.mxu0 0
    %1936 = vmatpush1.bf16.msra.mxu0 0
    %1937 = vmatprep.subr.bf16.mxu0 0
    %1938 = vmatpush1.bf16.msra.mxu0 0
    %1939 = vmatprep.subr.bf16.mxu0 0
    %1940 = vmatpush1.bf16.msra.mxu0 0
    %1941 = vmatprep.subr.bf16.mxu0 0
    %1942 = vmatpush1.bf16.msra.mxu0 0
    %1943 = vmatprep.subr.bf16.mxu0 0
    %1944 = vmatpush1.bf16.msra.mxu0 0
    %1945 = vmatprep.subr.bf16.mxu0 0
    %1946 = vmatpush1.bf16.msra.mxu0 0
    %1947 = vmatprep.subr.bf16.mxu0 0
    %1948 = vmatpush1.bf16.msra.mxu0 0
    %1949 = vmatprep.subr.bf16.mxu0 0
    %1950 = vmatpush1.bf16.msra.mxu0 0
    %1951 = vmatprep.mubr.bf16.mxu0 0
    %1952 = vmatmul.mubr.bf16.gmra.mrb[0].mxu0 %v1914
    %v1953 = vpop.f32.mrb[0].mxu0
    %v1954 = vadd.f32 0.0, %v1953
    %v1955 = vpop.f32.mrb[0].mxu0
    %v1956 = vpop.f32.mrb[0].mxu0
    %v1957 = vpop.f32.mrb[0].mxu0
    %1958 = vdwg.mxu0
    %v1959 = vpack.c.bf16 %v1954, %v1954
    %v1960 = vld [vmem:[%s45] sm:$0xf]
    %v1961 = vld [vmem:[%s45 + $0x4] sm:$0xf]
    %v1962 = vld [vmem:[%s45 + $0x8] sm:$0xf]
    %v1963 = vld [vmem:[%s45 + $0xc] sm:$0xf]
    %v1964 = vld [vmem:[%s45 + $0x10] sm:$0xf]
    %v1965 = vld [vmem:[%s45 + $0x14] sm:$0xf]
    %v1966 = vld [vmem:[%s47] sm:$0x1]
    %v1968 = vlaneseq
    %v1969 = vshrl.u32 %v1968, 7
    %v1970 = vsub.s32 0, %v1969
    %v1971 = vrot.slane %v1966, %v1970
    %v1979 = vunpack.c.l.b16 %v1960
    %v1980 = vunpack.c.l.b16 %v1961
    %v1981 = vunpack.c.l.b16 %v1962
    %v1982 = vunpack.c.l.b16 %v1963
    %v1983 = vunpack.c.l.b16 %v1964
    %v1984 = vunpack.c.l.b16 %v1965
    %v1985 = vpack.c.b16 %v1980, %v1979
    %v1986 = vpack.c.b16 %v1982, %v1981
    %v1987 = vpack.c.b16 %v1984, %v1983
    %v1992 = vsel %vm1682, %v1959, 0
    %1994 = vmatprep.subr.bf16.mxu0 0
    %1995 = vmatpush1.bf16.msra.mxu0 %v1985
    %1996 = vmatprep.subr.bf16.mxu0 0
    %1997 = vmatpush1.bf16.msra.mxu0 %v1986
    %1998 = vmatprep.subr.bf16.mxu0 0
    %1999 = vmatpush1.bf16.msra.mxu0 %v1987
    %2000 = vmatprep.subr.bf16.mxu0 0
    %2001 = vmatpush1.bf16.msra.mxu0 0
    %2002 = vmatprep.subr.bf16.mxu0 0
    %2003 = vmatpush1.bf16.msra.mxu0 0
    %2004 = vmatprep.subr.bf16.mxu0 0
    %2005 = vmatpush1.bf16.msra.mxu0 0
    %2006 = vmatprep.subr.bf16.mxu0 0
    %2007 = vmatpush1.bf16.msra.mxu0 0
    %2008 = vmatprep.subr.bf16.mxu0 0
    %2009 = vmatpush1.bf16.msra.mxu0 0
    %2010 = vmatprep.subr.bf16.mxu0 0
    %2011 = vmatpush1.bf16.msra.mxu0 0
    %2012 = vmatprep.subr.bf16.mxu0 0
    %2013 = vmatpush1.bf16.msra.mxu0 0
    %2014 = vmatprep.subr.bf16.mxu0 0
    %2015 = vmatpush1.bf16.msra.mxu0 0
    %2016 = vmatprep.subr.bf16.mxu0 0
    %2017 = vmatpush1.bf16.msra.mxu0 0
    %2018 = vmatprep.subr.bf16.mxu0 0
    %2019 = vmatpush1.bf16.msra.mxu0 0
    %2020 = vmatprep.subr.bf16.mxu0 0
    %2021 = vmatpush1.bf16.msra.mxu0 0
    %2022 = vmatprep.subr.bf16.mxu0 0
    %2023 = vmatpush1.bf16.msra.mxu0 0
    %2024 = vmatprep.subr.bf16.mxu0 0
    %2025 = vmatpush1.bf16.msra.mxu0 0
    %2026 = vmatprep.mubr.bf16.mxu0 0
    %2027 = vmatmul.mubr.bf16.gmra.mrb[0].mxu0 %v1992
    %v2028 = vpop.f32.mrb[0].mxu0
    %v2029 = vadd.f32 %v1971, %v2028
    %v2030 = vpop.f32.mrb[0].mxu0
    %v2031 = vpop.f32.mrb[0].mxu0
    %v2032 = vpop.f32.mrb[0].mxu0
    %2033 = vdwg.mxu0
    %v2034 = vmax.f32 %v2029, 0.0
    %v2035 = vpack.c.bf16 %v2034, %v2034
    %v2036 = vld [vmem:[%s49] sm:$0xf]
    %v2037 = vld [vmem:[%s49 + $0x4] sm:$0xf]
    %v2038 = vld [vmem:[%s49 + $0x8] sm:$0xf]
    %v2039 = vld [vmem:[%s49 + $0xc] sm:$0xf]
    %v2040 = vld [vmem:[%s49 + $0x10] sm:$0xf]
    %v2041 = vld [vmem:[%s49 + $0x14] sm:$0xf]
    %v2042 = vld [vmem:[%s49 + $0x18] sm:$0xf]
    %v2043 = vld [vmem:[%s49 + $0x1c] sm:$0xf]
    %v2044 = vld [vmem:[%s51] sm:$0x1]
    %v2046 = vlaneseq
    %v2047 = vshrl.u32 %v2046, 7
    %v2048 = vsub.s32 0, %v2047
    %v2049 = vrot.slane %v2044, %v2048
    %v2059 = vunpack.c.l.b16 %v2036
    %v2060 = vunpack.c.l.b16 %v2037
    %v2061 = vunpack.c.l.b16 %v2038
    %v2062 = vunpack.c.l.b16 %v2039
    %v2063 = vunpack.c.l.b16 %v2040
    %v2064 = vunpack.c.l.b16 %v2041
    %v2065 = vunpack.c.l.b16 %v2042
    %v2066 = vunpack.c.l.b16 %v2043
    %v2067 = vpack.c.b16 %v2060, %v2059
    %v2068 = vpack.c.b16 %v2062, %v2061
    %v2069 = vpack.c.b16 %v2064, %v2063
    %v2070 = vpack.c.b16 %v2066, %v2065
    %vm2075 = vcmask 523264
    %v2077 = vsel %vm2075, %v2035, 0
    %2079 = vmatprep.subr.bf16.mxu0 0
    %2080 = vmatpush1.bf16.msra.mxu0 %v2067
    %2081 = vmatprep.subr.bf16.mxu0 0
    %2082 = vmatpush1.bf16.msra.mxu0 %v2068
    %2083 = vmatprep.subr.bf16.mxu0 0
    %2084 = vmatpush1.bf16.msra.mxu0 %v2069
    %2085 = vmatprep.subr.bf16.mxu0 0
    %2086 = vmatpush1.bf16.msra.mxu0 %v2070
    %2087 = vmatprep.subr.bf16.mxu0 0
    %2088 = vmatpush1.bf16.msra.mxu0 0
    %2089 = vmatprep.subr.bf16.mxu0 0
    %2090 = vmatpush1.bf16.msra.mxu0 0
    %2091 = vmatprep.subr.bf16.mxu0 0
    %2092 = vmatpush1.bf16.msra.mxu0 0
    %2093 = vmatprep.subr.bf16.mxu0 0
    %2094 = vmatpush1.bf16.msra.mxu0 0
    %2095 = vmatprep.subr.bf16.mxu0 0
    %2096 = vmatpush1.bf16.msra.mxu0 0
    %2097 = vmatprep.subr.bf16.mxu0 0
    %2098 = vmatpush1.bf16.msra.mxu0 0
    %2099 = vmatprep.subr.bf16.mxu0 0
    %2100 = vmatpush1.bf16.msra.mxu0 0
    %2101 = vmatprep.subr.bf16.mxu0 0
    %2102 = vmatpush1.bf16.msra.mxu0 0
    %2103 = vmatprep.subr.bf16.mxu0 0
    %2104 = vmatpush1.bf16.msra.mxu0 0
    %2105 = vmatprep.subr.bf16.mxu0 0
    %2106 = vmatpush1.bf16.msra.mxu0 0
    %2107 = vmatprep.subr.bf16.mxu0 0
    %2108 = vmatpush1.bf16.msra.mxu0 0
    %2109 = vmatprep.subr.bf16.mxu0 0
    %2110 = vmatpush1.bf16.msra.mxu0 0
    %2111 = vmatprep.mubr.bf16.mxu0 0
    %2112 = vmatmul.mubr.bf16.gmra.mrb[0].mxu0 %v2077
    %v2113 = vpop.f32.mrb[0].mxu0
    %v2114 = vadd.f32 %v2049, %v2113
    %v2115 = vpop.f32.mrb[0].mxu0
    %v2116 = vpop.f32.mrb[0].mxu0
    %v2117 = vpop.f32.mrb[0].mxu0
    %2118 = vdwg.mxu0
    %v2119 = vld [vmem:[%s53] sm:$0x1]
    %2121 = vset.pattern.permute.xlu0 12
    %2122 = vperm.xlu0 %2121, %v253
    %v2123 = vpop.permute.xlu0 %2122
    %v2126 = vlaneseq
    %v2127 = vshrl.u32 %v2126, 7
    %v2128 = vsub.s32 0, %v2127
    %v2129 = vrot.slane %v2119, %v2128
    %v2131 = vmul.f32 %v2123, %v2129
    %v2132 = vld [vmem:[%s55] sm:$0xff]
    %v2133 = vld [vmem:[%s55 + $0x8] sm:$0xff]
    %v2134 = vld [vmem:[%s55 + $0x10] sm:$0xff]
    %v2135 = vld [vmem:[%s55 + $0x18] sm:$0xff]
    %v2137 = vsel %vm992, %v2114, 0
    %2139 = vmatprep.subr.mxu0 0.0
    %2140 = vmatpush1.msra.mxu0 %v2132
    %2141 = vmatprep.subr.mxu0 0.0
    %2142 = vmatpush1.msra.mxu0 %v2133
    %2143 = vmatprep.subr.mxu0 0.0
    %2144 = vmatpush1.msra.mxu0 %v2134
    %2145 = vmatprep.subr.mxu0 0.0
    %2146 = vmatpush1.msra.mxu0 %v2135
    %2147 = vmatprep.subr.mxu0 0.0
    %2148 = vmatpush1.msra.mxu0 0.0
    %2149 = vmatprep.subr.mxu0 0.0
    %2150 = vmatpush1.msra.mxu0 0.0
    %2151 = vmatprep.subr.mxu0 0.0
    %2152 = vmatpush1.msra.mxu0 0.0
    %2153 = vmatprep.subr.mxu0 0.0
    %2154 = vmatpush1.msra.mxu0 0.0
    %2155 = vmatprep.subr.mxu0 0.0
    %2156 = vmatpush1.msra.mxu0 0.0
    %2157 = vmatprep.subr.mxu0 0.0
    %2158 = vmatpush1.msra.mxu0 0.0
    %2159 = vmatprep.subr.mxu0 0.0
    %2160 = vmatpush1.msra.mxu0 0.0
    %2161 = vmatprep.subr.mxu0 0.0
    %2162 = vmatpush1.msra.mxu0 0.0
    %2163 = vmatprep.subr.mxu0 0.0
    %2164 = vmatpush1.msra.mxu0 0.0
    %2165 = vmatprep.subr.mxu0 0.0
    %2166 = vmatpush1.msra.mxu0 0.0
    %2167 = vmatprep.subr.mxu0 0.0
    %2168 = vmatpush1.msra.mxu0 0.0
    %2169 = vmatprep.subr.mxu0 0.0
    %2170 = vmatpush1.msra.mxu0 0.0
    %2171 = vmatprep.subr.mxu0 0.0
    %2172 = vmatpush1.msra.mxu0 0.0
    %2173 = vmatprep.subr.mxu0 0.0
    %2174 = vmatpush1.msra.mxu0 0.0
    %2175 = vmatprep.subr.mxu0 0.0
    %2176 = vmatpush1.msra.mxu0 0.0
    %2177 = vmatprep.subr.mxu0 0.0
    %2178 = vmatpush1.msra.mxu0 0.0
    %2179 = vmatprep.subr.mxu0 0.0
    %2180 = vmatpush1.msra.mxu0 0.0
    %2181 = vmatprep.subr.mxu0 0.0
    %2182 = vmatpush1.msra.mxu0 0.0
    %2183 = vmatprep.subr.mxu0 0.0
    %2184 = vmatpush1.msra.mxu0 0.0
    %2185 = vmatprep.subr.mxu0 0.0
    %2186 = vmatpush1.msra.mxu0 0.0
    %2187 = vmatprep.subr.mxu0 0.0
    %2188 = vmatpush1.msra.mxu0 0.0
    %2189 = vmatprep.subr.mxu0 0.0
    %2190 = vmatpush1.msra.mxu0 0.0
    %2191 = vmatprep.subr.mxu0 0.0
    %2192 = vmatpush1.msra.mxu0 0.0
    %2193 = vmatprep.subr.mxu0 0.0
    %2194 = vmatpush1.msra.mxu0 0.0
    %2195 = vmatprep.subr.mxu0 0.0
    %2196 = vmatpush1.msra.mxu0 0.0
    %2197 = vmatprep.subr.mxu0 0.0
    %2198 = vmatpush1.msra.mxu0 0.0
    %2199 = vmatprep.subr.mxu0 0.0
    %2200 = vmatpush1.msra.mxu0 0.0
    %2201 = vmatprep.subr.mxu0 0.0
    %2202 = vmatpush1.msra.mxu0 0.0
    %2203 = vmatprep.mubr.f32.mxu0 0.0
    %2204 = vmatmul.mubr.f32.gmra.mrb[0].mxu0 %v2137
    %v2205 = vpop.f32.mrb[0].mxu0
    %v2206 = vadd.f32 0.0, %v2205
    %v2207 = vpop.f32.mrb[0].mxu0
    %2208 = vdwg.mxu0
    %v2209 = vadd.f32 %v2131, %v2206
    %v2210 = vld [vmem:[#allocation5] sm:$0x1]
    %v2212 = vlaneseq
    %v2213 = vshrl.u32 %v2212, 7
    %v2214 = vsub.s32 0, %v2213
    %v2215 = vrot.slane %v2210, %v2214
    %v2217 = vadd.f32 %v2209, %v2215
    %v2218 = vand.u32 2147483647, %v2217
    %vm2219 = vcmp.le.f32.partialorder %v2218, 0.7853982
    %vm2220 = vcmp.lt.s32.totalorder %v2217, 0
    %v2221 = vand.u32 %v2217, 2139095040
    %v2222 = vshrl.u32 %v2221, 23
    %v2223 = vsub.s32 %v2222, 127
    %v2224 = vand.u32 2147483647, %v2217
    %v2225 = vand.u32 %v2224, 8388607
    %v2226 = vor.u32 %v2225, 8388608
    %v2227 = vsub.s32 0, %v2226
    %v2228 = vadd.s32 %v2223, 1
    %vm2229 = vcmp.gt.s32.totalorder %v2228, 0
    %v2230 = vsel %vm2229, %v2228, 0
    %v2231 = vshrl.u32 %v2230, 5
    %v2232 = vand.u32 %v2230, 31
    %v2233 = vsub.s32 32, %v2232
    %v2234 = vshrl.u32 683565275, %v2233
    %v2235 = vshll.u32 683565275, %v2232
    %v2236 = vshrl.u32 2475754826, %v2233
    %v2237 = vor.u32 %v2235, %v2236
    %v2238 = vshll.u32 2475754826, %v2232
    %v2239 = vshrl.u32 2131351028, %v2233
    %v2240 = vor.u32 %v2238, %v2239
    %v2241 = vshll.u32 2131351028, %v2232
    %v2242 = vshrl.u32 2102212464, %v2233
    %v2243 = vor.u32 %v2241, %v2242
    %v2244 = vshll.u32 2102212464, %v2232
    %v2245 = vshrl.u32 920167782, %v2233
    %v2246 = vor.u32 %v2244, %v2245
    %v2247 = vshll.u32 920167782, %v2232
    %v2248 = vshrl.u32 1326507024, %v2233
    %v2249 = vor.u32 %v2247, %v2248
    %vm2250 = vcmp.lt.s32.totalorder %v2231, 1
    %vm2251 = vcmp.lt.s32.totalorder %v2231, 2
    %vm2252 = vcmp.lt.s32.totalorder %v2231, 3
    %vm2253 = vcmp.lt.s32.totalorder %v2231, 4
    %v2254 = vsel %vm2250, %v2234, %v2237
    %v2255 = vsel %vm2253, %v2243, 2102212464
    %v2256 = vsel %vm2252, %v2240, %v2255
    %v2257 = vsel %vm2251, %v2254, %v2256
    %v2258 = vsel %vm2250, %v2237, %v2240
    %v2259 = vsel %vm2253, %v2246, 920167782
    %v2260 = vsel %vm2252, %v2243, %v2259
    %v2261 = vsel %vm2251, %v2258, %v2260
    %v2262 = vsel %vm2250, %v2240, %v2243
    %v2263 = vsel %vm2253, %v2249, 1326507024
    %v2264 = vsel %vm2252, %v2246, %v2263
    %v2265 = vsel %vm2251, %v2262, %v2264
    %v2266 = vshll.u32 %v2226, 8
    %v2267 = vmul.u32.u64.compose %v2266, %v2265
    %v2268 = vextract.low.u32 %v2267
    %v2269 = vextract.high.u32 %v2267
    %v2270 = vmul.u32.u64.compose %v2266, %v2261
    %v2271 = vextract.low.u32 %v2270
    %v2272 = vextract.high.u32 %v2270
    %v2273 = vmul.u32 %v2266, %v2257
    %v2274 = vadd.s32 %v2269, %v2271
    %vm2275 = vc.u32 %v2269, %v2271
    %v2276 = vadd.s32 %v2272, 1
    %v2277 = vsel %vm2275, %v2276, %v2272
    %v2278 = vadd.s32 %v2273, %v2277
    %v2279 = vadd.s32 %v2278, 536870912
    %v2280 = vshrl.u32 %v2279, 30
    %v2281 = vshll.u32 %v2280, 30
    %v2282 = vsub.s32 %v2278, %v2281
    %vm2283 = vcmp.lt.s32.totalorder %v2282, 0
    %v2284 = vsub.s32 0, %v2282
    %v2285 = vsel %vm2283, %v2284, %v2282
    %v2286 = vclz %v2285
    %v2287 = vsub.s32 %v2286, 2
    %vm2288 = vcmp.gt.s32.totalorder 0, %v2287
    %v2289 = vsel %vm2288, 0, %v2287
    %v2290 = vsub.s32 32, %v2289
    %v2291 = vshll.u32 %v2282, %v2289
    %v2292 = vshrl.u32 %v2274, %v2290
    %v2293 = vor.u32 %v2291, %v2292
    %v2294 = vsub.s32 4294967266, %v2289
    %v2295 = vadd.s32 %v2294, 127
    %v2296 = vshll.u32 %v2295, 23
    %v2297 = vor.u32 4788187, %v2296
    %v2298 = vand.u32 2147483647, %v2297
    %v2300 = vcvt.s32.f32 %v2293
    %v2301 = vmul.f32 %v2300, %v2298
    %v2302 = vxor.u32 %v2301, 2147483648
    %v2303 = vsel %vm2220, %v2302, %v2301
    %v2304 = vsub.s32 4, %v2280
    %v2305 = vsel %vm2220, %v2304, %v2280
    %v2306 = vsel %vm2219, %v2217, %v2303
    %v2307 = vsel %vm2219, 0, %v2305
    %v2308 = vcosq.f32.pop %v2306
    %v2309 = vsinq.f32.pop %v2306
    %vm2310 = vweird.f32 %v2217
    %v2311 = vadd.s32 %v2307, 3
    %v2312 = vand.u32 %v2311, 3
    %vm2313 = vcmp.lt.s32.totalorder %v2312, 2
    %vm2314 = vcmp.eq.s32.totalorder %v2312, 0
    %v2315 = vxor.u32 %v2309, 2147483648
    %v2316 = vsel %vm2314, %v2308, %v2315
    %vm2317 = vcmp.eq.s32.totalorder %v2312, 2
    %v2318 = vxor.u32 %v2308, 2147483648
    %v2319 = vsel %vm2317, %v2318, %v2309
    %v2320 = vsel %vm2313, %v2316, %v2319
    %v2321 = vsel %vm2310, nan, %v2320
    %v2322 = vld [vmem:[%s59] sm:$0xff]
    %v2323 = vld [vmem:[%s59 + $0x8] sm:$0xff]
    %v2324 = vld [vmem:[%s59 + $0x10] sm:$0xff]
    %v2325 = vld [vmem:[%s59 + $0x18] sm:$0xff]
    %v2326 = vld [vmem:[%s59 + $0x20] sm:$0xff]
    %v2327 = vld [vmem:[%s59 + $0x28] sm:$0xff]
    %v2328 = vld [vmem:[%s59 + $0x30] sm:$0xff]
    %v2329 = vld [vmem:[%s59 + $0x38] sm:$0xff]
    %v2330 = vld [vmem:[#allocation7] sm:$0x1]
    %v2332 = vlaneseq
    %v2333 = vshrl.u32 %v2332, 7
    %v2334 = vsub.s32 0, %v2333
    %v2335 = vrot.slane %v2330, %v2334
    %v2338 = vsel %vm2075, %v2321, 0
    %2340 = vmatprep.subr.mxu0 0.0
    %2341 = vmatpush1.msra.mxu0 %v2322
    %2342 = vmatprep.subr.mxu0 0.0
    %2343 = vmatpush1.msra.mxu0 %v2323
    %2344 = vmatprep.subr.mxu0 0.0
    %2345 = vmatpush1.msra.mxu0 %v2324
    %2346 = vmatprep.subr.mxu0 0.0
    %2347 = vmatpush1.msra.mxu0 %v2325
    %2348 = vmatprep.subr.mxu0 0.0
    %2349 = vmatpush1.msra.mxu0 %v2326
    %2350 = vmatprep.subr.mxu0 0.0
    %2351 = vmatpush1.msra.mxu0 %v2327
    %2352 = vmatprep.subr.mxu0 0.0
    %2353 = vmatpush1.msra.mxu0 %v2328
    %2354 = vmatprep.subr.mxu0 0.0
    %2355 = vmatpush1.msra.mxu0 %v2329
    %2356 = vmatprep.subr.mxu0 0.0
    %2357 = vmatpush1.msra.mxu0 0.0
    %2358 = vmatprep.subr.mxu0 0.0
    %2359 = vmatpush1.msra.mxu0 0.0
    %2360 = vmatprep.subr.mxu0 0.0
    %2361 = vmatpush1.msra.mxu0 0.0
    %2362 = vmatprep.subr.mxu0 0.0
    %2363 = vmatpush1.msra.mxu0 0.0
    %2364 = vmatprep.subr.mxu0 0.0
    %2365 = vmatpush1.msra.mxu0 0.0
    %2366 = vmatprep.subr.mxu0 0.0
    %2367 = vmatpush1.msra.mxu0 0.0
    %2368 = vmatprep.subr.mxu0 0.0
    %2369 = vmatpush1.msra.mxu0 0.0
    %2370 = vmatprep.subr.mxu0 0.0
    %2371 = vmatpush1.msra.mxu0 0.0
    %2372 = vmatprep.subr.mxu0 0.0
    %2373 = vmatpush1.msra.mxu0 0.0
    %2374 = vmatprep.subr.mxu0 0.0
    %2375 = vmatpush1.msra.mxu0 0.0
    %2376 = vmatprep.subr.mxu0 0.0
    %2377 = vmatpush1.msra.mxu0 0.0
    %2378 = vmatprep.subr.mxu0 0.0
    %2379 = vmatpush1.msra.mxu0 0.0
    %2380 = vmatprep.subr.mxu0 0.0
    %2381 = vmatpush1.msra.mxu0 0.0
    %2382 = vmatprep.subr.mxu0 0.0
    %2383 = vmatpush1.msra.mxu0 0.0
    %2384 = vmatprep.subr.mxu0 0.0
    %2385 = vmatpush1.msra.mxu0 0.0
    %2386 = vmatprep.subr.mxu0 0.0
    %2387 = vmatpush1.msra.mxu0 0.0
    %2388 = vmatprep.subr.mxu0 0.0
    %2389 = vmatpush1.msra.mxu0 0.0
    %2390 = vmatprep.subr.mxu0 0.0
    %2391 = vmatpush1.msra.mxu0 0.0
    %2392 = vmatprep.subr.mxu0 0.0
    %2393 = vmatpush1.msra.mxu0 0.0
    %2394 = vmatprep.subr.mxu0 0.0
    %2395 = vmatpush1.msra.mxu0 0.0
    %2396 = vmatprep.subr.mxu0 0.0
    %2397 = vmatpush1.msra.mxu0 0.0
    %2398 = vmatprep.subr.mxu0 0.0
    %2399 = vmatpush1.msra.mxu0 0.0
    %2400 = vmatprep.subr.mxu0 0.0
    %2401 = vmatpush1.msra.mxu0 0.0
    %2402 = vmatprep.subr.mxu0 0.0
    %2403 = vmatpush1.msra.mxu0 0.0
    %2404 = vmatprep.mubr.f32.mxu0 0.0
    %2405 = vmatmul.mubr.f32.gmra.mrb[0].mxu0 %v2338
    %v2406 = vpop.f32.mrb[0].mxu0
    %v2407 = vadd.f32 %v2335, %v2406
    %v2408 = vpop.f32.mrb[0].mxu0
    %2409 = vdwg.mxu0
    %v2410 = vand.u32 2147483647, %v2407
    %vm2411 = vcmp.le.f32.partialorder %v2410, 0.7853982
    %vm2412 = vcmp.lt.s32.totalorder %v2407, 0
    %v2413 = vand.u32 %v2407, 2139095040
    %v2414 = vshrl.u32 %v2413, 23
    %v2415 = vsub.s32 %v2414, 127
    %v2416 = vand.u32 2147483647, %v2407
    %v2417 = vand.u32 %v2416, 8388607
    %v2418 = vor.u32 %v2417, 8388608
    %v2419 = vsub.s32 0, %v2418
    %v2420 = vadd.s32 %v2415, 1
    %vm2421 = vcmp.gt.s32.totalorder %v2420, 0
    %v2422 = vsel %vm2421, %v2420, 0
    %v2423 = vshrl.u32 %v2422, 5
    %v2424 = vand.u32 %v2422, 31
    %v2425 = vsub.s32 32, %v2424
    %v2426 = vshrl.u32 683565275, %v2425
    %v2427 = vshll.u32 683565275, %v2424
    %v2428 = vshrl.u32 2475754826, %v2425
    %v2429 = vor.u32 %v2427, %v2428
    %v2430 = vshll.u32 2475754826, %v2424
    %v2431 = vshrl.u32 2131351028, %v2425
    %v2432 = vor.u32 %v2430, %v2431
    %v2433 = vshll.u32 2131351028, %v2424
    %v2434 = vshrl.u32 2102212464, %v2425
    %v2435 = vor.u32 %v2433, %v2434
    %v2436 = vshll.u32 2102212464, %v2424
    %v2437 = vshrl.u32 920167782, %v2425
    %v2438 = vor.u32 %v2436, %v2437
    %v2439 = vshll.u32 920167782, %v2424
    %v2440 = vshrl.u32 1326507024, %v2425
    %v2441 = vor.u32 %v2439, %v2440
    %vm2442 = vcmp.lt.s32.totalorder %v2423, 1
    %vm2443 = vcmp.lt.s32.totalorder %v2423, 2
    %vm2444 = vcmp.lt.s32.totalorder %v2423, 3
    %vm2445 = vcmp.lt.s32.totalorder %v2423, 4
    %v2446 = vsel %vm2442, %v2426, %v2429
    %v2447 = vsel %vm2445, %v2435, 2102212464
    %v2448 = vsel %vm2444, %v2432, %v2447
    %v2449 = vsel %vm2443, %v2446, %v2448
    %v2450 = vsel %vm2442, %v2429, %v2432
    %v2451 = vsel %vm2445, %v2438, 920167782
    %v2452 = vsel %vm2444, %v2435, %v2451
    %v2453 = vsel %vm2443, %v2450, %v2452
    %v2454 = vsel %vm2442, %v2432, %v2435
    %v2455 = vsel %vm2445, %v2441, 1326507024
    %v2456 = vsel %vm2444, %v2438, %v2455
    %v2457 = vsel %vm2443, %v2454, %v2456
    %v2458 = vshll.u32 %v2418, 8
    %v2459 = vmul.u32.u64.compose %v2458, %v2457
    %v2460 = vextract.low.u32 %v2459
    %v2461 = vextract.high.u32 %v2459
    %v2462 = vmul.u32.u64.compose %v2458, %v2453
    %v2463 = vextract.low.u32 %v2462
    %v2464 = vextract.high.u32 %v2462
    %v2465 = vmul.u32 %v2458, %v2449
    %v2466 = vadd.s32 %v2461, %v2463
    %vm2467 = vc.u32 %v2461, %v2463
    %v2468 = vadd.s32 %v2464, 1
    %v2469 = vsel %vm2467, %v2468, %v2464
    %v2470 = vadd.s32 %v2465, %v2469
    %v2471 = vadd.s32 %v2470, 536870912
    %v2472 = vshrl.u32 %v2471, 30
    %v2473 = vshll.u32 %v2472, 30
    %v2474 = vsub.s32 %v2470, %v2473
    %vm2475 = vcmp.lt.s32.totalorder %v2474, 0
    %v2476 = vsub.s32 0, %v2474
    %v2477 = vsel %vm2475, %v2476, %v2474
    %v2478 = vclz %v2477
    %v2479 = vsub.s32 %v2478, 2
    %vm2480 = vcmp.gt.s32.totalorder 0, %v2479
    %v2481 = vsel %vm2480, 0, %v2479
    %v2482 = vsub.s32 32, %v2481
    %v2483 = vshll.u32 %v2474, %v2481
    %v2484 = vshrl.u32 %v2466, %v2482
    %v2485 = vor.u32 %v2483, %v2484
    %v2486 = vsub.s32 4294967266, %v2481
    %v2487 = vadd.s32 %v2486, 127
    %v2488 = vshll.u32 %v2487, 23
    %v2489 = vor.u32 4788187, %v2488
    %v2490 = vand.u32 2147483647, %v2489
    %v2492 = vcvt.s32.f32 %v2485
    %v2493 = vmul.f32 %v2492, %v2490
    %v2494 = vxor.u32 %v2493, 2147483648
    %v2495 = vsel %vm2412, %v2494, %v2493
    %v2496 = vsub.s32 4, %v2472
    %v2497 = vsel %vm2412, %v2496, %v2472
    %v2498 = vsel %vm2411, %v2407, %v2495
    %v2499 = vsel %vm2411, 0, %v2497
    %v2500 = vcosq.f32.pop %v2498
    %v2501 = vsinq.f32.pop %v2498
    %vm2502 = vweird.f32 %v2407
    %v2503 = vadd.s32 %v2499, 3
    %v2504 = vand.u32 %v2503, 3
    %vm2505 = vcmp.lt.s32.totalorder %v2504, 2
    %vm2506 = vcmp.eq.s32.totalorder %v2504, 0
    %v2507 = vxor.u32 %v2501, 2147483648
    %v2508 = vsel %vm2506, %v2500, %v2507
    %vm2509 = vcmp.eq.s32.totalorder %v2504, 2
    %v2510 = vxor.u32 %v2500, 2147483648
    %v2511 = vsel %vm2509, %v2510, %v2501
    %v2512 = vsel %vm2505, %v2508, %v2511
    %v2513 = vsel %vm2502, nan, %v2512
    %v2514 = vld [vmem:[%s63] sm:$0xff]
    %v2515 = vld [vmem:[%s63 + $0x8] sm:$0xff]
    %v2516 = vld [vmem:[%s63 + $0x10] sm:$0xff]
    %v2517 = vld [vmem:[%s63 + $0x18] sm:$0xff]
    %v2518 = vld [vmem:[%s63 + $0x20] sm:$0xff]
    %v2519 = vld [vmem:[%s63 + $0x28] sm:$0xff]
    %v2520 = vld [vmem:[%s63 + $0x30] sm:$0xff]
    %v2521 = vld [vmem:[%s63 + $0x38] sm:$0xff]
    %v2522 = vld [vmem:[#allocation2] sm:$0x1]
    %v2524 = vlaneseq
    %v2525 = vshrl.u32 %v2524, 7
    %v2526 = vsub.s32 0, %v2525
    %v2527 = vrot.slane %v2522, %v2526
    %v2530 = vsel %vm2075, %v2513, 0
    %2532 = vmatprep.subr.mxu0 0.0
    %2533 = vmatpush1.msra.mxu0 %v2514
    %2534 = vmatprep.subr.mxu0 0.0
    %2535 = vmatpush1.msra.mxu0 %v2515
    %2536 = vmatprep.subr.mxu0 0.0
    %2537 = vmatpush1.msra.mxu0 %v2516
    %2538 = vmatprep.subr.mxu0 0.0
    %2539 = vmatpush1.msra.mxu0 %v2517
    %2540 = vmatprep.subr.mxu0 0.0
    %2541 = vmatpush1.msra.mxu0 %v2518
    %2542 = vmatprep.subr.mxu0 0.0
    %2543 = vmatpush1.msra.mxu0 %v2519
    %2544 = vmatprep.subr.mxu0 0.0
    %2545 = vmatpush1.msra.mxu0 %v2520
    %2546 = vmatprep.subr.mxu0 0.0
    %2547 = vmatpush1.msra.mxu0 %v2521
    %2548 = vmatprep.subr.mxu0 0.0
    %2549 = vmatpush1.msra.mxu0 0.0
    %2550 = vmatprep.subr.mxu0 0.0
    %2551 = vmatpush1.msra.mxu0 0.0
    %2552 = vmatprep.subr.mxu0 0.0
    %2553 = vmatpush1.msra.mxu0 0.0
    %2554 = vmatprep.subr.mxu0 0.0
    %2555 = vmatpush1.msra.mxu0 0.0
    %2556 = vmatprep.subr.mxu0 0.0
    %2557 = vmatpush1.msra.mxu0 0.0
    %2558 = vmatprep.subr.mxu0 0.0
    %2559 = vmatpush1.msra.mxu0 0.0
    %2560 = vmatprep.subr.mxu0 0.0
    %2561 = vmatpush1.msra.mxu0 0.0
    %2562 = vmatprep.subr.mxu0 0.0
    %2563 = vmatpush1.msra.mxu0 0.0
    %2564 = vmatprep.subr.mxu0 0.0
    %2565 = vmatpush1.msra.mxu0 0.0
    %2566 = vmatprep.subr.mxu0 0.0
    %2567 = vmatpush1.msra.mxu0 0.0
    %2568 = vmatprep.subr.mxu0 0.0
    %2569 = vmatpush1.msra.mxu0 0.0
    %2570 = vmatprep.subr.mxu0 0.0
    %2571 = vmatpush1.msra.mxu0 0.0
    %2572 = vmatprep.subr.mxu0 0.0
    %2573 = vmatpush1.msra.mxu0 0.0
    %2574 = vmatprep.subr.mxu0 0.0
    %2575 = vmatpush1.msra.mxu0 0.0
    %2576 = vmatprep.subr.mxu0 0.0
    %2577 = vmatpush1.msra.mxu0 0.0
    %2578 = vmatprep.subr.mxu0 0.0
    %2579 = vmatpush1.msra.mxu0 0.0
    %2580 = vmatprep.subr.mxu0 0.0
    %2581 = vmatpush1.msra.mxu0 0.0
    %2582 = vmatprep.subr.mxu0 0.0
    %2583 = vmatpush1.msra.mxu0 0.0
    %2584 = vmatprep.subr.mxu0 0.0
    %2585 = vmatpush1.msra.mxu0 0.0
    %2586 = vmatprep.subr.mxu0 0.0
    %2587 = vmatpush1.msra.mxu0 0.0
    %2588 = vmatprep.subr.mxu0 0.0
    %2589 = vmatpush1.msra.mxu0 0.0
    %2590 = vmatprep.subr.mxu0 0.0
    %2591 = vmatpush1.msra.mxu0 0.0
    %2592 = vmatprep.subr.mxu0 0.0
    %2593 = vmatpush1.msra.mxu0 0.0
    %2594 = vmatprep.subr.mxu0 0.0
    %2595 = vmatpush1.msra.mxu0 0.0
    %2596 = vmatprep.mubr.f32.mxu0 0.0
    %2597 = vmatmul.mubr.f32.gmra.mrb[0].mxu0 %v2530
    %v2598 = vpop.f32.mrb[0].mxu0
    %v2599 = vadd.f32 %v2527, %v2598
    %v2600 = vpop.f32.mrb[0].mxu0
    %2601 = vdwg.mxu0
    %2602 = vrot.lane.b32.xlu0 %v253, 116
    %v2603 = vpop.permute.xlu0 %2602
    %vm2605 = vcmask 1024
    %2606 = vst.msk [vmem:[%s67] sm:$0x3] %vm2605, %v2603
    %2607 = vrot.lane.b32.xlu0 %v253, 12
    %v2608 = vpop.permute.xlu0 %2607
    %v2610 = vrcp.pop %v2608
    %v2611 = vmul.f32 %v253, %v2610
    %2613 = vrot.lane.b32.xlu0 %v2599, 12
    %v2614 = vpop.permute.xlu0 %2613
    %v2616 = vsub.f32 %v2611, %v2614
    %2618 = vrot.lane.b32.xlu0 %v2616, 116
    %v2619 = vpop.permute.xlu0 %2618
    %2621 = vst.msk [vmem:[%s69] sm:$0x3] %vm2605, %v2619
    // Predicated region
    $region146: #{pinn_forward.3} parent=1 // pred_check
      _
    $region147: #{pinn_forward.3} parent=1 // pred_check_branch
      %2623 = sbr.rel (0) target = $region149
    $region148: #{pinn_forward.3} parent=1 // pred_region
      _
    $region149: #{pinn_forward.3} parent=1 // pred_fallthru
      _
    // Predicated region
    $region150: #{pinn_forward.3} parent=1 // pred_check
      _
    $region151: #{pinn_forward.3} parent=1 // pred_check_branch
      %2625 = sbr.rel (0) target = $region153
    $region152: #{pinn_forward.3} parent=1 // pred_region
      _
    $region153: #{pinn_forward.3} parent=1 // pred_fallthru
      _
    // Predicated region
    $region154: #{pinn_forward.3} parent=1 // pred_check
      _
    $region155: #{pinn_forward.3} parent=1 // pred_check_branch
      %2627 = sbr.rel (0) target = $region157
    $region156: #{pinn_forward.3} parent=1 // pred_region
      _
    $region157: #{pinn_forward.3} parent=1 // pred_fallthru
      _
    // Predicated region
    $region158: #{pinn_forward.3} parent=1 // pred_check
      _
    $region159: #{pinn_forward.3} parent=1 // pred_check_branch
      %2629 = sbr.rel (0) target = $region161
    $region160: #{pinn_forward.3} parent=1 // pred_region
      _
    $region161: #{pinn_forward.3} parent=1 // pred_fallthru
      _
    %2630 = vsyncpa [#allocation4], 1
    %2631 = vsyncpa [#allocation6], 1

</llo_original>
